<compile_context>
chip_gen: v6e
topology: v6e:2x2x1
jax: 0.10.0
libtpu: 0.0.40
codegen_flags: <defaults>
</compile_context>

<pallas_src>
import functools

import jax
import jax.numpy as jnp
from jax import lax
from jax.experimental import pallas as pl
from jax.experimental.pallas import tpu as pltpu

_EPS = 1e-5


def _vmem_limit_bytes(frac=0.7, fallback=48 * 1024 * 1024):
    """VMEM limit scaled to the chip (v5e/v6e: 128 MiB, v7x: 64 MiB)."""
    try:
        cap = int(pltpu.get_tpu_info().vmem_capacity_bytes)
        return max(32 * 1024 * 1024, min(int(cap * frac), 100 * 1024 * 1024))
    except Exception:  # attribute / backend mismatch -> safe default
        return fallback


# ----------------------------------------------------------------------------
# Kernel 1: fused encode_p (bi-LSTM + linear_rnn/ReLU + masked-mean reduce +
# folded projection), one batch block per grid step.
#   block inputs (row = t*Bb + b_local):
#     x        [T*Bb, E]     caption embeddings
#     valid    [T*Bb, 1]     1.0 where t < length[b], else 0.0
#     w_ih_*   [E, 4E]       fused input weights, gate order [i|f|o|g]
#     w_hh_*   [E, 4E]       fused recurrent weights
#     b_*      [1, 4E]       fused bias (b_ih + b_hh folded)
#     wrnn_fw/bw [E, E], b_rnn [1, E]   (linear_rnn split into fw/bw halves)
#     bigmask  [Bb*P, T*Bb]  per-block batch-expanded span mask
#     den      [Bb*P, 1]     clamp(mask.sum(t), 1e-12)
#     w_proj   [E, E], b_proj [1, E]    (linear_p + eps*linear_mini folded)
#   block output: p_emb [Bb*P, E]
# ----------------------------------------------------------------------------
def _encode_p_kernel(x_ref, valid_ref,
                     wihf_ref, whhf_ref, bf_ref,
                     wihb_ref, whhb_ref, bb_ref,
                     wrf_ref, wrb_ref, brnn_ref,
                     bigmask_ref, den_ref, wproj_ref, bproj_ref,
                     o_ref,
                     gf_sc, gb_sc, hf_sc, hb_sc, *, Bb):
    TB, E = x_ref.shape
    T = TB // Bb
    E3 = 3 * E
    bf16 = jnp.bfloat16

    # ---- hoisted input-gate matmuls: one lane-dense (TB,E)x(E,4E) per
    #      direction, bf16 operands, f32 accumulation, bias folded in.
    x2d = x_ref[...].astype(bf16)
    gf_sc[...] = (jnp.dot(x2d, wihf_ref[...].astype(bf16),
                          preferred_element_type=jnp.float32) + bf_ref[...])
    gb_sc[...] = (jnp.dot(x2d, wihb_ref[...].astype(bf16),
                          preferred_element_type=jnp.float32) + bb_ref[...])

    # recurrent weights held as two (E,4E) slabs, hoisted out of the loop
    whh_f = whhf_ref[...].astype(bf16)
    whh_b = whhb_ref[...].astype(bf16)

    def cell(g_sc, whh, row, h, c):
        pre = (g_sc[pl.ds(row, Bb), :]
               + jnp.dot(h.astype(bf16), whh,
                         preferred_element_type=jnp.float32))      # (Bb, 4E)
        sig = jax.nn.sigmoid(pre[:, :E3])                          # i | f | o
        g_g = jnp.tanh(pre[:, E3:])
        i_g, f_g, o_g = sig[:, :E], sig[:, E:2 * E], sig[:, 2 * E:]
        c_new = f_g * c + i_g * g_g
        h_new = o_g * jnp.tanh(c_new)
        return h_new, c_new

    unroll = T if T <= 16 else 8
    zero = jnp.zeros((Bb, E), jnp.float32)

    # ---- forward direction (packed LSTM: zero output/carry at pad steps)
    def fw_step(t, carry):
        h, c = carry
        row = pl.multiple_of(t * Bb, Bb)
        h_new, c_new = cell(gf_sc, whh_f, row, h, c)
        v = valid_ref[pl.ds(row, Bb)]                              # (Bb, 1)
        h_m = h_new * v
        hf_sc[pl.ds(row, Bb), :] = h_m
        return h_m, c_new * v

    lax.fori_loop(0, T, fw_step, (zero, zero), unroll=unroll)

    # ---- backward direction: t = T-1 .. 0; zeroed carry at pad steps makes
    #      each row's recurrence start fresh at t = length-1.
    def bw_step(s, carry):
        h, c = carry
        t = T - 1 - s
        row = pl.multiple_of(t * Bb, Bb)
        h_new, c_new = cell(gb_sc, whh_b, row, h, c)
        v = valid_ref[pl.ds(row, Bb)]
        h_m = h_new * v
        hb_sc[pl.ds(row, Bb), :] = h_m
        return h_m, c_new * v

    lax.fori_loop(0, T, bw_step, (zero, zero), unroll=unroll)

    # ---- h2 = relu(linear_rnn([h_fw ; h_bw])) via split weights (no concat)
    h2 = jnp.maximum(
        jnp.dot(hf_sc[...].astype(bf16), wrf_ref[...].astype(bf16),
                preferred_element_type=jnp.float32)
        + jnp.dot(hb_sc[...].astype(bf16), wrb_ref[...].astype(bf16),
                  preferred_element_type=jnp.float32)
        + brnn_ref[...], 0.0)                                      # (TB, E)

    # ---- masked-mean span reduce: per-block mask matmul + exact divide
    num = jnp.dot(bigmask_ref[...].astype(bf16), h2.astype(bf16),
                  preferred_element_type=jnp.float32)              # (Bb*P, E)
    p = num / den_ref[...]

    # ---- folded projection linear_p + eps*linear_mini (kept f32)
    o_ref[...] = (jnp.dot(p, wproj_ref[...],
                          preferred_element_type=jnp.float32) + bproj_ref[...])


def encode_p_fused(x_blk, valid_blk, w_ih_fw, w_hh_fw, b_fw,
                   w_ih_bw, w_hh_bw, b_bw,
                   w_rnn_fw, w_rnn_bw, b_rnn,
                   bigmask, den, w_proj, b_proj, *, Bb):
    nblk, TB, E = x_blk.shape
    T = TB // Bb
    Bp = nblk * Bb
    BPp = bigmask.shape[0]            # Bp * P
    P = BPp // Bp
    Pblk = Bb * P                     # output rows per block

    flops = int(16 * T * Bp * E * E         # hoisted input-gate matmuls
                + 16 * T * Bp * E * E       # recurrent h @ W_hh (2 dirs)
                + 4 * T * Bp * E * E        # linear_rnn halves
                + 2 * BPp * TB * E          # masked-mean matmul
                + 2 * BPp * E * E)          # folded projection
    trans = int(10 * T * Bp * E)            # sigmoid/tanh
    bytes_acc = 4 * int(x_blk.size + valid_blk.size + bigmask.size + den.size
                        + w_ih_fw.size + w_hh_fw.size + b_fw.size
                        + w_ih_bw.size + w_hh_bw.size + b_bw.size
                        + w_rnn_fw.size + w_rnn_bw.size + b_rnn.size
                        + w_proj.size + b_proj.size + BPp * E)

    def _full(a):
        return pl.BlockSpec(a.shape, lambda *_: (0,) * a.ndim)

    return pl.pallas_call(
        functools.partial(_encode_p_kernel, Bb=Bb),
        out_shape=jax.ShapeDtypeStruct((BPp, E), jnp.float32),
        grid=(nblk,),
        in_specs=[
            pl.BlockSpec((None, TB, E), lambda i: (i, 0, 0)),   # x
            pl.BlockSpec((None, TB, 1), lambda i: (i, 0, 0)),   # valid
            _full(w_ih_fw), _full(w_hh_fw), _full(b_fw),
            _full(w_ih_bw), _full(w_hh_bw), _full(b_bw),
            _full(w_rnn_fw), _full(w_rnn_bw), _full(b_rnn),
            pl.BlockSpec((Pblk, TB), lambda i: (i, 0)),         # bigmask
            pl.BlockSpec((Pblk, 1), lambda i: (i, 0)),          # den
            _full(w_proj), _full(b_proj),
        ],
        out_specs=pl.BlockSpec((Pblk, E), lambda i: (i, 0)),
        scratch_shapes=[
            pltpu.VMEM((TB, 4 * E), jnp.float32),   # fw gate preactivations
            pltpu.VMEM((TB, 4 * E), jnp.float32),   # bw gate preactivations
            pltpu.VMEM((TB, E), jnp.float32),       # fw hidden outputs
            pltpu.VMEM((TB, E), jnp.float32),       # bw hidden outputs
        ],
        compiler_params=pltpu.CompilerParams(
            dimension_semantics=("parallel",),
            vmem_limit_bytes=_vmem_limit_bytes()),
        cost_estimate=pl.CostEstimate(flops=flops, transcendentals=trans,
                                      bytes_accessed=bytes_acc),
    )(x_blk, valid_blk, w_ih_fw, w_hh_fw, b_fw, w_ih_bw, w_hh_bw, b_bw,
      w_rnn_fw, w_rnn_bw, b_rnn, bigmask, den, w_proj, b_proj)


# ----------------------------------------------------------------------------
# Kernel 2: encode_k hot path: k_emb + feature @ Wf + bf, row-tiled grid.
# ----------------------------------------------------------------------------
def _encode_k_kernel(k_ref, f_ref, w_ref, b_ref, o_ref):
    o_ref[...] = (
        k_ref[...]
        + jnp.dot(f_ref[...].astype(jnp.bfloat16),
                  w_ref[...].astype(jnp.bfloat16),
                  preferred_element_type=jnp.float32)
        + b_ref[...])


def encode_k_fused(k_emb, feature, w_f_t, b_f, *, block_rows=1024):
    N, E = k_emb.shape
    F = feature.shape[1]
    N8 = pl.cdiv(N, 8) * 8
    if N8 != N:                         # minimal sublane pad only (<= 7 rows)
        k_emb = jnp.pad(k_emb, ((0, N8 - N), (0, 0)))
        feature = jnp.pad(feature, ((0, N8 - N), (0, 0)))
    tn = min(block_rows, N8)
    grid = (pl.cdiv(N8, tn),)           # ragged last block handled by Pallas

    flops = int(2 * N8 * F * E)
    bytes_acc = 4 * int(N8 * E + N8 * F + F * E + E + N8 * E)

    out = pl.pallas_call(
        _encode_k_kernel,
        out_shape=jax.ShapeDtypeStruct((N8, E), jnp.float32),
        grid=grid,
        in_specs=[pl.BlockSpec((tn, E), lambda i: (i, 0)),
                  pl.BlockSpec((tn, F), lambda i: (i, 0)),
                  pl.BlockSpec((F, E), lambda i: (0, 0)),
                  pl.BlockSpec((1, E), lambda i: (0, 0))],
        out_specs=pl.BlockSpec((tn, E), lambda i: (i, 0)),
        compiler_params=pltpu.CompilerParams(
            dimension_semantics=("parallel",),
            vmem_limit_bytes=_vmem_limit_bytes()),
        cost_estimate=pl.CostEstimate(flops=flops, transcendentals=0,
                                      bytes_accessed=bytes_acc),
    )(k_emb, feature, w_f_t, b_f)
    return out[:N] if N8 != N else out


# ----------------------------------------------------------------------------
# Full forward (glue in plain JAX: embedding gathers, layout prep, weight
# folding — all trace-time / O(small)).
# ----------------------------------------------------------------------------
def dual_forward(params, caption_id, phrase_span_mask, length, label, feature,
                 *, batch_block=8):
    vectors = params["vectors"]
    B, T = caption_id.shape
    E = vectors.shape[1]
    P = phrase_span_mask.shape[1]
    Bb = batch_block
    Bp = pl.cdiv(B, Bb) * Bb
    nblk = Bp // Bb

    # ---------------- encode_p ----------------
    caption = vectors[caption_id]                    # [B, T, E] gather (glue)
    cap_p = jnp.zeros((Bp, T, E), jnp.float32).at[:B].set(caption)
    # per-block time-major layout: x_blk[i, t*Bb + bl, :] = cap_p[i*Bb+bl, t, :]
    x_blk = cap_p.reshape(nblk, Bb, T, E).transpose(0, 2, 1, 3
                                                    ).reshape(nblk, T * Bb, E)

    valid_bt = (jnp.arange(T)[None, :] < length[:, None]).astype(jnp.float32)
    val_p = jnp.zeros((Bp, T), jnp.float32).at[:B].set(valid_bt)
    valid_blk = val_p.reshape(nblk, Bb, T).transpose(0, 2, 1
                                                     ).reshape(nblk, T * Bb, 1)

    # per-batch-block span mask (linear in B; replaces the old B^2 bigmask):
    #   bigmask[(blk*Bb+bl)*P + p, t*Bb + bl] = mask[blk*Bb+bl, p, t]
    mask = jnp.zeros((Bp, P, T), jnp.float32).at[:B].set(
        phrase_span_mask.astype(jnp.float32))
    onehot = jnp.eye(Bb, dtype=jnp.float32)
    bigmask = (mask.reshape(nblk, Bb, P, T)[:, :, :, :, None]
               * onehot[None, :, None, None, :]).reshape(Bp * P, T * Bb)
    den = jnp.maximum(mask.sum(-1), 1e-12).reshape(Bp * P, 1)

    # fold eps into the projection: linear_p(x) + eps*linear_mini(x)
    w_proj = params["w_p_t"] + _EPS * params["w_mini_t"]
    b_proj = params["b_p"] + _EPS * params["b_mini"]

    # split linear_rnn into fw/bw halves (avoids an in-kernel lane concat)
    w_rnn_fw = params["w_rnn_t"][:E]
    w_rnn_bw = params["w_rnn_t"][E:]

    p_emb = encode_p_fused(
        x_blk, valid_blk,
        params["w_ih_fw"], params["w_hh_fw"], params["b_fw"],
        params["w_ih_bw"], params["w_hh_bw"], params["b_bw"],
        w_rnn_fw, w_rnn_bw, params["b_rnn"],
        bigmask, den, w_proj, b_proj, Bb=Bb)[:B * P].reshape(B, P, E)

    # ---------------- encode_k ----------------
    k_emb = vectors[label]                            # [B, K, E] gather (glue)
    K = k_emb.shape[1]
    F = feature.shape[-1]
    k_out = encode_k_fused(
        k_emb.reshape(B * K, E),
        feature.reshape(B * K, F),                    # v_dropout identity/eval
        params["w_f_t"], params["b_f"]).reshape(B, K, E)

    return p_emb, k_out


# ----------------------------------------------------------------------------
# Deterministic parameter init (shapes from Dual.__init__).  LSTM weights are
# stored as fused slabs pre-transposed to [in, 4*out]; gate order [i|f|o|g];
# bias is the folded b_ih + b_hh.
# ----------------------------------------------------------------------------
def init_params(key, vocab, E, F):
    ks = jax.random.split(key, 12)
    s = 0.1
    p = {}
    p["vectors"] = jax.random.normal(ks[0], (vocab, E), jnp.float32) * s
    p["w_ih_fw"] = jax.random.normal(ks[1], (E, 4 * E), jnp.float32) * s
    p["w_hh_fw"] = jax.random.normal(ks[2], (E, 4 * E), jnp.float32) * s
    p["b_fw"] = jax.random.normal(ks[3], (1, 4 * E), jnp.float32) * s
    p["w_ih_bw"] = jax.random.normal(ks[4], (E, 4 * E), jnp.float32) * s
    p["w_hh_bw"] = jax.random.normal(ks[5], (E, 4 * E), jnp.float32) * s
    p["b_bw"] = jax.random.normal(ks[6], (1, 4 * E), jnp.float32) * s
    # linear_rnn: emb_dim*2 -> emb_dim (stored transposed [2E, E])
    p["w_rnn_t"] = jax.random.normal(ks[7], (2 * E, E), jnp.float32) * s
    p["b_rnn"] = jax.random.normal(ks[8], (1, E), jnp.float32) * s
    # linear_p: weight overridden to identity in __init__
    p["w_p_t"] = jnp.eye(E, dtype=jnp.float32)
    p["b_p"] = jax.random.normal(ks[9], (1, E), jnp.float32) * s
    # linear_mini: emb_dim -> emb_dim
    p["w_mini_t"] = jax.random.normal(ks[10], (E, E), jnp.float32) * s
    p["b_mini"] = jax.random.normal(ks[11], (1, E), jnp.float32) * s
    # linear_f: weight overridden to zeros in __init__
    p["w_f_t"] = jnp.zeros((F, E), dtype=jnp.float32)
    p["b_f"] = jnp.full((1, E), 0.01, dtype=jnp.float32)
    return p


if __name__ == "__main__":
    B, T, E, F, V, P, K = 2, 8, 32, 64, 50, 3, 4

    key = jax.random.PRNGKey(0)
    kp, k1, k2, k3 = jax.random.split(key, 4)

    params = init_params(kp, V, E, F)

    caption_id = jax.random.randint(k1, (B, T), 0, V, dtype=jnp.int32)
    length = jnp.array([8, 5], dtype=jnp.int32)

    # Phrase span mask [B, P, T]: each phrase covers 2 consecutive valid tokens.
    tpos = jnp.arange(T)[None, None, :]
    starts = jnp.array([[0, 2, 4], [0, 1, 3]], dtype=jnp.int32)[:, :, None]
    phrase_span_mask = (
        (tpos >= starts) & (tpos < starts + 2) & (tpos < length[:, None, None])
    ).astype(jnp.float32)

    label = jax.random.randint(k2, (B, K), 0, V, dtype=jnp.int32)
    feature = jax.random.normal(k3, (B, K, F), jnp.float32)

    fwd = jax.jit(functools.partial(dual_forward, params))
    p_emb, k_emb = fwd(caption_id, phrase_span_mask, length, label, feature)
    jax.block_until_ready((p_emb, k_emb))

    assert p_emb.shape == (B, P, E) and k_emb.shape == (B, K, E)
    assert bool(jnp.all(jnp.isfinite(p_emb))) and bool(jnp.all(jnp.isfinite(k_emb)))
    print("KERNEL_OK")
</pallas_src>

<mosaic_0001>
module attributes {stable_mosaic.version = 11 : i64} {
  func.func @_encode_k_kernel(%arg0: i32, %arg1: memref<8x32xf32, #tpu.memory_space<vmem>>, %arg2: memref<8x64xf32, #tpu.memory_space<vmem>>, %arg3: memref<64x32xf32, #tpu.memory_space<vmem>>, %arg4: memref<1x32xf32, #tpu.memory_space<vmem>>, %arg5: memref<8x32xf32, #tpu.memory_space<vmem>>) attributes {dimension_semantics = [#tpu.dimension_semantics<parallel>], iteration_bounds = array<i64: 1>, scalar_prefetch = 0 : i64, scratch_operands = 0 : i64, tpu.core_type = #tpu.core_type<tc>, window_params = [{transform_indices = @transform_0, window_bounds = array<i64: 8, 32>}, {transform_indices = @transform_1, window_bounds = array<i64: 8, 64>}, {pipeline_mode = #tpu.pipeline_mode<synchronous>, transform_indices = @transform_2, window_bounds = array<i64: 64, 32>}, {pipeline_mode = #tpu.pipeline_mode<synchronous>, transform_indices = @transform_3, window_bounds = array<i64: 1, 32>}, {transform_indices = @transform_4, window_bounds = array<i64: 8, 32>}]} {
    %c0 = arith.constant 0 : index
    %c0_0 = arith.constant 0 : index
    %0 = vector.load %arg1[%c0, %c0_0] : memref<8x32xf32, #tpu.memory_space<vmem>>, vector<8x32xf32>
    %c0_1 = arith.constant 0 : index
    %c0_2 = arith.constant 0 : index
    %1 = vector.load %arg2[%c0_1, %c0_2] : memref<8x64xf32, #tpu.memory_space<vmem>>, vector<8x64xf32>
    %2 = arith.truncf %1 : vector<8x64xf32> to vector<8x64xbf16>
    %c0_3 = arith.constant 0 : index
    %c0_4 = arith.constant 0 : index
    %3 = vector.load %arg3[%c0_3, %c0_4] : memref<64x32xf32, #tpu.memory_space<vmem>>, vector<64x32xf32>
    %4 = arith.truncf %3 : vector<64x32xf32> to vector<64x32xbf16>
    %cst = arith.constant dense<0.000000e+00> : vector<8x32xf32>
    %5 = tpu.matmul %2, %4, %cst {dimension_numbers = #tpu.dot_dimension_numbers<[1], [0], [0], [1], [0, 0, 1, 1], [], []>} : vector<8x64xbf16>, vector<64x32xbf16>, vector<8x32xf32> -> vector<8x32xf32>
    %6 = arith.addf %0, %5 : vector<8x32xf32>
    %c0_5 = arith.constant 0 : index
    %c0_6 = arith.constant 0 : index
    %7 = vector.load %arg4[%c0_5, %c0_6] : memref<1x32xf32, #tpu.memory_space<vmem>>, vector<1x32xf32>
    %8 = vector.broadcast %7 : vector<1x32xf32> to vector<8x32xf32>
    %9 = arith.addf %6, %8 : vector<8x32xf32>
    %c0_7 = arith.constant 0 : index
    %c0_8 = arith.constant 0 : index
    %10 = vector.load %arg5[%c0_7, %c0_8] : memref<8x32xf32, #tpu.memory_space<vmem>>, vector<8x32xf32>
    tpu.vector_store %arg5[%c0_7, %c0_8], %9 {strides = array<i32>} : memref<8x32xf32, #tpu.memory_space<vmem>>, vector<8x32xf32>,
    return
  }
  func.func @transform_0(%arg0: i32) -> (i32, i32) {
    %c0_i32 = arith.constant 0 : i32
    %c0_i32_0 = arith.constant 0 : i32
    return %arg0, %c0_i32 : i32, i32
  }
  func.func @transform_1(%arg0: i32) -> (i32, i32) {
    %c0_i32 = arith.constant 0 : i32
    %c0_i32_0 = arith.constant 0 : i32
    return %arg0, %c0_i32 : i32, i32
  }
  func.func @transform_2(%arg0: i32) -> (i32, i32) {
    %c0_i32 = arith.constant 0 : i32
    %c0_i32_0 = arith.constant 0 : i32
    %c0_i32_1 = arith.constant 0 : i32
    return %c0_i32, %c0_i32_0 : i32, i32
  }
  func.func @transform_3(%arg0: i32) -> (i32, i32) {
    %c0_i32 = arith.constant 0 : i32
    %c0_i32_0 = arith.constant 0 : i32
    %c0_i32_1 = arith.constant 0 : i32
    return %c0_i32, %c0_i32_0 : i32, i32
  }
  func.func @transform_4(%arg0: i32) -> (i32, i32) {
    %c0_i32 = arith.constant 0 : i32
    %c0_i32_0 = arith.constant 0 : i32
    return %arg0, %c0_i32 : i32, i32
  }
}

module attributes {stable_mosaic.version = 11 : i64} {
  func.func @_encode_p_kernel(%arg0: i32, %arg1: memref<1x64x32xf32, #tpu.memory_space<vmem>>, %arg2: memref<1x64x1xf32, #tpu.memory_space<vmem>>, %arg3: memref<32x128xf32, #tpu.memory_space<vmem>>, %arg4: memref<32x128xf32, #tpu.memory_space<vmem>>, %arg5: memref<1x128xf32, #tpu.memory_space<vmem>>, %arg6: memref<32x128xf32, #tpu.memory_space<vmem>>, %arg7: memref<32x128xf32, #tpu.memory_space<vmem>>, %arg8: memref<1x128xf32, #tpu.memory_space<vmem>>, %arg9: memref<32x32xf32, #tpu.memory_space<vmem>>, %arg10: memref<32x32xf32, #tpu.memory_space<vmem>>, %arg11: memref<1x32xf32, #tpu.memory_space<vmem>>, %arg12: memref<24x64xf32, #tpu.memory_space<vmem>>, %arg13: memref<24x1xf32, #tpu.memory_space<vmem>>, %arg14: memref<32x32xf32, #tpu.memory_space<vmem>>, %arg15: memref<1x32xf32, #tpu.memory_space<vmem>>, %arg16: memref<24x32xf32, #tpu.memory_space<vmem>>, %arg17: memref<64x128xf32, #tpu.memory_space<vmem>>, %arg18: memref<64x128xf32, #tpu.memory_space<vmem>>, %arg19: memref<64x32xf32, #tpu.memory_space<vmem>>, %arg20: memref<64x32xf32, #tpu.memory_space<vmem>>) attributes {dimension_semantics = [#tpu.dimension_semantics<parallel>], iteration_bounds = array<i64: 1>, scalar_prefetch = 0 : i64, scratch_operands = 4 : i64, tpu.core_type = #tpu.core_type<tc>, window_params = [{transform_indices = @transform_0, window_bounds = array<i64: 1, 64, 32>}, {transform_indices = @transform_1, window_bounds = array<i64: 1, 64, 1>}, {pipeline_mode = #tpu.pipeline_mode<synchronous>, transform_indices = @transform_2, window_bounds = array<i64: 32, 128>}, {pipeline_mode = #tpu.pipeline_mode<synchronous>, transform_indices = @transform_3, window_bounds = array<i64: 32, 128>}, {pipeline_mode = #tpu.pipeline_mode<synchronous>, transform_indices = @transform_4, window_bounds = array<i64: 1, 128>}, {pipeline_mode = #tpu.pipeline_mode<synchronous>, transform_indices = @transform_5, window_bounds = array<i64: 32, 128>}, {pipeline_mode = #tpu.pipeline_mode<synchronous>, transform_indices = @transform_6, window_bounds = array<i64: 32, 128>}, {pipeline_mode = #tpu.pipeline_mode<synchronous>, transform_indices = @transform_7, window_bounds = array<i64: 1, 128>}, {pipeline_mode = #tpu.pipeline_mode<synchronous>, transform_indices = @transform_8, window_bounds = array<i64: 32, 32>}, {pipeline_mode = #tpu.pipeline_mode<synchronous>, transform_indices = @transform_9, window_bounds = array<i64: 32, 32>}, {pipeline_mode = #tpu.pipeline_mode<synchronous>, transform_indices = @transform_10, window_bounds = array<i64: 1, 32>}, {transform_indices = @transform_11, window_bounds = array<i64: 24, 64>}, {transform_indices = @transform_12, window_bounds = array<i64: 24, 1>}, {pipeline_mode = #tpu.pipeline_mode<synchronous>, transform_indices = @transform_13, window_bounds = array<i64: 32, 32>}, {pipeline_mode = #tpu.pipeline_mode<synchronous>, transform_indices = @transform_14, window_bounds = array<i64: 1, 32>}, {transform_indices = @transform_15, window_bounds = array<i64: 24, 32>}]} {
    %c0 = arith.constant 0 : index
    %c0_0 = arith.constant 0 : index
    %c0_1 = arith.constant 0 : index
    %0 = vector.load %arg1[%c0, %c0_0, %c0_1] : memref<1x64x32xf32, #tpu.memory_space<vmem>>, vector<1x64x32xf32>
    %1 = vector.shape_cast %0 : vector<1x64x32xf32> to vector<64x32xf32>
    %2 = arith.truncf %1 : vector<64x32xf32> to vector<64x32xbf16>
    %c0_2 = arith.constant 0 : index
    %c0_3 = arith.constant 0 : index
    %3 = vector.load %arg3[%c0_2, %c0_3] : memref<32x128xf32, #tpu.memory_space<vmem>>, vector<32x128xf32>
    %4 = arith.truncf %3 : vector<32x128xf32> to vector<32x128xbf16>
    %cst = arith.constant dense<0.000000e+00> : vector<64x128xf32>
    %5 = tpu.matmul %2, %4, %cst {dimension_numbers = #tpu.dot_dimension_numbers<[1], [0], [0], [1], [0, 0, 1, 1], [], []>} : vector<64x32xbf16>, vector<32x128xbf16>, vector<64x128xf32> -> vector<64x128xf32>
    %c0_4 = arith.constant 0 : index
    %c0_5 = arith.constant 0 : index
    %6 = vector.load %arg5[%c0_4, %c0_5] : memref<1x128xf32, #tpu.memory_space<vmem>>, vector<1x128xf32>
    %7 = vector.broadcast %6 : vector<1x128xf32> to vector<64x128xf32>
    %8 = arith.addf %5, %7 : vector<64x128xf32>
    %c0_6 = arith.constant 0 : index
    %c0_7 = arith.constant 0 : index
    %9 = vector.load %arg17[%c0_6, %c0_7] : memref<64x128xf32, #tpu.memory_space<vmem>>, vector<64x128xf32>
    tpu.vector_store %arg17[%c0_6, %c0_7], %8 {strides = array<i32>} : memref<64x128xf32, #tpu.memory_space<vmem>>, vector<64x128xf32>,
    %c0_8 = arith.constant 0 : index
    %c0_9 = arith.constant 0 : index
    %10 = vector.load %arg6[%c0_8, %c0_9] : memref<32x128xf32, #tpu.memory_space<vmem>>, vector<32x128xf32>
    %11 = arith.truncf %10 : vector<32x128xf32> to vector<32x128xbf16>
    %cst_10 = arith.constant dense<0.000000e+00> : vector<64x128xf32>
    %12 = tpu.matmul %2, %11, %cst_10 {dimension_numbers = #tpu.dot_dimension_numbers<[1], [0], [0], [1], [0, 0, 1, 1], [], []>} : vector<64x32xbf16>, vector<32x128xbf16>, vector<64x128xf32> -> vector<64x128xf32>
    %c0_11 = arith.constant 0 : index
    %c0_12 = arith.constant 0 : index
    %13 = vector.load %arg8[%c0_11, %c0_12] : memref<1x128xf32, #tpu.memory_space<vmem>>, vector<1x128xf32>
    %14 = vector.broadcast %13 : vector<1x128xf32> to vector<64x128xf32>
    %15 = arith.addf %12, %14 : vector<64x128xf32>
    %c0_13 = arith.constant 0 : index
    %c0_14 = arith.constant 0 : index
    %16 = vector.load %arg18[%c0_13, %c0_14] : memref<64x128xf32, #tpu.memory_space<vmem>>, vector<64x128xf32>
    tpu.vector_store %arg18[%c0_13, %c0_14], %15 {strides = array<i32>} : memref<64x128xf32, #tpu.memory_space<vmem>>, vector<64x128xf32>,
    %c0_15 = arith.constant 0 : index
    %c0_16 = arith.constant 0 : index
    %17 = vector.load %arg4[%c0_15, %c0_16] : memref<32x128xf32, #tpu.memory_space<vmem>>, vector<32x128xf32>
    %18 = arith.truncf %17 : vector<32x128xf32> to vector<32x128xbf16>
    %c0_17 = arith.constant 0 : index
    %c0_18 = arith.constant 0 : index
    %19 = vector.load %arg7[%c0_17, %c0_18] : memref<32x128xf32, #tpu.memory_space<vmem>>, vector<32x128xf32>
    %20 = arith.truncf %19 : vector<32x128xf32> to vector<32x128xbf16>
    %cst_19 = arith.constant 0.000000e+00 : f32
    %21 = vector.broadcast %cst_19 : f32 to vector<8x32xf32>
    %c0_i32 = arith.constant 0 : i32
    %c8_i32 = arith.constant 8 : i32
    %22 = arith.muli %c0_i32, %c8_i32 : i32
    %23 = tpu.assume_multiple %22, 8 : i32
    %24 = arith.index_cast %23 : i32 to index
    %c0_20 = arith.constant 0 : index
    %25 = vector.load %arg17[%24, %c0_20] : memref<64x128xf32, #tpu.memory_space<vmem>>, vector<8x128xf32>
    %26 = arith.truncf %21 : vector<8x32xf32> to vector<8x32xbf16>
    %cst_21 = arith.constant dense<0.000000e+00> : vector<8x128xf32>
    %27 = tpu.matmul %26, %18, %cst_21 {dimension_numbers = #tpu.dot_dimension_numbers<[1], [0], [0], [1], [0, 0, 1, 1], [], []>} : vector<8x32xbf16>, vector<32x128xbf16>, vector<8x128xf32> -> vector<8x128xf32>
    %28 = arith.addf %25, %27 : vector<8x128xf32>
    %29 = vector.extract_strided_slice %28 {offsets = [0, 0], sizes = [8, 96], strides = [1, 1]} : vector<8x128xf32> to vector<8x96xf32>
    %30 = arith.negf %29 : vector<8x96xf32>
    %31 = math.exp %30 : vector<8x96xf32>
    %cst_22 = arith.constant 1.000000e+00 : f32
    %32 = vector.broadcast %cst_22 : f32 to vector<8x96xf32>
    %33 = arith.addf %32, %31 : vector<8x96xf32>
    %34 = arith.divf %32, %33 : vector<8x96xf32>
    %35 = vector.extract_strided_slice %28 {offsets = [0, 96], sizes = [8, 32], strides = [1, 1]} : vector<8x128xf32> to vector<8x32xf32>
    %36 = math.tanh %35 : vector<8x32xf32>
    %37 = vector.extract_strided_slice %34 {offsets = [0, 0], sizes = [8, 32], strides = [1, 1]} : vector<8x96xf32> to vector<8x32xf32>
    %38 = vector.extract_strided_slice %34 {offsets = [0, 32], sizes = [8, 32], strides = [1, 1]} : vector<8x96xf32> to vector<8x32xf32>
    %39 = vector.extract_strided_slice %34 {offsets = [0, 64], sizes = [8, 32], strides = [1, 1]} : vector<8x96xf32> to vector<8x32xf32>
    %40 = arith.mulf %38, %21 : vector<8x32xf32>
    %41 = arith.mulf %37, %36 : vector<8x32xf32>
    %42 = arith.addf %40, %41 : vector<8x32xf32>
    %43 = math.tanh %42 : vector<8x32xf32>
    %44 = arith.mulf %39, %43 : vector<8x32xf32>
    %c0_23 = arith.constant 0 : index
    %45 = arith.index_cast %23 : i32 to index
    %c0_24 = arith.constant 0 : index
    %46 = vector.load %arg2[%c0_23, %45, %c0_24] : memref<1x64x1xf32, #tpu.memory_space<vmem>>, vector<1x8x1xf32>
    %47 = vector.shape_cast %46 : vector<1x8x1xf32> to vector<8x1xf32>
    %48 = vector.broadcast %47 : vector<8x1xf32> to vector<8x32xf32>
    %49 = arith.mulf %44, %48 : vector<8x32xf32>
    %50 = arith.index_cast %23 : i32 to index
    %c0_25 = arith.constant 0 : index
    %51 = vector.load %arg19[%50, %c0_25] : memref<64x32xf32, #tpu.memory_space<vmem>>, vector<8x32xf32>
    tpu.vector_store %arg19[%50, %c0_25], %49 {strides = array<i32>} : memref<64x32xf32, #tpu.memory_space<vmem>>, vector<8x32xf32>,
    %52 = vector.broadcast %47 : vector<8x1xf32> to vector<8x32xf32>
    %53 = arith.mulf %42, %52 : vector<8x32xf32>
    %c1_i32 = arith.constant 1 : i32
    %c8_i32_26 = arith.constant 8 : i32
    %54 = arith.muli %c1_i32, %c8_i32_26 : i32
    %55 = tpu.assume_multiple %54, 8 : i32
    %56 = arith.index_cast %55 : i32 to index
    %c0_27 = arith.constant 0 : index
    %57 = vector.load %arg17[%56, %c0_27] : memref<64x128xf32, #tpu.memory_space<vmem>>, vector<8x128xf32>
    %58 = arith.truncf %49 : vector<8x32xf32> to vector<8x32xbf16>
    %cst_28 = arith.constant dense<0.000000e+00> : vector<8x128xf32>
    %59 = tpu.matmul %58, %18, %cst_28 {dimension_numbers = #tpu.dot_dimension_numbers<[1], [0], [0], [1], [0, 0, 1, 1], [], []>} : vector<8x32xbf16>, vector<32x128xbf16>, vector<8x128xf32> -> vector<8x128xf32>
    %60 = arith.addf %57, %59 : vector<8x128xf32>
    %61 = vector.extract_strided_slice %60 {offsets = [0, 0], sizes = [8, 96], strides = [1, 1]} : vector<8x128xf32> to vector<8x96xf32>
    %62 = arith.negf %61 : vector<8x96xf32>
    %63 = math.exp %62 : vector<8x96xf32>
    %cst_29 = arith.constant 1.000000e+00 : f32
    %64 = vector.broadcast %cst_29 : f32 to vector<8x96xf32>
    %65 = arith.addf %64, %63 : vector<8x96xf32>
    %66 = arith.divf %64, %65 : vector<8x96xf32>
    %67 = vector.extract_strided_slice %60 {offsets = [0, 96], sizes = [8, 32], strides = [1, 1]} : vector<8x128xf32> to vector<8x32xf32>
    %68 = math.tanh %67 : vector<8x32xf32>
    %69 = vector.extract_strided_slice %66 {offsets = [0, 0], sizes = [8, 32], strides = [1, 1]} : vector<8x96xf32> to vector<8x32xf32>
    %70 = vector.extract_strided_slice %66 {offsets = [0, 32], sizes = [8, 32], strides = [1, 1]} : vector<8x96xf32> to vector<8x32xf32>
    %71 = vector.extract_strided_slice %66 {offsets = [0, 64], sizes = [8, 32], strides = [1, 1]} : vector<8x96xf32> to vector<8x32xf32>
    %72 = arith.mulf %70, %53 : vector<8x32xf32>
    %73 = arith.mulf %69, %68 : vector<8x32xf32>
    %74 = arith.addf %72, %73 : vector<8x32xf32>
    %75 = math.tanh %74 : vector<8x32xf32>
    %76 = arith.mulf %71, %75 : vector<8x32xf32>
    %c0_30 = arith.constant 0 : index
    %77 = arith.index_cast %55 : i32 to index
    %c0_31 = arith.constant 0 : index
    %78 = vector.load %arg2[%c0_30, %77, %c0_31] : memref<1x64x1xf32, #tpu.memory_space<vmem>>, vector<1x8x1xf32>
    %79 = vector.shape_cast %78 : vector<1x8x1xf32> to vector<8x1xf32>
    %80 = vector.broadcast %79 : vector<8x1xf32> to vector<8x32xf32>
    %81 = arith.mulf %76, %80 : vector<8x32xf32>
    %82 = arith.index_cast %55 : i32 to index
    %c0_32 = arith.constant 0 : index
    %83 = vector.load %arg19[%82, %c0_32] : memref<64x32xf32, #tpu.memory_space<vmem>>, vector<8x32xf32>
    tpu.vector_store %arg19[%82, %c0_32], %81 {strides = array<i32>} : memref<64x32xf32, #tpu.memory_space<vmem>>, vector<8x32xf32>,
    %84 = vector.broadcast %79 : vector<8x1xf32> to vector<8x32xf32>
    %85 = arith.mulf %74, %84 : vector<8x32xf32>
    %c2_i32 = arith.constant 2 : i32
    %c8_i32_33 = arith.constant 8 : i32
    %86 = arith.muli %c2_i32, %c8_i32_33 : i32
    %87 = tpu.assume_multiple %86, 8 : i32
    %88 = arith.index_cast %87 : i32 to index
    %c0_34 = arith.constant 0 : index
    %89 = vector.load %arg17[%88, %c0_34] : memref<64x128xf32, #tpu.memory_space<vmem>>, vector<8x128xf32>
    %90 = arith.truncf %81 : vector<8x32xf32> to vector<8x32xbf16>
    %cst_35 = arith.constant dense<0.000000e+00> : vector<8x128xf32>
    %91 = tpu.matmul %90, %18, %cst_35 {dimension_numbers = #tpu.dot_dimension_numbers<[1], [0], [0], [1], [0, 0, 1, 1], [], []>} : vector<8x32xbf16>, vector<32x128xbf16>, vector<8x128xf32> -> vector<8x128xf32>
    %92 = arith.addf %89, %91 : vector<8x128xf32>
    %93 = vector.extract_strided_slice %92 {offsets = [0, 0], sizes = [8, 96], strides = [1, 1]} : vector<8x128xf32> to vector<8x96xf32>
    %94 = arith.negf %93 : vector<8x96xf32>
    %95 = math.exp %94 : vector<8x96xf32>
    %cst_36 = arith.constant 1.000000e+00 : f32
    %96 = vector.broadcast %cst_36 : f32 to vector<8x96xf32>
    %97 = arith.addf %96, %95 : vector<8x96xf32>
    %98 = arith.divf %96, %97 : vector<8x96xf32>
    %99 = vector.extract_strided_slice %92 {offsets = [0, 96], sizes = [8, 32], strides = [1, 1]} : vector<8x128xf32> to vector<8x32xf32>
    %100 = math.tanh %99 : vector<8x32xf32>
    %101 = vector.extract_strided_slice %98 {offsets = [0, 0], sizes = [8, 32], strides = [1, 1]} : vector<8x96xf32> to vector<8x32xf32>
    %102 = vector.extract_strided_slice %98 {offsets = [0, 32], sizes = [8, 32], strides = [1, 1]} : vector<8x96xf32> to vector<8x32xf32>
    %103 = vector.extract_strided_slice %98 {offsets = [0, 64], sizes = [8, 32], strides = [1, 1]} : vector<8x96xf32> to vector<8x32xf32>
    %104 = arith.mulf %102, %85 : vector<8x32xf32>
    %105 = arith.mulf %101, %100 : vector<8x32xf32>
    %106 = arith.addf %104, %105 : vector<8x32xf32>
    %107 = math.tanh %106 : vector<8x32xf32>
    %108 = arith.mulf %103, %107 : vector<8x32xf32>
    %c0_37 = arith.constant 0 : index
    %109 = arith.index_cast %87 : i32 to index
    %c0_38 = arith.constant 0 : index
    %110 = vector.load %arg2[%c0_37, %109, %c0_38] : memref<1x64x1xf32, #tpu.memory_space<vmem>>, vector<1x8x1xf32>
    %111 = vector.shape_cast %110 : vector<1x8x1xf32> to vector<8x1xf32>
    %112 = vector.broadcast %111 : vector<8x1xf32> to vector<8x32xf32>
    %113 = arith.mulf %108, %112 : vector<8x32xf32>
    %114 = arith.index_cast %87 : i32 to index
    %c0_39 = arith.constant 0 : index
    %115 = vector.load %arg19[%114, %c0_39] : memref<64x32xf32, #tpu.memory_space<vmem>>, vector<8x32xf32>
    tpu.vector_store %arg19[%114, %c0_39], %113 {strides = array<i32>} : memref<64x32xf32, #tpu.memory_space<vmem>>, vector<8x32xf32>,
    %116 = vector.broadcast %111 : vector<8x1xf32> to vector<8x32xf32>
    %117 = arith.mulf %106, %116 : vector<8x32xf32>
    %c3_i32 = arith.constant 3 : i32
    %c8_i32_40 = arith.constant 8 : i32
    %118 = arith.muli %c3_i32, %c8_i32_40 : i32
    %119 = tpu.assume_multiple %118, 8 : i32
    %120 = arith.index_cast %119 : i32 to index
    %c0_41 = arith.constant 0 : index
    %121 = vector.load %arg17[%120, %c0_41] : memref<64x128xf32, #tpu.memory_space<vmem>>, vector<8x128xf32>
    %122 = arith.truncf %113 : vector<8x32xf32> to vector<8x32xbf16>
    %cst_42 = arith.constant dense<0.000000e+00> : vector<8x128xf32>
    %123 = tpu.matmul %122, %18, %cst_42 {dimension_numbers = #tpu.dot_dimension_numbers<[1], [0], [0], [1], [0, 0, 1, 1], [], []>} : vector<8x32xbf16>, vector<32x128xbf16>, vector<8x128xf32> -> vector<8x128xf32>
    %124 = arith.addf %121, %123 : vector<8x128xf32>
    %125 = vector.extract_strided_slice %124 {offsets = [0, 0], sizes = [8, 96], strides = [1, 1]} : vector<8x128xf32> to vector<8x96xf32>
    %126 = arith.negf %125 : vector<8x96xf32>
    %127 = math.exp %126 : vector<8x96xf32>
    %cst_43 = arith.constant 1.000000e+00 : f32
    %128 = vector.broadcast %cst_43 : f32 to vector<8x96xf32>
    %129 = arith.addf %128, %127 : vector<8x96xf32>
    %130 = arith.divf %128, %129 : vector<8x96xf32>
    %131 = vector.extract_strided_slice %124 {offsets = [0, 96], sizes = [8, 32], strides = [1, 1]} : vector<8x128xf32> to vector<8x32xf32>
    %132 = math.tanh %131 : vector<8x32xf32>
    %133 = vector.extract_strided_slice %130 {offsets = [0, 0], sizes = [8, 32], strides = [1, 1]} : vector<8x96xf32> to vector<8x32xf32>
    %134 = vector.extract_strided_slice %130 {offsets = [0, 32], sizes = [8, 32], strides = [1, 1]} : vector<8x96xf32> to vector<8x32xf32>
    %135 = vector.extract_strided_slice %130 {offsets = [0, 64], sizes = [8, 32], strides = [1, 1]} : vector<8x96xf32> to vector<8x32xf32>
    %136 = arith.mulf %134, %117 : vector<8x32xf32>
    %137 = arith.mulf %133, %132 : vector<8x32xf32>
    %138 = arith.addf %136, %137 : vector<8x32xf32>
    %139 = math.tanh %138 : vector<8x32xf32>
    %140 = arith.mulf %135, %139 : vector<8x32xf32>
    %c0_44 = arith.constant 0 : index
    %141 = arith.index_cast %119 : i32 to index
    %c0_45 = arith.constant 0 : index
    %142 = vector.load %arg2[%c0_44, %141, %c0_45] : memref<1x64x1xf32, #tpu.memory_space<vmem>>, vector<1x8x1xf32>
    %143 = vector.shape_cast %142 : vector<1x8x1xf32> to vector<8x1xf32>
    %144 = vector.broadcast %143 : vector<8x1xf32> to vector<8x32xf32>
    %145 = arith.mulf %140, %144 : vector<8x32xf32>
    %146 = arith.index_cast %119 : i32 to index
    %c0_46 = arith.constant 0 : index
    %147 = vector.load %arg19[%146, %c0_46] : memref<64x32xf32, #tpu.memory_space<vmem>>, vector<8x32xf32>
    tpu.vector_store %arg19[%146, %c0_46], %145 {strides = array<i32>} : memref<64x32xf32, #tpu.memory_space<vmem>>, vector<8x32xf32>,
    %148 = vector.broadcast %143 : vector<8x1xf32> to vector<8x32xf32>
    %149 = arith.mulf %138, %148 : vector<8x32xf32>
    %c4_i32 = arith.constant 4 : i32
    %c8_i32_47 = arith.constant 8 : i32
    %150 = arith.muli %c4_i32, %c8_i32_47 : i32
    %151 = tpu.assume_multiple %150, 8 : i32
    %152 = arith.index_cast %151 : i32 to index
    %c0_48 = arith.constant 0 : index
    %153 = vector.load %arg17[%152, %c0_48] : memref<64x128xf32, #tpu.memory_space<vmem>>, vector<8x128xf32>
    %154 = arith.truncf %145 : vector<8x32xf32> to vector<8x32xbf16>
    %cst_49 = arith.constant dense<0.000000e+00> : vector<8x128xf32>
    %155 = tpu.matmul %154, %18, %cst_49 {dimension_numbers = #tpu.dot_dimension_numbers<[1], [0], [0], [1], [0, 0, 1, 1], [], []>} : vector<8x32xbf16>, vector<32x128xbf16>, vector<8x128xf32> -> vector<8x128xf32>
    %156 = arith.addf %153, %155 : vector<8x128xf32>
    %157 = vector.extract_strided_slice %156 {offsets = [0, 0], sizes = [8, 96], strides = [1, 1]} : vector<8x128xf32> to vector<8x96xf32>
    %158 = arith.negf %157 : vector<8x96xf32>
    %159 = math.exp %158 : vector<8x96xf32>
    %cst_50 = arith.constant 1.000000e+00 : f32
    %160 = vector.broadcast %cst_50 : f32 to vector<8x96xf32>
    %161 = arith.addf %160, %159 : vector<8x96xf32>
    %162 = arith.divf %160, %161 : vector<8x96xf32>
    %163 = vector.extract_strided_slice %156 {offsets = [0, 96], sizes = [8, 32], strides = [1, 1]} : vector<8x128xf32> to vector<8x32xf32>
    %164 = math.tanh %163 : vector<8x32xf32>
    %165 = vector.extract_strided_slice %162 {offsets = [0, 0], sizes = [8, 32], strides = [1, 1]} : vector<8x96xf32> to vector<8x32xf32>
    %166 = vector.extract_strided_slice %162 {offsets = [0, 32], sizes = [8, 32], strides = [1, 1]} : vector<8x96xf32> to vector<8x32xf32>
    %167 = vector.extract_strided_slice %162 {offsets = [0, 64], sizes = [8, 32], strides = [1, 1]} : vector<8x96xf32> to vector<8x32xf32>
    %168 = arith.mulf %166, %149 : vector<8x32xf32>
    %169 = arith.mulf %165, %164 : vector<8x32xf32>
    %170 = arith.addf %168, %169 : vector<8x32xf32>
    %171 = math.tanh %170 : vector<8x32xf32>
    %172 = arith.mulf %167, %171 : vector<8x32xf32>
    %c0_51 = arith.constant 0 : index
    %173 = arith.index_cast %151 : i32 to index
    %c0_52 = arith.constant 0 : index
    %174 = vector.load %arg2[%c0_51, %173, %c0_52] : memref<1x64x1xf32, #tpu.memory_space<vmem>>, vector<1x8x1xf32>
    %175 = vector.shape_cast %174 : vector<1x8x1xf32> to vector<8x1xf32>
    %176 = vector.broadcast %175 : vector<8x1xf32> to vector<8x32xf32>
    %177 = arith.mulf %172, %176 : vector<8x32xf32>
    %178 = arith.index_cast %151 : i32 to index
    %c0_53 = arith.constant 0 : index
    %179 = vector.load %arg19[%178, %c0_53] : memref<64x32xf32, #tpu.memory_space<vmem>>, vector<8x32xf32>
    tpu.vector_store %arg19[%178, %c0_53], %177 {strides = array<i32>} : memref<64x32xf32, #tpu.memory_space<vmem>>, vector<8x32xf32>,
    %180 = vector.broadcast %175 : vector<8x1xf32> to vector<8x32xf32>
    %181 = arith.mulf %170, %180 : vector<8x32xf32>
    %c5_i32 = arith.constant 5 : i32
    %c8_i32_54 = arith.constant 8 : i32
    %182 = arith.muli %c5_i32, %c8_i32_54 : i32
    %183 = tpu.assume_multiple %182, 8 : i32
    %184 = arith.index_cast %183 : i32 to index
    %c0_55 = arith.constant 0 : index
    %185 = vector.load %arg17[%184, %c0_55] : memref<64x128xf32, #tpu.memory_space<vmem>>, vector<8x128xf32>
    %186 = arith.truncf %177 : vector<8x32xf32> to vector<8x32xbf16>
    %cst_56 = arith.constant dense<0.000000e+00> : vector<8x128xf32>
    %187 = tpu.matmul %186, %18, %cst_56 {dimension_numbers = #tpu.dot_dimension_numbers<[1], [0], [0], [1], [0, 0, 1, 1], [], []>} : vector<8x32xbf16>, vector<32x128xbf16>, vector<8x128xf32> -> vector<8x128xf32>
    %188 = arith.addf %185, %187 : vector<8x128xf32>
    %189 = vector.extract_strided_slice %188 {offsets = [0, 0], sizes = [8, 96], strides = [1, 1]} : vector<8x128xf32> to vector<8x96xf32>
    %190 = arith.negf %189 : vector<8x96xf32>
    %191 = math.exp %190 : vector<8x96xf32>
    %cst_57 = arith.constant 1.000000e+00 : f32
    %192 = vector.broadcast %cst_57 : f32 to vector<8x96xf32>
    %193 = arith.addf %192, %191 : vector<8x96xf32>
    %194 = arith.divf %192, %193 : vector<8x96xf32>
    %195 = vector.extract_strided_slice %188 {offsets = [0, 96], sizes = [8, 32], strides = [1, 1]} : vector<8x128xf32> to vector<8x32xf32>
    %196 = math.tanh %195 : vector<8x32xf32>
    %197 = vector.extract_strided_slice %194 {offsets = [0, 0], sizes = [8, 32], strides = [1, 1]} : vector<8x96xf32> to vector<8x32xf32>
    %198 = vector.extract_strided_slice %194 {offsets = [0, 32], sizes = [8, 32], strides = [1, 1]} : vector<8x96xf32> to vector<8x32xf32>
    %199 = vector.extract_strided_slice %194 {offsets = [0, 64], sizes = [8, 32], strides = [1, 1]} : vector<8x96xf32> to vector<8x32xf32>
    %200 = arith.mulf %198, %181 : vector<8x32xf32>
    %201 = arith.mulf %197, %196 : vector<8x32xf32>
    %202 = arith.addf %200, %201 : vector<8x32xf32>
    %203 = math.tanh %202 : vector<8x32xf32>
    %204 = arith.mulf %199, %203 : vector<8x32xf32>
    %c0_58 = arith.constant 0 : index
    %205 = arith.index_cast %183 : i32 to index
    %c0_59 = arith.constant 0 : index
    %206 = vector.load %arg2[%c0_58, %205, %c0_59] : memref<1x64x1xf32, #tpu.memory_space<vmem>>, vector<1x8x1xf32>
    %207 = vector.shape_cast %206 : vector<1x8x1xf32> to vector<8x1xf32>
    %208 = vector.broadcast %207 : vector<8x1xf32> to vector<8x32xf32>
    %209 = arith.mulf %204, %208 : vector<8x32xf32>
    %210 = arith.index_cast %183 : i32 to index
    %c0_60 = arith.constant 0 : index
    %211 = vector.load %arg19[%210, %c0_60] : memref<64x32xf32, #tpu.memory_space<vmem>>, vector<8x32xf32>
    tpu.vector_store %arg19[%210, %c0_60], %209 {strides = array<i32>} : memref<64x32xf32, #tpu.memory_space<vmem>>, vector<8x32xf32>,
    %212 = vector.broadcast %207 : vector<8x1xf32> to vector<8x32xf32>
    %213 = arith.mulf %202, %212 : vector<8x32xf32>
    %c6_i32 = arith.constant 6 : i32
    %c8_i32_61 = arith.constant 8 : i32
    %214 = arith.muli %c6_i32, %c8_i32_61 : i32
    %215 = tpu.assume_multiple %214, 8 : i32
    %216 = arith.index_cast %215 : i32 to index
    %c0_62 = arith.constant 0 : index
    %217 = vector.load %arg17[%216, %c0_62] : memref<64x128xf32, #tpu.memory_space<vmem>>, vector<8x128xf32>
    %218 = arith.truncf %209 : vector<8x32xf32> to vector<8x32xbf16>
    %cst_63 = arith.constant dense<0.000000e+00> : vector<8x128xf32>
    %219 = tpu.matmul %218, %18, %cst_63 {dimension_numbers = #tpu.dot_dimension_numbers<[1], [0], [0], [1], [0, 0, 1, 1], [], []>} : vector<8x32xbf16>, vector<32x128xbf16>, vector<8x128xf32> -> vector<8x128xf32>
    %220 = arith.addf %217, %219 : vector<8x128xf32>
    %221 = vector.extract_strided_slice %220 {offsets = [0, 0], sizes = [8, 96], strides = [1, 1]} : vector<8x128xf32> to vector<8x96xf32>
    %222 = arith.negf %221 : vector<8x96xf32>
    %223 = math.exp %222 : vector<8x96xf32>
    %cst_64 = arith.constant 1.000000e+00 : f32
    %224 = vector.broadcast %cst_64 : f32 to vector<8x96xf32>
    %225 = arith.addf %224, %223 : vector<8x96xf32>
    %226 = arith.divf %224, %225 : vector<8x96xf32>
    %227 = vector.extract_strided_slice %220 {offsets = [0, 96], sizes = [8, 32], strides = [1, 1]} : vector<8x128xf32> to vector<8x32xf32>
    %228 = math.tanh %227 : vector<8x32xf32>
    %229 = vector.extract_strided_slice %226 {offsets = [0, 0], sizes = [8, 32], strides = [1, 1]} : vector<8x96xf32> to vector<8x32xf32>
    %230 = vector.extract_strided_slice %226 {offsets = [0, 32], sizes = [8, 32], strides = [1, 1]} : vector<8x96xf32> to vector<8x32xf32>
    %231 = vector.extract_strided_slice %226 {offsets = [0, 64], sizes = [8, 32], strides = [1, 1]} : vector<8x96xf32> to vector<8x32xf32>
    %232 = arith.mulf %230, %213 : vector<8x32xf32>
    %233 = arith.mulf %229, %228 : vector<8x32xf32>
    %234 = arith.addf %232, %233 : vector<8x32xf32>
    %235 = math.tanh %234 : vector<8x32xf32>
    %236 = arith.mulf %231, %235 : vector<8x32xf32>
    %c0_65 = arith.constant 0 : index
    %237 = arith.index_cast %215 : i32 to index
    %c0_66 = arith.constant 0 : index
    %238 = vector.load %arg2[%c0_65, %237, %c0_66] : memref<1x64x1xf32, #tpu.memory_space<vmem>>, vector<1x8x1xf32>
    %239 = vector.shape_cast %238 : vector<1x8x1xf32> to vector<8x1xf32>
    %240 = vector.broadcast %239 : vector<8x1xf32> to vector<8x32xf32>
    %241 = arith.mulf %236, %240 : vector<8x32xf32>
    %242 = arith.index_cast %215 : i32 to index
    %c0_67 = arith.constant 0 : index
    %243 = vector.load %arg19[%242, %c0_67] : memref<64x32xf32, #tpu.memory_space<vmem>>, vector<8x32xf32>
    tpu.vector_store %arg19[%242, %c0_67], %241 {strides = array<i32>} : memref<64x32xf32, #tpu.memory_space<vmem>>, vector<8x32xf32>,
    %244 = vector.broadcast %239 : vector<8x1xf32> to vector<8x32xf32>
    %245 = arith.mulf %234, %244 : vector<8x32xf32>
    %c7_i32 = arith.constant 7 : i32
    %c8_i32_68 = arith.constant 8 : i32
    %246 = arith.muli %c7_i32, %c8_i32_68 : i32
    %247 = tpu.assume_multiple %246, 8 : i32
    %248 = arith.index_cast %247 : i32 to index
    %c0_69 = arith.constant 0 : index
    %249 = vector.load %arg17[%248, %c0_69] : memref<64x128xf32, #tpu.memory_space<vmem>>, vector<8x128xf32>
    %250 = arith.truncf %241 : vector<8x32xf32> to vector<8x32xbf16>
    %cst_70 = arith.constant dense<0.000000e+00> : vector<8x128xf32>
    %251 = tpu.matmul %250, %18, %cst_70 {dimension_numbers = #tpu.dot_dimension_numbers<[1], [0], [0], [1], [0, 0, 1, 1], [], []>} : vector<8x32xbf16>, vector<32x128xbf16>, vector<8x128xf32> -> vector<8x128xf32>
    %252 = arith.addf %249, %251 : vector<8x128xf32>
    %253 = vector.extract_strided_slice %252 {offsets = [0, 0], sizes = [8, 96], strides = [1, 1]} : vector<8x128xf32> to vector<8x96xf32>
    %254 = arith.negf %253 : vector<8x96xf32>
    %255 = math.exp %254 : vector<8x96xf32>
    %cst_71 = arith.constant 1.000000e+00 : f32
    %256 = vector.broadcast %cst_71 : f32 to vector<8x96xf32>
    %257 = arith.addf %256, %255 : vector<8x96xf32>
    %258 = arith.divf %256, %257 : vector<8x96xf32>
    %259 = vector.extract_strided_slice %252 {offsets = [0, 96], sizes = [8, 32], strides = [1, 1]} : vector<8x128xf32> to vector<8x32xf32>
    %260 = math.tanh %259 : vector<8x32xf32>
    %261 = vector.extract_strided_slice %258 {offsets = [0, 0], sizes = [8, 32], strides = [1, 1]} : vector<8x96xf32> to vector<8x32xf32>
    %262 = vector.extract_strided_slice %258 {offsets = [0, 32], sizes = [8, 32], strides = [1, 1]} : vector<8x96xf32> to vector<8x32xf32>
    %263 = vector.extract_strided_slice %258 {offsets = [0, 64], sizes = [8, 32], strides = [1, 1]} : vector<8x96xf32> to vector<8x32xf32>
    %264 = arith.mulf %262, %245 : vector<8x32xf32>
    %265 = arith.mulf %261, %260 : vector<8x32xf32>
    %266 = arith.addf %264, %265 : vector<8x32xf32>
    %267 = math.tanh %266 : vector<8x32xf32>
    %268 = arith.mulf %263, %267 : vector<8x32xf32>
    %c0_72 = arith.constant 0 : index
    %269 = arith.index_cast %247 : i32 to index
    %c0_73 = arith.constant 0 : index
    %270 = vector.load %arg2[%c0_72, %269, %c0_73] : memref<1x64x1xf32, #tpu.memory_space<vmem>>, vector<1x8x1xf32>
    %271 = vector.shape_cast %270 : vector<1x8x1xf32> to vector<8x1xf32>
    %272 = vector.broadcast %271 : vector<8x1xf32> to vector<8x32xf32>
    %273 = arith.mulf %268, %272 : vector<8x32xf32>
    %274 = arith.index_cast %247 : i32 to index
    %c0_74 = arith.constant 0 : index
    %275 = vector.load %arg19[%274, %c0_74] : memref<64x32xf32, #tpu.memory_space<vmem>>, vector<8x32xf32>
    tpu.vector_store %arg19[%274, %c0_74], %273 {strides = array<i32>} : memref<64x32xf32, #tpu.memory_space<vmem>>, vector<8x32xf32>,
    %276 = vector.broadcast %271 : vector<8x1xf32> to vector<8x32xf32>
    %277 = arith.mulf %266, %276 : vector<8x32xf32>
    %c8_i32_75 = arith.constant 8 : i32
    %c0_i32_76 = arith.constant 0 : i32
    %c7_i32_77 = arith.constant 7 : i32
    %278 = arith.subi %c7_i32_77, %c0_i32_76 : i32
    %c8_i32_78 = arith.constant 8 : i32
    %279 = arith.muli %278, %c8_i32_78 : i32
    %280 = tpu.assume_multiple %279, 8 : i32
    %281 = arith.index_cast %280 : i32 to index
    %c0_79 = arith.constant 0 : index
    %282 = vector.load %arg18[%281, %c0_79] : memref<64x128xf32, #tpu.memory_space<vmem>>, vector<8x128xf32>
    %283 = arith.truncf %21 : vector<8x32xf32> to vector<8x32xbf16>
    %cst_80 = arith.constant dense<0.000000e+00> : vector<8x128xf32>
    %284 = tpu.matmul %283, %20, %cst_80 {dimension_numbers = #tpu.dot_dimension_numbers<[1], [0], [0], [1], [0, 0, 1, 1], [], []>} : vector<8x32xbf16>, vector<32x128xbf16>, vector<8x128xf32> -> vector<8x128xf32>
    %285 = arith.addf %282, %284 : vector<8x128xf32>
    %286 = vector.extract_strided_slice %285 {offsets = [0, 0], sizes = [8, 96], strides = [1, 1]} : vector<8x128xf32> to vector<8x96xf32>
    %287 = arith.negf %286 : vector<8x96xf32>
    %288 = math.exp %287 : vector<8x96xf32>
    %cst_81 = arith.constant 1.000000e+00 : f32
    %289 = vector.broadcast %cst_81 : f32 to vector<8x96xf32>
    %290 = arith.addf %289, %288 : vector<8x96xf32>
    %291 = arith.divf %289, %290 : vector<8x96xf32>
    %292 = vector.extract_strided_slice %285 {offsets = [0, 96], sizes = [8, 32], strides = [1, 1]} : vector<8x128xf32> to vector<8x32xf32>
    %293 = math.tanh %292 : vector<8x32xf32>
    %294 = vector.extract_strided_slice %291 {offsets = [0, 0], sizes = [8, 32], strides = [1, 1]} : vector<8x96xf32> to vector<8x32xf32>
    %295 = vector.extract_strided_slice %291 {offsets = [0, 32], sizes = [8, 32], strides = [1, 1]} : vector<8x96xf32> to vector<8x32xf32>
    %296 = vector.extract_strided_slice %291 {offsets = [0, 64], sizes = [8, 32], strides = [1, 1]} : vector<8x96xf32> to vector<8x32xf32>
    %297 = arith.mulf %295, %21 : vector<8x32xf32>
    %298 = arith.mulf %294, %293 : vector<8x32xf32>
    %299 = arith.addf %297, %298 : vector<8x32xf32>
    %300 = math.tanh %299 : vector<8x32xf32>
    %301 = arith.mulf %296, %300 : vector<8x32xf32>
    %c0_82 = arith.constant 0 : index
    %302 = arith.index_cast %280 : i32 to index
    %c0_83 = arith.constant 0 : index
    %303 = vector.load %arg2[%c0_82, %302, %c0_83] : memref<1x64x1xf32, #tpu.memory_space<vmem>>, vector<1x8x1xf32>
    %304 = vector.shape_cast %303 : vector<1x8x1xf32> to vector<8x1xf32>
    %305 = vector.broadcast %304 : vector<8x1xf32> to vector<8x32xf32>
    %306 = arith.mulf %301, %305 : vector<8x32xf32>
    %307 = arith.index_cast %280 : i32 to index
    %c0_84 = arith.constant 0 : index
    %308 = vector.load %arg20[%307, %c0_84] : memref<64x32xf32, #tpu.memory_space<vmem>>, vector<8x32xf32>
    tpu.vector_store %arg20[%307, %c0_84], %306 {strides = array<i32>} : memref<64x32xf32, #tpu.memory_space<vmem>>, vector<8x32xf32>,
    %309 = vector.broadcast %304 : vector<8x1xf32> to vector<8x32xf32>
    %310 = arith.mulf %299, %309 : vector<8x32xf32>
    %c1_i32_85 = arith.constant 1 : i32
    %c7_i32_86 = arith.constant 7 : i32
    %311 = arith.subi %c7_i32_86, %c1_i32_85 : i32
    %c8_i32_87 = arith.constant 8 : i32
    %312 = arith.muli %311, %c8_i32_87 : i32
    %313 = tpu.assume_multiple %312, 8 : i32
    %314 = arith.index_cast %313 : i32 to index
    %c0_88 = arith.constant 0 : index
    %315 = vector.load %arg18[%314, %c0_88] : memref<64x128xf32, #tpu.memory_space<vmem>>, vector<8x128xf32>
    %316 = arith.truncf %306 : vector<8x32xf32> to vector<8x32xbf16>
    %cst_89 = arith.constant dense<0.000000e+00> : vector<8x128xf32>
    %317 = tpu.matmul %316, %20, %cst_89 {dimension_numbers = #tpu.dot_dimension_numbers<[1], [0], [0], [1], [0, 0, 1, 1], [], []>} : vector<8x32xbf16>, vector<32x128xbf16>, vector<8x128xf32> -> vector<8x128xf32>
    %318 = arith.addf %315, %317 : vector<8x128xf32>
    %319 = vector.extract_strided_slice %318 {offsets = [0, 0], sizes = [8, 96], strides = [1, 1]} : vector<8x128xf32> to vector<8x96xf32>
    %320 = arith.negf %319 : vector<8x96xf32>
    %321 = math.exp %320 : vector<8x96xf32>
    %cst_90 = arith.constant 1.000000e+00 : f32
    %322 = vector.broadcast %cst_90 : f32 to vector<8x96xf32>
    %323 = arith.addf %322, %321 : vector<8x96xf32>
    %324 = arith.divf %322, %323 : vector<8x96xf32>
    %325 = vector.extract_strided_slice %318 {offsets = [0, 96], sizes = [8, 32], strides = [1, 1]} : vector<8x128xf32> to vector<8x32xf32>
    %326 = math.tanh %325 : vector<8x32xf32>
    %327 = vector.extract_strided_slice %324 {offsets = [0, 0], sizes = [8, 32], strides = [1, 1]} : vector<8x96xf32> to vector<8x32xf32>
    %328 = vector.extract_strided_slice %324 {offsets = [0, 32], sizes = [8, 32], strides = [1, 1]} : vector<8x96xf32> to vector<8x32xf32>
    %329 = vector.extract_strided_slice %324 {offsets = [0, 64], sizes = [8, 32], strides = [1, 1]} : vector<8x96xf32> to vector<8x32xf32>
    %330 = arith.mulf %328, %310 : vector<8x32xf32>
    %331 = arith.mulf %327, %326 : vector<8x32xf32>
    %332 = arith.addf %330, %331 : vector<8x32xf32>
    %333 = math.tanh %332 : vector<8x32xf32>
    %334 = arith.mulf %329, %333 : vector<8x32xf32>
    %c0_91 = arith.constant 0 : index
    %335 = arith.index_cast %313 : i32 to index
    %c0_92 = arith.constant 0 : index
    %336 = vector.load %arg2[%c0_91, %335, %c0_92] : memref<1x64x1xf32, #tpu.memory_space<vmem>>, vector<1x8x1xf32>
    %337 = vector.shape_cast %336 : vector<1x8x1xf32> to vector<8x1xf32>
    %338 = vector.broadcast %337 : vector<8x1xf32> to vector<8x32xf32>
    %339 = arith.mulf %334, %338 : vector<8x32xf32>
    %340 = arith.index_cast %313 : i32 to index
    %c0_93 = arith.constant 0 : index
    %341 = vector.load %arg20[%340, %c0_93] : memref<64x32xf32, #tpu.memory_space<vmem>>, vector<8x32xf32>
    tpu.vector_store %arg20[%340, %c0_93], %339 {strides = array<i32>} : memref<64x32xf32, #tpu.memory_space<vmem>>, vector<8x32xf32>,
    %342 = vector.broadcast %337 : vector<8x1xf32> to vector<8x32xf32>
    %343 = arith.mulf %332, %342 : vector<8x32xf32>
    %c2_i32_94 = arith.constant 2 : i32
    %c7_i32_95 = arith.constant 7 : i32
    %344 = arith.subi %c7_i32_95, %c2_i32_94 : i32
    %c8_i32_96 = arith.constant 8 : i32
    %345 = arith.muli %344, %c8_i32_96 : i32
    %346 = tpu.assume_multiple %345, 8 : i32
    %347 = arith.index_cast %346 : i32 to index
    %c0_97 = arith.constant 0 : index
    %348 = vector.load %arg18[%347, %c0_97] : memref<64x128xf32, #tpu.memory_space<vmem>>, vector<8x128xf32>
    %349 = arith.truncf %339 : vector<8x32xf32> to vector<8x32xbf16>
    %cst_98 = arith.constant dense<0.000000e+00> : vector<8x128xf32>
    %350 = tpu.matmul %349, %20, %cst_98 {dimension_numbers = #tpu.dot_dimension_numbers<[1], [0], [0], [1], [0, 0, 1, 1], [], []>} : vector<8x32xbf16>, vector<32x128xbf16>, vector<8x128xf32> -> vector<8x128xf32>
    %351 = arith.addf %348, %350 : vector<8x128xf32>
    %352 = vector.extract_strided_slice %351 {offsets = [0, 0], sizes = [8, 96], strides = [1, 1]} : vector<8x128xf32> to vector<8x96xf32>
    %353 = arith.negf %352 : vector<8x96xf32>
    %354 = math.exp %353 : vector<8x96xf32>
    %cst_99 = arith.constant 1.000000e+00 : f32
    %355 = vector.broadcast %cst_99 : f32 to vector<8x96xf32>
    %356 = arith.addf %355, %354 : vector<8x96xf32>
    %357 = arith.divf %355, %356 : vector<8x96xf32>
    %358 = vector.extract_strided_slice %351 {offsets = [0, 96], sizes = [8, 32], strides = [1, 1]} : vector<8x128xf32> to vector<8x32xf32>
    %359 = math.tanh %358 : vector<8x32xf32>
    %360 = vector.extract_strided_slice %357 {offsets = [0, 0], sizes = [8, 32], strides = [1, 1]} : vector<8x96xf32> to vector<8x32xf32>
    %361 = vector.extract_strided_slice %357 {offsets = [0, 32], sizes = [8, 32], strides = [1, 1]} : vector<8x96xf32> to vector<8x32xf32>
    %362 = vector.extract_strided_slice %357 {offsets = [0, 64], sizes = [8, 32], strides = [1, 1]} : vector<8x96xf32> to vector<8x32xf32>
    %363 = arith.mulf %361, %343 : vector<8x32xf32>
    %364 = arith.mulf %360, %359 : vector<8x32xf32>
    %365 = arith.addf %363, %364 : vector<8x32xf32>
    %366 = math.tanh %365 : vector<8x32xf32>
    %367 = arith.mulf %362, %366 : vector<8x32xf32>
    %c0_100 = arith.constant 0 : index
    %368 = arith.index_cast %346 : i32 to index
    %c0_101 = arith.constant 0 : index
    %369 = vector.load %arg2[%c0_100, %368, %c0_101] : memref<1x64x1xf32, #tpu.memory_space<vmem>>, vector<1x8x1xf32>
    %370 = vector.shape_cast %369 : vector<1x8x1xf32> to vector<8x1xf32>
    %371 = vector.broadcast %370 : vector<8x1xf32> to vector<8x32xf32>
    %372 = arith.mulf %367, %371 : vector<8x32xf32>
    %373 = arith.index_cast %346 : i32 to index
    %c0_102 = arith.constant 0 : index
    %374 = vector.load %arg20[%373, %c0_102] : memref<64x32xf32, #tpu.memory_space<vmem>>, vector<8x32xf32>
    tpu.vector_store %arg20[%373, %c0_102], %372 {strides = array<i32>} : memref<64x32xf32, #tpu.memory_space<vmem>>, vector<8x32xf32>,
    %375 = vector.broadcast %370 : vector<8x1xf32> to vector<8x32xf32>
    %376 = arith.mulf %365, %375 : vector<8x32xf32>
    %c3_i32_103 = arith.constant 3 : i32
    %c7_i32_104 = arith.constant 7 : i32
    %377 = arith.subi %c7_i32_104, %c3_i32_103 : i32
    %c8_i32_105 = arith.constant 8 : i32
    %378 = arith.muli %377, %c8_i32_105 : i32
    %379 = tpu.assume_multiple %378, 8 : i32
    %380 = arith.index_cast %379 : i32 to index
    %c0_106 = arith.constant 0 : index
    %381 = vector.load %arg18[%380, %c0_106] : memref<64x128xf32, #tpu.memory_space<vmem>>, vector<8x128xf32>
    %382 = arith.truncf %372 : vector<8x32xf32> to vector<8x32xbf16>
    %cst_107 = arith.constant dense<0.000000e+00> : vector<8x128xf32>
    %383 = tpu.matmul %382, %20, %cst_107 {dimension_numbers = #tpu.dot_dimension_numbers<[1], [0], [0], [1], [0, 0, 1, 1], [], []>} : vector<8x32xbf16>, vector<32x128xbf16>, vector<8x128xf32> -> vector<8x128xf32>
    %384 = arith.addf %381, %383 : vector<8x128xf32>
    %385 = vector.extract_strided_slice %384 {offsets = [0, 0], sizes = [8, 96], strides = [1, 1]} : vector<8x128xf32> to vector<8x96xf32>
    %386 = arith.negf %385 : vector<8x96xf32>
    %387 = math.exp %386 : vector<8x96xf32>
    %cst_108 = arith.constant 1.000000e+00 : f32
    %388 = vector.broadcast %cst_108 : f32 to vector<8x96xf32>
    %389 = arith.addf %388, %387 : vector<8x96xf32>
    %390 = arith.divf %388, %389 : vector<8x96xf32>
    %391 = vector.extract_strided_slice %384 {offsets = [0, 96], sizes = [8, 32], strides = [1, 1]} : vector<8x128xf32> to vector<8x32xf32>
    %392 = math.tanh %391 : vector<8x32xf32>
    %393 = vector.extract_strided_slice %390 {offsets = [0, 0], sizes = [8, 32], strides = [1, 1]} : vector<8x96xf32> to vector<8x32xf32>
    %394 = vector.extract_strided_slice %390 {offsets = [0, 32], sizes = [8, 32], strides = [1, 1]} : vector<8x96xf32> to vector<8x32xf32>
    %395 = vector.extract_strided_slice %390 {offsets = [0, 64], sizes = [8, 32], strides = [1, 1]} : vector<8x96xf32> to vector<8x32xf32>
    %396 = arith.mulf %394, %376 : vector<8x32xf32>
    %397 = arith.mulf %393, %392 : vector<8x32xf32>
    %398 = arith.addf %396, %397 : vector<8x32xf32>
    %399 = math.tanh %398 : vector<8x32xf32>
    %400 = arith.mulf %395, %399 : vector<8x32xf32>
    %c0_109 = arith.constant 0 : index
    %401 = arith.index_cast %379 : i32 to index
    %c0_110 = arith.constant 0 : index
    %402 = vector.load %arg2[%c0_109, %401, %c0_110] : memref<1x64x1xf32, #tpu.memory_space<vmem>>, vector<1x8x1xf32>
    %403 = vector.shape_cast %402 : vector<1x8x1xf32> to vector<8x1xf32>
    %404 = vector.broadcast %403 : vector<8x1xf32> to vector<8x32xf32>
    %405 = arith.mulf %400, %404 : vector<8x32xf32>
    %406 = arith.index_cast %379 : i32 to index
    %c0_111 = arith.constant 0 : index
    %407 = vector.load %arg20[%406, %c0_111] : memref<64x32xf32, #tpu.memory_space<vmem>>, vector<8x32xf32>
    tpu.vector_store %arg20[%406, %c0_111], %405 {strides = array<i32>} : memref<64x32xf32, #tpu.memory_space<vmem>>, vector<8x32xf32>,
    %408 = vector.broadcast %403 : vector<8x1xf32> to vector<8x32xf32>
    %409 = arith.mulf %398, %408 : vector<8x32xf32>
    %c4_i32_112 = arith.constant 4 : i32
    %c7_i32_113 = arith.constant 7 : i32
    %410 = arith.subi %c7_i32_113, %c4_i32_112 : i32
    %c8_i32_114 = arith.constant 8 : i32
    %411 = arith.muli %410, %c8_i32_114 : i32
    %412 = tpu.assume_multiple %411, 8 : i32
    %413 = arith.index_cast %412 : i32 to index
    %c0_115 = arith.constant 0 : index
    %414 = vector.load %arg18[%413, %c0_115] : memref<64x128xf32, #tpu.memory_space<vmem>>, vector<8x128xf32>
    %415 = arith.truncf %405 : vector<8x32xf32> to vector<8x32xbf16>
    %cst_116 = arith.constant dense<0.000000e+00> : vector<8x128xf32>
    %416 = tpu.matmul %415, %20, %cst_116 {dimension_numbers = #tpu.dot_dimension_numbers<[1], [0], [0], [1], [0, 0, 1, 1], [], []>} : vector<8x32xbf16>, vector<32x128xbf16>, vector<8x128xf32> -> vector<8x128xf32>
    %417 = arith.addf %414, %416 : vector<8x128xf32>
    %418 = vector.extract_strided_slice %417 {offsets = [0, 0], sizes = [8, 96], strides = [1, 1]} : vector<8x128xf32> to vector<8x96xf32>
    %419 = arith.negf %418 : vector<8x96xf32>
    %420 = math.exp %419 : vector<8x96xf32>
    %cst_117 = arith.constant 1.000000e+00 : f32
    %421 = vector.broadcast %cst_117 : f32 to vector<8x96xf32>
    %422 = arith.addf %421, %420 : vector<8x96xf32>
    %423 = arith.divf %421, %422 : vector<8x96xf32>
    %424 = vector.extract_strided_slice %417 {offsets = [0, 96], sizes = [8, 32], strides = [1, 1]} : vector<8x128xf32> to vector<8x32xf32>
    %425 = math.tanh %424 : vector<8x32xf32>
    %426 = vector.extract_strided_slice %423 {offsets = [0, 0], sizes = [8, 32], strides = [1, 1]} : vector<8x96xf32> to vector<8x32xf32>
    %427 = vector.extract_strided_slice %423 {offsets = [0, 32], sizes = [8, 32], strides = [1, 1]} : vector<8x96xf32> to vector<8x32xf32>
    %428 = vector.extract_strided_slice %423 {offsets = [0, 64], sizes = [8, 32], strides = [1, 1]} : vector<8x96xf32> to vector<8x32xf32>
    %429 = arith.mulf %427, %409 : vector<8x32xf32>
    %430 = arith.mulf %426, %425 : vector<8x32xf32>
    %431 = arith.addf %429, %430 : vector<8x32xf32>
    %432 = math.tanh %431 : vector<8x32xf32>
    %433 = arith.mulf %428, %432 : vector<8x32xf32>
    %c0_118 = arith.constant 0 : index
    %434 = arith.index_cast %412 : i32 to index
    %c0_119 = arith.constant 0 : index
    %435 = vector.load %arg2[%c0_118, %434, %c0_119] : memref<1x64x1xf32, #tpu.memory_space<vmem>>, vector<1x8x1xf32>
    %436 = vector.shape_cast %435 : vector<1x8x1xf32> to vector<8x1xf32>
    %437 = vector.broadcast %436 : vector<8x1xf32> to vector<8x32xf32>
    %438 = arith.mulf %433, %437 : vector<8x32xf32>
    %439 = arith.index_cast %412 : i32 to index
    %c0_120 = arith.constant 0 : index
    %440 = vector.load %arg20[%439, %c0_120] : memref<64x32xf32, #tpu.memory_space<vmem>>, vector<8x32xf32>
    tpu.vector_store %arg20[%439, %c0_120], %438 {strides = array<i32>} : memref<64x32xf32, #tpu.memory_space<vmem>>, vector<8x32xf32>,
    %441 = vector.broadcast %436 : vector<8x1xf32> to vector<8x32xf32>
    %442 = arith.mulf %431, %441 : vector<8x32xf32>
    %c5_i32_121 = arith.constant 5 : i32
    %c7_i32_122 = arith.constant 7 : i32
    %443 = arith.subi %c7_i32_122, %c5_i32_121 : i32
    %c8_i32_123 = arith.constant 8 : i32
    %444 = arith.muli %443, %c8_i32_123 : i32
    %445 = tpu.assume_multiple %444, 8 : i32
    %446 = arith.index_cast %445 : i32 to index
    %c0_124 = arith.constant 0 : index
    %447 = vector.load %arg18[%446, %c0_124] : memref<64x128xf32, #tpu.memory_space<vmem>>, vector<8x128xf32>
    %448 = arith.truncf %438 : vector<8x32xf32> to vector<8x32xbf16>
    %cst_125 = arith.constant dense<0.000000e+00> : vector<8x128xf32>
    %449 = tpu.matmul %448, %20, %cst_125 {dimension_numbers = #tpu.dot_dimension_numbers<[1], [0], [0], [1], [0, 0, 1, 1], [], []>} : vector<8x32xbf16>, vector<32x128xbf16>, vector<8x128xf32> -> vector<8x128xf32>
    %450 = arith.addf %447, %449 : vector<8x128xf32>
    %451 = vector.extract_strided_slice %450 {offsets = [0, 0], sizes = [8, 96], strides = [1, 1]} : vector<8x128xf32> to vector<8x96xf32>
    %452 = arith.negf %451 : vector<8x96xf32>
    %453 = math.exp %452 : vector<8x96xf32>
    %cst_126 = arith.constant 1.000000e+00 : f32
    %454 = vector.broadcast %cst_126 : f32 to vector<8x96xf32>
    %455 = arith.addf %454, %453 : vector<8x96xf32>
    %456 = arith.divf %454, %455 : vector<8x96xf32>
    %457 = vector.extract_strided_slice %450 {offsets = [0, 96], sizes = [8, 32], strides = [1, 1]} : vector<8x128xf32> to vector<8x32xf32>
    %458 = math.tanh %457 : vector<8x32xf32>
    %459 = vector.extract_strided_slice %456 {offsets = [0, 0], sizes = [8, 32], strides = [1, 1]} : vector<8x96xf32> to vector<8x32xf32>
    %460 = vector.extract_strided_slice %456 {offsets = [0, 32], sizes = [8, 32], strides = [1, 1]} : vector<8x96xf32> to vector<8x32xf32>
    %461 = vector.extract_strided_slice %456 {offsets = [0, 64], sizes = [8, 32], strides = [1, 1]} : vector<8x96xf32> to vector<8x32xf32>
    %462 = arith.mulf %460, %442 : vector<8x32xf32>
    %463 = arith.mulf %459, %458 : vector<8x32xf32>
    %464 = arith.addf %462, %463 : vector<8x32xf32>
    %465 = math.tanh %464 : vector<8x32xf32>
    %466 = arith.mulf %461, %465 : vector<8x32xf32>
    %c0_127 = arith.constant 0 : index
    %467 = arith.index_cast %445 : i32 to index
    %c0_128 = arith.constant 0 : index
    %468 = vector.load %arg2[%c0_127, %467, %c0_128] : memref<1x64x1xf32, #tpu.memory_space<vmem>>, vector<1x8x1xf32>
    %469 = vector.shape_cast %468 : vector<1x8x1xf32> to vector<8x1xf32>
    %470 = vector.broadcast %469 : vector<8x1xf32> to vector<8x32xf32>
    %471 = arith.mulf %466, %470 : vector<8x32xf32>
    %472 = arith.index_cast %445 : i32 to index
    %c0_129 = arith.constant 0 : index
    %473 = vector.load %arg20[%472, %c0_129] : memref<64x32xf32, #tpu.memory_space<vmem>>, vector<8x32xf32>
    tpu.vector_store %arg20[%472, %c0_129], %471 {strides = array<i32>} : memref<64x32xf32, #tpu.memory_space<vmem>>, vector<8x32xf32>,
    %474 = vector.broadcast %469 : vector<8x1xf32> to vector<8x32xf32>
    %475 = arith.mulf %464, %474 : vector<8x32xf32>
    %c6_i32_130 = arith.constant 6 : i32
    %c7_i32_131 = arith.constant 7 : i32
    %476 = arith.subi %c7_i32_131, %c6_i32_130 : i32
    %c8_i32_132 = arith.constant 8 : i32
    %477 = arith.muli %476, %c8_i32_132 : i32
    %478 = tpu.assume_multiple %477, 8 : i32
    %479 = arith.index_cast %478 : i32 to index
    %c0_133 = arith.constant 0 : index
    %480 = vector.load %arg18[%479, %c0_133] : memref<64x128xf32, #tpu.memory_space<vmem>>, vector<8x128xf32>
    %481 = arith.truncf %471 : vector<8x32xf32> to vector<8x32xbf16>
    %cst_134 = arith.constant dense<0.000000e+00> : vector<8x128xf32>
    %482 = tpu.matmul %481, %20, %cst_134 {dimension_numbers = #tpu.dot_dimension_numbers<[1], [0], [0], [1], [0, 0, 1, 1], [], []>} : vector<8x32xbf16>, vector<32x128xbf16>, vector<8x128xf32> -> vector<8x128xf32>
    %483 = arith.addf %480, %482 : vector<8x128xf32>
    %484 = vector.extract_strided_slice %483 {offsets = [0, 0], sizes = [8, 96], strides = [1, 1]} : vector<8x128xf32> to vector<8x96xf32>
    %485 = arith.negf %484 : vector<8x96xf32>
    %486 = math.exp %485 : vector<8x96xf32>
    %cst_135 = arith.constant 1.000000e+00 : f32
    %487 = vector.broadcast %cst_135 : f32 to vector<8x96xf32>
    %488 = arith.addf %487, %486 : vector<8x96xf32>
    %489 = arith.divf %487, %488 : vector<8x96xf32>
    %490 = vector.extract_strided_slice %483 {offsets = [0, 96], sizes = [8, 32], strides = [1, 1]} : vector<8x128xf32> to vector<8x32xf32>
    %491 = math.tanh %490 : vector<8x32xf32>
    %492 = vector.extract_strided_slice %489 {offsets = [0, 0], sizes = [8, 32], strides = [1, 1]} : vector<8x96xf32> to vector<8x32xf32>
    %493 = vector.extract_strided_slice %489 {offsets = [0, 32], sizes = [8, 32], strides = [1, 1]} : vector<8x96xf32> to vector<8x32xf32>
    %494 = vector.extract_strided_slice %489 {offsets = [0, 64], sizes = [8, 32], strides = [1, 1]} : vector<8x96xf32> to vector<8x32xf32>
    %495 = arith.mulf %493, %475 : vector<8x32xf32>
    %496 = arith.mulf %492, %491 : vector<8x32xf32>
    %497 = arith.addf %495, %496 : vector<8x32xf32>
    %498 = math.tanh %497 : vector<8x32xf32>
    %499 = arith.mulf %494, %498 : vector<8x32xf32>
    %c0_136 = arith.constant 0 : index
    %500 = arith.index_cast %478 : i32 to index
    %c0_137 = arith.constant 0 : index
    %501 = vector.load %arg2[%c0_136, %500, %c0_137] : memref<1x64x1xf32, #tpu.memory_space<vmem>>, vector<1x8x1xf32>
    %502 = vector.shape_cast %501 : vector<1x8x1xf32> to vector<8x1xf32>
    %503 = vector.broadcast %502 : vector<8x1xf32> to vector<8x32xf32>
    %504 = arith.mulf %499, %503 : vector<8x32xf32>
    %505 = arith.index_cast %478 : i32 to index
    %c0_138 = arith.constant 0 : index
    %506 = vector.load %arg20[%505, %c0_138] : memref<64x32xf32, #tpu.memory_space<vmem>>, vector<8x32xf32>
    tpu.vector_store %arg20[%505, %c0_138], %504 {strides = array<i32>} : memref<64x32xf32, #tpu.memory_space<vmem>>, vector<8x32xf32>,
    %507 = vector.broadcast %502 : vector<8x1xf32> to vector<8x32xf32>
    %508 = arith.mulf %497, %507 : vector<8x32xf32>
    %c7_i32_139 = arith.constant 7 : i32
    %c7_i32_140 = arith.constant 7 : i32
    %509 = arith.subi %c7_i32_140, %c7_i32_139 : i32
    %c8_i32_141 = arith.constant 8 : i32
    %510 = arith.muli %509, %c8_i32_141 : i32
    %511 = tpu.assume_multiple %510, 8 : i32
    %512 = arith.index_cast %511 : i32 to index
    %c0_142 = arith.constant 0 : index
    %513 = vector.load %arg18[%512, %c0_142] : memref<64x128xf32, #tpu.memory_space<vmem>>, vector<8x128xf32>
    %514 = arith.truncf %504 : vector<8x32xf32> to vector<8x32xbf16>
    %cst_143 = arith.constant dense<0.000000e+00> : vector<8x128xf32>
    %515 = tpu.matmul %514, %20, %cst_143 {dimension_numbers = #tpu.dot_dimension_numbers<[1], [0], [0], [1], [0, 0, 1, 1], [], []>} : vector<8x32xbf16>, vector<32x128xbf16>, vector<8x128xf32> -> vector<8x128xf32>
    %516 = arith.addf %513, %515 : vector<8x128xf32>
    %517 = vector.extract_strided_slice %516 {offsets = [0, 0], sizes = [8, 96], strides = [1, 1]} : vector<8x128xf32> to vector<8x96xf32>
    %518 = arith.negf %517 : vector<8x96xf32>
    %519 = math.exp %518 : vector<8x96xf32>
    %cst_144 = arith.constant 1.000000e+00 : f32
    %520 = vector.broadcast %cst_144 : f32 to vector<8x96xf32>
    %521 = arith.addf %520, %519 : vector<8x96xf32>
    %522 = arith.divf %520, %521 : vector<8x96xf32>
    %523 = vector.extract_strided_slice %516 {offsets = [0, 96], sizes = [8, 32], strides = [1, 1]} : vector<8x128xf32> to vector<8x32xf32>
    %524 = math.tanh %523 : vector<8x32xf32>
    %525 = vector.extract_strided_slice %522 {offsets = [0, 0], sizes = [8, 32], strides = [1, 1]} : vector<8x96xf32> to vector<8x32xf32>
    %526 = vector.extract_strided_slice %522 {offsets = [0, 32], sizes = [8, 32], strides = [1, 1]} : vector<8x96xf32> to vector<8x32xf32>
    %527 = vector.extract_strided_slice %522 {offsets = [0, 64], sizes = [8, 32], strides = [1, 1]} : vector<8x96xf32> to vector<8x32xf32>
    %528 = arith.mulf %526, %508 : vector<8x32xf32>
    %529 = arith.mulf %525, %524 : vector<8x32xf32>
    %530 = arith.addf %528, %529 : vector<8x32xf32>
    %531 = math.tanh %530 : vector<8x32xf32>
    %532 = arith.mulf %527, %531 : vector<8x32xf32>
    %c0_145 = arith.constant 0 : index
    %533 = arith.index_cast %511 : i32 to index
    %c0_146 = arith.constant 0 : index
    %534 = vector.load %arg2[%c0_145, %533, %c0_146] : memref<1x64x1xf32, #tpu.memory_space<vmem>>, vector<1x8x1xf32>
    %535 = vector.shape_cast %534 : vector<1x8x1xf32> to vector<8x1xf32>
    %536 = vector.broadcast %535 : vector<8x1xf32> to vector<8x32xf32>
    %537 = arith.mulf %532, %536 : vector<8x32xf32>
    %538 = arith.index_cast %511 : i32 to index
    %c0_147 = arith.constant 0 : index
    %539 = vector.load %arg20[%538, %c0_147] : memref<64x32xf32, #tpu.memory_space<vmem>>, vector<8x32xf32>
    tpu.vector_store %arg20[%538, %c0_147], %537 {strides = array<i32>} : memref<64x32xf32, #tpu.memory_space<vmem>>, vector<8x32xf32>,
    %540 = vector.broadcast %535 : vector<8x1xf32> to vector<8x32xf32>
    %541 = arith.mulf %530, %540 : vector<8x32xf32>
    %c8_i32_148 = arith.constant 8 : i32
    %c0_149 = arith.constant 0 : index
    %c0_150 = arith.constant 0 : index
    %542 = vector.load %arg19[%c0_149, %c0_150] : memref<64x32xf32, #tpu.memory_space<vmem>>, vector<64x32xf32>
    %543 = arith.truncf %542 : vector<64x32xf32> to vector<64x32xbf16>
    %c0_151 = arith.constant 0 : index
    %c0_152 = arith.constant 0 : index
    %544 = vector.load %arg9[%c0_151, %c0_152] : memref<32x32xf32, #tpu.memory_space<vmem>>, vector<32x32xf32>
    %545 = arith.truncf %544 : vector<32x32xf32> to vector<32x32xbf16>
    %cst_153 = arith.constant dense<0.000000e+00> : vector<64x32xf32>
    %546 = tpu.matmul %543, %545, %cst_153 {dimension_numbers = #tpu.dot_dimension_numbers<[1], [0], [0], [1], [0, 0, 1, 1], [], []>} : vector<64x32xbf16>, vector<32x32xbf16>, vector<64x32xf32> -> vector<64x32xf32>
    %c0_154 = arith.constant 0 : index
    %c0_155 = arith.constant 0 : index
    %547 = vector.load %arg20[%c0_154, %c0_155] : memref<64x32xf32, #tpu.memory_space<vmem>>, vector<64x32xf32>
    %548 = arith.truncf %547 : vector<64x32xf32> to vector<64x32xbf16>
    %c0_156 = arith.constant 0 : index
    %c0_157 = arith.constant 0 : index
    %549 = vector.load %arg10[%c0_156, %c0_157] : memref<32x32xf32, #tpu.memory_space<vmem>>, vector<32x32xf32>
    %550 = arith.truncf %549 : vector<32x32xf32> to vector<32x32xbf16>
    %cst_158 = arith.constant dense<0.000000e+00> : vector<64x32xf32>
    %551 = tpu.matmul %548, %550, %cst_158 {dimension_numbers = #tpu.dot_dimension_numbers<[1], [0], [0], [1], [0, 0, 1, 1], [], []>} : vector<64x32xbf16>, vector<32x32xbf16>, vector<64x32xf32> -> vector<64x32xf32>
    %552 = arith.addf %546, %551 : vector<64x32xf32>
    %c0_159 = arith.constant 0 : index
    %c0_160 = arith.constant 0 : index
    %553 = vector.load %arg11[%c0_159, %c0_160] : memref<1x32xf32, #tpu.memory_space<vmem>>, vector<1x32xf32>
    %554 = vector.broadcast %553 : vector<1x32xf32> to vector<64x32xf32>
    %555 = arith.addf %552, %554 : vector<64x32xf32>
    %cst_161 = arith.constant 0.000000e+00 : f32
    %556 = vector.broadcast %cst_161 : f32 to vector<64x32xf32>
    %557 = arith.maximumf %555, %556 : vector<64x32xf32>
    %c0_162 = arith.constant 0 : index
    %c0_163 = arith.constant 0 : index
    %558 = vector.load %arg12[%c0_162, %c0_163] : memref<24x64xf32, #tpu.memory_space<vmem>>, vector<24x64xf32>
    %559 = arith.truncf %558 : vector<24x64xf32> to vector<24x64xbf16>
    %560 = arith.truncf %557 : vector<64x32xf32> to vector<64x32xbf16>
    %cst_164 = arith.constant dense<0.000000e+00> : vector<24x32xf32>
    %561 = tpu.matmul %559, %560, %cst_164 {dimension_numbers = #tpu.dot_dimension_numbers<[1], [0], [0], [1], [0, 0, 1, 1], [], []>} : vector<24x64xbf16>, vector<64x32xbf16>, vector<24x32xf32> -> vector<24x32xf32>
    %c0_165 = arith.constant 0 : index
    %c0_166 = arith.constant 0 : index
    %562 = vector.load %arg13[%c0_165, %c0_166] : memref<24x1xf32, #tpu.memory_space<vmem>>, vector<24x1xf32>
    %563 = vector.broadcast %562 : vector<24x1xf32> to vector<24x32xf32>
    %564 = arith.divf %561, %563 : vector<24x32xf32>
    %c0_167 = arith.constant 0 : index
    %c0_168 = arith.constant 0 : index
    %565 = vector.load %arg14[%c0_167, %c0_168] : memref<32x32xf32, #tpu.memory_space<vmem>>, vector<32x32xf32>
    %cst_169 = arith.constant dense<0.000000e+00> : vector<24x32xf32>
    %566 = tpu.matmul %564, %565, %cst_169 {dimension_numbers = #tpu.dot_dimension_numbers<[1], [0], [0], [1], [0, 0, 1, 1], [], []>} : vector<24x32xf32>, vector<32x32xf32>, vector<24x32xf32> -> vector<24x32xf32>
    %c0_170 = arith.constant 0 : index
    %c0_171 = arith.constant 0 : index
    %567 = vector.load %arg15[%c0_170, %c0_171] : memref<1x32xf32, #tpu.memory_space<vmem>>, vector<1x32xf32>
    %568 = vector.broadcast %567 : vector<1x32xf32> to vector<24x32xf32>
    %569 = arith.addf %566, %568 : vector<24x32xf32>
    %c0_172 = arith.constant 0 : index
    %c0_173 = arith.constant 0 : index
    %570 = vector.load %arg16[%c0_172, %c0_173] : memref<24x32xf32, #tpu.memory_space<vmem>>, vector<24x32xf32>
    tpu.vector_store %arg16[%c0_172, %c0_173], %569 {strides = array<i32>} : memref<24x32xf32, #tpu.memory_space<vmem>>, vector<24x32xf32>,
    return
  }
  func.func @transform_0(%arg0: i32) -> (i32, i32, i32) {
    %c0_i32 = arith.constant 0 : i32
    %c0_i32_0 = arith.constant 0 : i32
    %c0_i32_1 = arith.constant 0 : i32
    return %arg0, %c0_i32, %c0_i32_0 : i32, i32, i32
  }
  func.func @transform_1(%arg0: i32) -> (i32, i32, i32) {
    %c0_i32 = arith.constant 0 : i32
    %c0_i32_0 = arith.constant 0 : i32
    %c0_i32_1 = arith.constant 0 : i32
    return %arg0, %c0_i32, %c0_i32_0 : i32, i32, i32
  }
  func.func @transform_2(%arg0: i32) -> (i32, i32) {
    %c0_i32 = arith.constant 0 : i32
    %c0_i32_0 = arith.constant 0 : i32
    %c0_i32_1 = arith.constant 0 : i32
    return %c0_i32, %c0_i32_0 : i32, i32
  }
  func.func @transform_3(%arg0: i32) -> (i32, i32) {
    %c0_i32 = arith.constant 0 : i32
    %c0_i32_0 = arith.constant 0 : i32
    %c0_i32_1 = arith.constant 0 : i32
    return %c0_i32, %c0_i32_0 : i32, i32
  }
  func.func @transform_4(%arg0: i32) -> (i32, i32) {
    %c0_i32 = arith.constant 0 : i32
    %c0_i32_0 = arith.constant 0 : i32
    %c0_i32_1 = arith.constant 0 : i32
    return %c0_i32, %c0_i32_0 : i32, i32
  }
  func.func @transform_5(%arg0: i32) -> (i32, i32) {
    %c0_i32 = arith.constant 0 : i32
    %c0_i32_0 = arith.constant 0 : i32
    %c0_i32_1 = arith.constant 0 : i32
    return %c0_i32, %c0_i32_0 : i32, i32
  }
  func.func @transform_6(%arg0: i32) -> (i32, i32) {
    %c0_i32 = arith.constant 0 : i32
    %c0_i32_0 = arith.constant 0 : i32
    %c0_i32_1 = arith.constant 0 : i32
    return %c0_i32, %c0_i32_0 : i32, i32
  }
  func.func @transform_7(%arg0: i32) -> (i32, i32) {
    %c0_i32 = arith.constant 0 : i32
    %c0_i32_0 = arith.constant 0 : i32
    %c0_i32_1 = arith.constant 0 : i32
    return %c0_i32, %c0_i32_0 : i32, i32
  }
  func.func @transform_8(%arg0: i32) -> (i32, i32) {
    %c0_i32 = arith.constant 0 : i32
    %c0_i32_0 = arith.constant 0 : i32
    %c0_i32_1 = arith.constant 0 : i32
    return %c0_i32, %c0_i32_0 : i32, i32
  }
  func.func @transform_9(%arg0: i32) -> (i32, i32) {
    %c0_i32 = arith.constant 0 : i32
    %c0_i32_0 = arith.constant 0 : i32
    %c0_i32_1 = arith.constant 0 : i32
    return %c0_i32, %c0_i32_0 : i32, i32
  }
  func.func @transform_10(%arg0: i32) -> (i32, i32) {
    %c0_i32 = arith.constant 0 : i32
    %c0_i32_0 = arith.constant 0 : i32
    %c0_i32_1 = arith.constant 0 : i32
    return %c0_i32, %c0_i32_0 : i32, i32
  }
  func.func @transform_11(%arg0: i32) -> (i32, i32) {
    %c0_i32 = arith.constant 0 : i32
    %c0_i32_0 = arith.constant 0 : i32
    return %arg0, %c0_i32 : i32, i32
  }
  func.func @transform_12(%arg0: i32) -> (i32, i32) {
    %c0_i32 = arith.constant 0 : i32
    %c0_i32_0 = arith.constant 0 : i32
    return %arg0, %c0_i32 : i32, i32
  }
  func.func @transform_13(%arg0: i32) -> (i32, i32) {
    %c0_i32 = arith.constant 0 : i32
    %c0_i32_0 = arith.constant 0 : i32
    %c0_i32_1 = arith.constant 0 : i32
    return %c0_i32, %c0_i32_0 : i32, i32
  }
  func.func @transform_14(%arg0: i32) -> (i32, i32) {
    %c0_i32 = arith.constant 0 : i32
    %c0_i32_0 = arith.constant 0 : i32
    %c0_i32_1 = arith.constant 0 : i32
    return %c0_i32, %c0_i32_0 : i32, i32
  }
  func.func @transform_15(%arg0: i32) -> (i32, i32) {
    %c0_i32 = arith.constant 0 : i32
    %c0_i32_0 = arith.constant 0 : i32
    return %arg0, %c0_i32 : i32, i32
  }
}

</mosaic_0001>

<llo_original>
// kernel: dual_forward.3
$region0: #{dual_forward.3}
  #allocation0 [shape = 'u32[]', space=smem, size = 0x4, offset = 0x4, fixed_abs, tag = 'smem constant byte address 0x4 - core index']
  #allocation1 [shape = 'u32[144,128]{1,0:T(1,128)}', space=vmem, size = 0x12000, scoped, tag = 'internal scratch']
  %s0 = inlined_call_operand.vmem [shape: f32[8,32], index: 0, kind: input, shape index: {}]
  %s1 = inlined_call_operand.vmem [shape: f32[8,64], index: 1, kind: input, shape index: {}]
  %s2 = inlined_call_operand.vmem [shape: f32[64,32], index: 2, kind: input, shape index: {}]
  %s3 = inlined_call_operand.vmem [shape: f32[1,32], index: 3, kind: input, shape index: {}]
  %s4 = inlined_call_operand.hbm [shape: f32[8,32], index: 4, kind: output, shape index: {}]
  %s5 = sld [smem:[#allocation0]]
  $region26: #{dual_forward.3} parent=0
    _
  %s7 = ssub.s32 1, %s5
  %s8 = scalar_select 0, %s7, %s5
  $region1: #{dual_forward.3} parent=0
    #allocation2 [shape = 'u8[4096]{0}', space=vmem, size = 0x1000, scoped, tag = 'output window, operand 0, single buffered']
    #allocation3 [shape = 's32[1]{0}', space=sflag, size = 0x4, scoped, tag = 'scoped memory for dual_forward.3']
    %9 = vsyncpa [#allocation3], 0
    // Predicated region
    $region2: #{dual_forward.3} parent=1 // pred_check
      _
    $region3: #{dual_forward.3} parent=1 // pred_check_branch
      %11 = sbr.rel (0) target = $region5
    $region4: #{dual_forward.3} parent=1 // pred_region
      _
    $region5: #{dual_forward.3} parent=1 // pred_fallthru
      _
    // Predicated region
    $region6: #{dual_forward.3} parent=1 // pred_check
      _
    $region7: #{dual_forward.3} parent=1 // pred_check_branch
      %13 = sbr.rel (0) target = $region9
    $region8: #{dual_forward.3} parent=1 // pred_region
      _
    $region9: #{dual_forward.3} parent=1 // pred_fallthru
      _
    // Predicated region
    $region10: #{dual_forward.3} parent=1 // pred_check
      _
    $region11: #{dual_forward.3} parent=1 // pred_check_branch
      %15 = sbr.rel (0) target = $region13
    $region12: #{dual_forward.3} parent=1 // pred_region
      _
    $region13: #{dual_forward.3} parent=1 // pred_fallthru
      _
    // Predicated region
    $region14: #{dual_forward.3} parent=1 // pred_check
      _
    $region15: #{dual_forward.3} parent=1 // pred_check_branch
      %17 = sbr.rel (0) target = $region17
    $region16: #{dual_forward.3} parent=1 // pred_region
      _
    $region17: #{dual_forward.3} parent=1 // pred_fallthru
      _
    %v19 = vld [vmem:[%s0] sm:$0xff]
    %v20 = vld [vmem:[%s1] sm:$0xff]
    %v21 = vpack.c.bf16 %v20, %v20
    %v22 = vld [vmem:[%s2] sm:$0xff]
    %v23 = vld [vmem:[%s2 + $0x8] sm:$0xff]
    %v24 = vld [vmem:[%s2 + $0x10] sm:$0xff]
    %v25 = vld [vmem:[%s2 + $0x18] sm:$0xff]
    %v26 = vld [vmem:[%s2 + $0x20] sm:$0xff]
    %v27 = vld [vmem:[%s2 + $0x28] sm:$0xff]
    %v28 = vld [vmem:[%s2 + $0x30] sm:$0xff]
    %v29 = vld [vmem:[%s2 + $0x38] sm:$0xff]
    %v30 = vpack.c.bf16 %v23, %v22
    %v31 = vpack.c.bf16 %v25, %v24
    %v32 = vpack.c.bf16 %v27, %v26
    %v33 = vpack.c.bf16 %v29, %v28
    %vm34 = vcmask 523264
    %v36 = vsel %vm34, %v21, 0
    %38 = vmatprep.subr.bf16.mxu0 0
    %39 = vmatpush1.bf16.msra.mxu0 0
    %40 = vmatprep.subr.bf16.mxu0 0
    %41 = vmatpush1.bf16.msra.mxu0 0
    %42 = vmatprep.subr.bf16.mxu0 0
    %43 = vmatpush1.bf16.msra.mxu0 0
    %44 = vmatprep.subr.bf16.mxu0 0
    %45 = vmatpush1.bf16.msra.mxu0 0
    %46 = vmatprep.subr.bf16.mxu0 0
    %47 = vmatpush1.bf16.msra.mxu0 %v33
    %48 = vmatprep.subr.bf16.mxu0 0
    %49 = vmatpush1.bf16.msra.mxu0 %v32
    %50 = vmatprep.subr.bf16.mxu0 0
    %51 = vmatpush1.bf16.msra.mxu0 %v31
    %52 = vmatprep.subr.bf16.mxu0 0
    %53 = vmatpush1.bf16.msra.mxu0 %v30
    %54 = vmatprep.subr.bf16.mxu0 0
    %55 = vmatpush2.bf16.msra.mxu0 0
    %56 = vmatprep.subr.bf16.mxu0 0
    %57 = vmatpush2.bf16.msra.mxu0 0
    %58 = vmatprep.subr.bf16.mxu0 0
    %59 = vmatpush2.bf16.msra.mxu0 0
    %60 = vmatprep.subr.bf16.mxu0 0
    %61 = vmatpush2.bf16.msra.mxu0 0
    %62 = vmatprep.subr.bf16.mxu0 0
    %63 = vmatpush2.bf16.msra.mxu0 0
    %64 = vmatprep.subr.bf16.mxu0 0
    %65 = vmatpush2.bf16.msra.mxu0 0
    %66 = vmatprep.subr.bf16.mxu0 0
    %67 = vmatpush2.bf16.msra.mxu0 0
    %68 = vmatprep.subr.bf16.mxu0 0
    %69 = vmatpush2.bf16.msra.mxu0 0
    %70 = vmatprep.mubr.bf16.mxu0 0
    %71 = vmatmul.mubr.bf16.gmra.mxu0 %v36
    %v72 = vpop.f32.mrf.mxu0
    %v73 = vadd.f32 0.0, %v72
    %v74 = vpop.f32.mrf.mxu0
    %v75 = vpop.f32.mrf.mxu0
    %v76 = vpop.f32.mrf.mxu0
    %77 = vdwg.mxu0
    %v78 = vadd.f32 %v19, %v73
    %v79 = vld [vmem:[%s3] sm:$0x1]
    %v81 = vlaneseq
    %v82 = vshrl.u32 %v81, 7
    %v83 = vsub.s32 0, %v82
    %v84 = vrot.slane %v79, %v83
    %v86 = vadd.f32 %v78, %v84
    %vm87 = vcmask 261120
    %88 = vst.msk [vmem:[#allocation2] sm:$0xff] %vm87, %v86
    // Predicated region
    $region18: #{dual_forward.3} parent=1 // pred_check
      _
    $region19: #{dual_forward.3} parent=1 // pred_check_branch
      %90 = sbr.rel (0) target = $region21
    $region20: #{dual_forward.3} parent=1 // pred_region
      %s92 = ssub.s32 128, 128
      %93 = vsyncadd [#allocation3], %s92
      %s95 = sshll.u32 [#allocation2], 4
      %s96 = int_to_ptr.vmem [resolvable:$true] %s95
      %98 = dma.vmem_to_hbm [thread:$0]  %s96, 128, %s4, [#allocation3]
    $region21: #{dual_forward.3} parent=1 // pred_fallthru
      _
    // Predicated region
    $region22: #{dual_forward.3} parent=1 // pred_check
      _
    $region23: #{dual_forward.3} parent=1 // pred_check_branch
      %100 = sbr.rel (0) target = $region25
    $region24: #{dual_forward.3} parent=1 // pred_region
      %101 = dma.done [#allocation3], 128
    $region25: #{dual_forward.3} parent=1 // pred_fallthru
      _
    %102 = vsyncpa [#allocation3], 1

// kernel: dual_forward.2
$region0: #{dual_forward.2}
  #allocation0 [shape = 'u32[]', space=smem, size = 0x4, offset = 0x4, fixed_abs, tag = 'smem constant byte address 0x4 - core index']
  #allocation1 [shape = 'u32[144,128]{1,0:T(1,128)}', space=vmem, size = 0x12000, scoped, tag = 'internal scratch']
  #allocation2 [shape = 'f32[64,128]{1,0:T(8,128)}', space=vmem, size = 0x8000, scoped, tag = 'scratch operand']
  #allocation3 [shape = 'f32[64,128]{1,0:T(8,128)}', space=vmem, size = 0x8000, scoped, tag = 'scratch operand']
  #allocation4 [shape = 'f32[64,32]{1,0:T(8,128)}', space=vmem, size = 0x8000, scoped, tag = 'scratch operand']
  #allocation5 [shape = 'f32[64,32]{1,0:T(8,128)}', space=vmem, size = 0x8000, scoped, tag = 'scratch operand']
  %s0 = inlined_call_operand.vmem [shape: f32[1,64,32], index: 0, kind: input, shape index: {}]
  %s1 = inlined_call_operand.vmem [shape: f32[1,64,1], index: 1, kind: input, shape index: {}]
  %s2 = inlined_call_operand.vmem [shape: f32[32,128], index: 2, kind: input, shape index: {}]
  %s3 = inlined_call_operand.vmem [shape: f32[32,128], index: 3, kind: input, shape index: {}]
  %s4 = inlined_call_operand.vmem [shape: f32[1,128], index: 4, kind: input, shape index: {}]
  %s5 = inlined_call_operand.vmem [shape: f32[32,128], index: 5, kind: input, shape index: {}]
  %s6 = inlined_call_operand.vmem [shape: f32[32,128], index: 6, kind: input, shape index: {}]
  %s7 = inlined_call_operand.vmem [shape: f32[1,128], index: 7, kind: input, shape index: {}]
  %s8 = inlined_call_operand.vmem [shape: f32[32,32], index: 8, kind: input, shape index: {}]
  %s9 = inlined_call_operand.vmem [shape: f32[32,32], index: 9, kind: input, shape index: {}]
  %s10 = inlined_call_operand.vmem [shape: f32[1,32], index: 10, kind: input, shape index: {}]
  %s11 = inlined_call_operand.vmem [shape: f32[24,64], index: 11, kind: input, shape index: {}]
  %s12 = inlined_call_operand.vmem [shape: f32[24,1], index: 12, kind: input, shape index: {}]
  %s13 = inlined_call_operand.vmem [shape: f32[32,32], index: 13, kind: input, shape index: {}]
  %s14 = inlined_call_operand.vmem [shape: f32[1,32], index: 14, kind: input, shape index: {}]
  %s15 = inlined_call_operand.vmem [shape: f32[24,32], index: 15, kind: output, shape index: {}]
  %s16 = sld [smem:[#allocation0]]
  $region70: #{dual_forward.2} parent=0
    _
  %s18 = ssub.s32 1, %s16
  %s19 = scalar_select 0, %s18, %s16
  // Predicated region
  $region2: #{dual_forward.2} parent=0 // pred_check
    _
  $region3: #{dual_forward.2} parent=0 // pred_check_branch
    %21 = sbr.rel (0) target = $region5
  $region4: #{dual_forward.2} parent=0 // pred_region
    _
  $region5: #{dual_forward.2} parent=0 // pred_fallthru
    _
  // Predicated region
  $region6: #{dual_forward.2} parent=0 // pred_check
    _
  $region7: #{dual_forward.2} parent=0 // pred_check_branch
    %23 = sbr.rel (0) target = $region9
  $region8: #{dual_forward.2} parent=0 // pred_region
    _
  $region9: #{dual_forward.2} parent=0 // pred_fallthru
    _
  // Predicated region
  $region10: #{dual_forward.2} parent=0 // pred_check
    _
  $region11: #{dual_forward.2} parent=0 // pred_check_branch
    %25 = sbr.rel (0) target = $region13
  $region12: #{dual_forward.2} parent=0 // pred_region
    _
  $region13: #{dual_forward.2} parent=0 // pred_fallthru
    _
  // Predicated region
  $region14: #{dual_forward.2} parent=0 // pred_check
    _
  $region15: #{dual_forward.2} parent=0 // pred_check_branch
    %27 = sbr.rel (0) target = $region17
  $region16: #{dual_forward.2} parent=0 // pred_region
    _
  $region17: #{dual_forward.2} parent=0 // pred_fallthru
    _
  // Predicated region
  $region18: #{dual_forward.2} parent=0 // pred_check
    _
  $region19: #{dual_forward.2} parent=0 // pred_check_branch
    %29 = sbr.rel (0) target = $region21
  $region20: #{dual_forward.2} parent=0 // pred_region
    _
  $region21: #{dual_forward.2} parent=0 // pred_fallthru
    _
  // Predicated region
  $region22: #{dual_forward.2} parent=0 // pred_check
    _
  $region23: #{dual_forward.2} parent=0 // pred_check_branch
    %31 = sbr.rel (0) target = $region25
  $region24: #{dual_forward.2} parent=0 // pred_region
    _
  $region25: #{dual_forward.2} parent=0 // pred_fallthru
    _
  // Predicated region
  $region26: #{dual_forward.2} parent=0 // pred_check
    _
  $region27: #{dual_forward.2} parent=0 // pred_check_branch
    %33 = sbr.rel (0) target = $region29
  $region28: #{dual_forward.2} parent=0 // pred_region
    _
  $region29: #{dual_forward.2} parent=0 // pred_fallthru
    _
  // Predicated region
  $region30: #{dual_forward.2} parent=0 // pred_check
    _
  $region31: #{dual_forward.2} parent=0 // pred_check_branch
    %35 = sbr.rel (0) target = $region33
  $region32: #{dual_forward.2} parent=0 // pred_region
    _
  $region33: #{dual_forward.2} parent=0 // pred_fallthru
    _
  // Predicated region
  $region34: #{dual_forward.2} parent=0 // pred_check
    _
  $region35: #{dual_forward.2} parent=0 // pred_check_branch
    %37 = sbr.rel (0) target = $region37
  $region36: #{dual_forward.2} parent=0 // pred_region
    _
  $region37: #{dual_forward.2} parent=0 // pred_fallthru
    _
  // Predicated region
  $region38: #{dual_forward.2} parent=0 // pred_check
    _
  $region39: #{dual_forward.2} parent=0 // pred_check_branch
    %39 = sbr.rel (0) target = $region41
  $region40: #{dual_forward.2} parent=0 // pred_region
    _
  $region41: #{dual_forward.2} parent=0 // pred_fallthru
    _
  // Predicated region
  $region42: #{dual_forward.2} parent=0 // pred_check
    _
  $region43: #{dual_forward.2} parent=0 // pred_check_branch
    %41 = sbr.rel (0) target = $region45
  $region44: #{dual_forward.2} parent=0 // pred_region
    _
  $region45: #{dual_forward.2} parent=0 // pred_fallthru
    _
  // Predicated region
  $region46: #{dual_forward.2} parent=0 // pred_check
    _
  $region47: #{dual_forward.2} parent=0 // pred_check_branch
    %43 = sbr.rel (0) target = $region49
  $region48: #{dual_forward.2} parent=0 // pred_region
    _
  $region49: #{dual_forward.2} parent=0 // pred_fallthru
    _
  // Predicated region
  $region50: #{dual_forward.2} parent=0 // pred_check
    _
  $region51: #{dual_forward.2} parent=0 // pred_check_branch
    %45 = sbr.rel (0) target = $region53
  $region52: #{dual_forward.2} parent=0 // pred_region
    _
  $region53: #{dual_forward.2} parent=0 // pred_fallthru
    _
  // Predicated region
  $region54: #{dual_forward.2} parent=0 // pred_check
    _
  $region55: #{dual_forward.2} parent=0 // pred_check_branch
    %47 = sbr.rel (0) target = $region57
  $region56: #{dual_forward.2} parent=0 // pred_region
    _
  $region57: #{dual_forward.2} parent=0 // pred_fallthru
    _
  // Predicated region
  $region58: #{dual_forward.2} parent=0 // pred_check
    _
  $region59: #{dual_forward.2} parent=0 // pred_check_branch
    %49 = sbr.rel (0) target = $region61
  $region60: #{dual_forward.2} parent=0 // pred_region
    _
  $region61: #{dual_forward.2} parent=0 // pred_fallthru
    _
  %v51 = vld [vmem:[%s0] sm:$0xff]
  %v52 = vld [vmem:[%s0 + $0x8] sm:$0xff]
  %v53 = vld [vmem:[%s0 + $0x10] sm:$0xff]
  %v54 = vld [vmem:[%s0 + $0x18] sm:$0xff]
  %v55 = vld [vmem:[%s0 + $0x20] sm:$0xff]
  %v56 = vld [vmem:[%s0 + $0x28] sm:$0xff]
  %v57 = vld [vmem:[%s0 + $0x30] sm:$0xff]
  %v58 = vld [vmem:[%s0 + $0x38] sm:$0xff]
  %v59 = vpack.c.bf16 %v52, %v51
  %v60 = vpack.c.bf16 %v54, %v53
  %v61 = vpack.c.bf16 %v56, %v55
  %v62 = vpack.c.bf16 %v58, %v57
  %v63 = vld [vmem:[%s2] sm:$0xff]
  %v64 = vld [vmem:[%s2 + $0x8] sm:$0xff]
  %v65 = vld [vmem:[%s2 + $0x10] sm:$0xff]
  %v66 = vld [vmem:[%s2 + $0x18] sm:$0xff]
  %v67 = vpack.c.bf16 %v64, %v63
  %v68 = vpack.c.bf16 %v66, %v65
  %v69 = vld [vmem:[%s4] sm:$0x1]
  %v71 = vlaneseq
  %v72 = vshrl.u32 %v71, 7
  %v73 = vsub.s32 0, %v72
  %v74 = vrot.slane %v69, %v73
  %vm76 = vcmask 261120
  %v78 = vsel %vm76, %v59, 0
  %v81 = vsel %vm76, %v60, 0
  %v84 = vsel %vm76, %v61, 0
  %v87 = vsel %vm76, %v62, 0
  %89 = vmatprep.subr.bf16.mxu0 0
  %90 = vmatpush1.bf16.msra.mxu0 0
  %91 = vmatprep.subr.bf16.mxu0 0
  %92 = vmatpush1.bf16.msra.mxu0 0
  %93 = vmatprep.subr.bf16.mxu0 0
  %94 = vmatpush1.bf16.msra.mxu0 0
  %95 = vmatprep.subr.bf16.mxu0 0
  %96 = vmatpush1.bf16.msra.mxu0 0
  %97 = vmatprep.subr.bf16.mxu0 0
  %98 = vmatpush1.bf16.msra.mxu0 0
  %99 = vmatprep.subr.bf16.mxu0 0
  %100 = vmatpush1.bf16.msra.mxu0 0
  %101 = vmatprep.subr.bf16.mxu0 0
  %102 = vmatpush1.bf16.msra.mxu0 %v68
  %103 = vmatprep.subr.bf16.mxu0 0
  %104 = vmatpush1.bf16.msra.mxu0 %v67
  %105 = vmatprep.subr.bf16.mxu0 0
  %106 = vmatpush2.bf16.msra.mxu0 0
  %107 = vmatprep.subr.bf16.mxu0 0
  %108 = vmatpush2.bf16.msra.mxu0 0
  %109 = vmatprep.subr.bf16.mxu0 0
  %110 = vmatpush2.bf16.msra.mxu0 0
  %111 = vmatprep.subr.bf16.mxu0 0
  %112 = vmatpush2.bf16.msra.mxu0 0
  %113 = vmatprep.subr.bf16.mxu0 0
  %114 = vmatpush2.bf16.msra.mxu0 0
  %115 = vmatprep.subr.bf16.mxu0 0
  %116 = vmatpush2.bf16.msra.mxu0 0
  %117 = vmatprep.subr.bf16.mxu0 0
  %118 = vmatpush2.bf16.msra.mxu0 0
  %119 = vmatprep.subr.bf16.mxu0 0
  %120 = vmatpush2.bf16.msra.mxu0 0
  %121 = vmatprep.mubr.bf16.mxu0 0
  %122 = vmatmul.mubr.bf16.gmra.mxu0 %v78
  %v123 = vpop.f32.mrf.mxu0
  %v124 = vadd.f32 %v74, %v123
  %v125 = vpop.f32.mrf.mxu0
  %v126 = vpop.f32.mrf.mxu0
  %v127 = vadd.f32 %v74, %v126
  %v128 = vpop.f32.mrf.mxu0
  %129 = vmatprep.mubr.bf16.mxu0 0
  %130 = vmatmul.mubr.bf16.gmra.mxu0 %v81
  %v131 = vpop.f32.mrf.mxu0
  %v132 = vadd.f32 %v74, %v131
  %v133 = vpop.f32.mrf.mxu0
  %v134 = vpop.f32.mrf.mxu0
  %v135 = vadd.f32 %v74, %v134
  %v136 = vpop.f32.mrf.mxu0
  %137 = vmatprep.mubr.bf16.mxu0 0
  %138 = vmatmul.mubr.bf16.gmra.mxu0 %v84
  %v139 = vpop.f32.mrf.mxu0
  %v140 = vadd.f32 %v74, %v139
  %v141 = vpop.f32.mrf.mxu0
  %v142 = vpop.f32.mrf.mxu0
  %v143 = vadd.f32 %v74, %v142
  %v144 = vpop.f32.mrf.mxu0
  %145 = vmatprep.mubr.bf16.mxu0 0
  %146 = vmatmul.mubr.bf16.gmra.mxu0 %v87
  %v147 = vpop.f32.mrf.mxu0
  %v148 = vadd.f32 %v74, %v147
  %v149 = vpop.f32.mrf.mxu0
  %v150 = vpop.f32.mrf.mxu0
  %v151 = vadd.f32 %v74, %v150
  %v152 = vpop.f32.mrf.mxu0
  %153 = vdwg.mxu0
  %154 = vst [vmem:[#allocation2] sm:$0xff] %v124
  %155 = vst [vmem:[#allocation2 + $0x8] sm:$0xff] %v127
  %156 = vst [vmem:[#allocation2 + $0x10] sm:$0xff] %v132
  %157 = vst [vmem:[#allocation2 + $0x18] sm:$0xff] %v135
  %158 = vst [vmem:[#allocation2 + $0x20] sm:$0xff] %v140
  %159 = vst [vmem:[#allocation2 + $0x28] sm:$0xff] %v143
  %160 = vst [vmem:[#allocation2 + $0x30] sm:$0xff] %v148
  %161 = vst [vmem:[#allocation2 + $0x38] sm:$0xff] %v151
  %v162 = vld [vmem:[%s5] sm:$0xff]
  %v163 = vld [vmem:[%s5 + $0x8] sm:$0xff]
  %v164 = vld [vmem:[%s5 + $0x10] sm:$0xff]
  %v165 = vld [vmem:[%s5 + $0x18] sm:$0xff]
  %v166 = vpack.c.bf16 %v163, %v162
  %v167 = vpack.c.bf16 %v165, %v164
  %v168 = vld [vmem:[%s7] sm:$0x1]
  %v170 = vlaneseq
  %v171 = vshrl.u32 %v170, 7
  %v172 = vsub.s32 0, %v171
  %v173 = vrot.slane %v168, %v172
  %175 = vmatprep.subr.bf16.mxu0 0
  %176 = vmatpush1.bf16.msra.mxu0 0
  %177 = vmatprep.subr.bf16.mxu0 0
  %178 = vmatpush1.bf16.msra.mxu0 0
  %179 = vmatprep.subr.bf16.mxu0 0
  %180 = vmatpush1.bf16.msra.mxu0 0
  %181 = vmatprep.subr.bf16.mxu0 0
  %182 = vmatpush1.bf16.msra.mxu0 0
  %183 = vmatprep.subr.bf16.mxu0 0
  %184 = vmatpush1.bf16.msra.mxu0 0
  %185 = vmatprep.subr.bf16.mxu0 0
  %186 = vmatpush1.bf16.msra.mxu0 0
  %187 = vmatprep.subr.bf16.mxu0 0
  %188 = vmatpush1.bf16.msra.mxu0 %v167
  %189 = vmatprep.subr.bf16.mxu0 0
  %190 = vmatpush1.bf16.msra.mxu0 %v166
  %191 = vmatprep.subr.bf16.mxu0 0
  %192 = vmatpush2.bf16.msra.mxu0 0
  %193 = vmatprep.subr.bf16.mxu0 0
  %194 = vmatpush2.bf16.msra.mxu0 0
  %195 = vmatprep.subr.bf16.mxu0 0
  %196 = vmatpush2.bf16.msra.mxu0 0
  %197 = vmatprep.subr.bf16.mxu0 0
  %198 = vmatpush2.bf16.msra.mxu0 0
  %199 = vmatprep.subr.bf16.mxu0 0
  %200 = vmatpush2.bf16.msra.mxu0 0
  %201 = vmatprep.subr.bf16.mxu0 0
  %202 = vmatpush2.bf16.msra.mxu0 0
  %203 = vmatprep.subr.bf16.mxu0 0
  %204 = vmatpush2.bf16.msra.mxu0 0
  %205 = vmatprep.subr.bf16.mxu0 0
  %206 = vmatpush2.bf16.msra.mxu0 0
  %207 = vmatprep.mubr.bf16.mxu0 0
  %208 = vmatmul.mubr.bf16.gmra.mxu0 %v78
  %v209 = vpop.f32.mrf.mxu0
  %v210 = vadd.f32 %v173, %v209
  %v211 = vpop.f32.mrf.mxu0
  %v212 = vpop.f32.mrf.mxu0
  %v213 = vadd.f32 %v173, %v212
  %v214 = vpop.f32.mrf.mxu0
  %215 = vmatprep.mubr.bf16.mxu0 0
  %216 = vmatmul.mubr.bf16.gmra.mxu0 %v81
  %v217 = vpop.f32.mrf.mxu0
  %v218 = vadd.f32 %v173, %v217
  %v219 = vpop.f32.mrf.mxu0
  %v220 = vpop.f32.mrf.mxu0
  %v221 = vadd.f32 %v173, %v220
  %v222 = vpop.f32.mrf.mxu0
  %223 = vmatprep.mubr.bf16.mxu0 0
  %224 = vmatmul.mubr.bf16.gmra.mxu0 %v84
  %v225 = vpop.f32.mrf.mxu0
  %v226 = vadd.f32 %v173, %v225
  %v227 = vpop.f32.mrf.mxu0
  %v228 = vpop.f32.mrf.mxu0
  %v229 = vadd.f32 %v173, %v228
  %v230 = vpop.f32.mrf.mxu0
  %231 = vmatprep.mubr.bf16.mxu0 0
  %232 = vmatmul.mubr.bf16.gmra.mxu0 %v87
  %v233 = vpop.f32.mrf.mxu0
  %v234 = vadd.f32 %v173, %v233
  %v235 = vpop.f32.mrf.mxu0
  %v236 = vpop.f32.mrf.mxu0
  %v237 = vadd.f32 %v173, %v236
  %v238 = vpop.f32.mrf.mxu0
  %239 = vdwg.mxu0
  %240 = vst [vmem:[#allocation3] sm:$0xff] %v210
  %241 = vst [vmem:[#allocation3 + $0x8] sm:$0xff] %v213
  %242 = vst [vmem:[#allocation3 + $0x10] sm:$0xff] %v218
  %243 = vst [vmem:[#allocation3 + $0x18] sm:$0xff] %v221
  %244 = vst [vmem:[#allocation3 + $0x20] sm:$0xff] %v226
  %245 = vst [vmem:[#allocation3 + $0x28] sm:$0xff] %v229
  %246 = vst [vmem:[#allocation3 + $0x30] sm:$0xff] %v234
  %247 = vst [vmem:[#allocation3 + $0x38] sm:$0xff] %v237
  %v248 = vld [vmem:[%s3] sm:$0xff]
  %v249 = vld [vmem:[%s3 + $0x8] sm:$0xff]
  %v250 = vld [vmem:[%s3 + $0x10] sm:$0xff]
  %v251 = vld [vmem:[%s3 + $0x18] sm:$0xff]
  %v252 = vpack.c.bf16 %v249, %v248
  %v253 = vpack.c.bf16 %v251, %v250
  %v254 = vld [vmem:[%s6] sm:$0xff]
  %v255 = vld [vmem:[%s6 + $0x8] sm:$0xff]
  %v256 = vld [vmem:[%s6 + $0x10] sm:$0xff]
  %v257 = vld [vmem:[%s6 + $0x18] sm:$0xff]
  %v258 = vpack.c.bf16 %v255, %v254
  %v259 = vpack.c.bf16 %v257, %v256
  %v260 = vld [vmem:[#allocation2] sm:$0xff]
  %v262 = vsel %vm76, 0, 0
  %264 = vmatprep.subr.bf16.mxu0 0
  %265 = vmatpush1.bf16.msra.mxu0 0
  %266 = vmatprep.subr.bf16.mxu0 0
  %267 = vmatpush1.bf16.msra.mxu0 0
  %268 = vmatprep.subr.bf16.mxu0 0
  %269 = vmatpush1.bf16.msra.mxu0 0
  %270 = vmatprep.subr.bf16.mxu0 0
  %271 = vmatpush1.bf16.msra.mxu0 0
  %272 = vmatprep.subr.bf16.mxu0 0
  %273 = vmatpush1.bf16.msra.mxu0 0
  %274 = vmatprep.subr.bf16.mxu0 0
  %275 = vmatpush1.bf16.msra.mxu0 0
  %276 = vmatprep.subr.bf16.mxu0 0
  %277 = vmatpush1.bf16.msra.mxu0 %v253
  %278 = vmatprep.subr.bf16.mxu0 0
  %279 = vmatpush1.bf16.msra.mxu0 %v252
  %280 = vmatprep.subr.bf16.mxu0 0
  %281 = vmatpush2.bf16.msra.mxu0 0
  %282 = vmatprep.subr.bf16.mxu0 0
  %283 = vmatpush2.bf16.msra.mxu0 0
  %284 = vmatprep.subr.bf16.mxu0 0
  %285 = vmatpush2.bf16.msra.mxu0 0
  %286 = vmatprep.subr.bf16.mxu0 0
  %287 = vmatpush2.bf16.msra.mxu0 0
  %288 = vmatprep.subr.bf16.mxu0 0
  %289 = vmatpush2.bf16.msra.mxu0 0
  %290 = vmatprep.subr.bf16.mxu0 0
  %291 = vmatpush2.bf16.msra.mxu0 0
  %292 = vmatprep.subr.bf16.mxu0 0
  %293 = vmatpush2.bf16.msra.mxu0 0
  %294 = vmatprep.subr.bf16.mxu0 0
  %295 = vmatpush2.bf16.msra.mxu0 0
  %296 = vmatprep.mubr.bf16.mxu0 0
  %297 = vmatmul.mubr.bf16.gmra.mxu0 %v262
  %v298 = vpop.f32.mrf.mxu0
  %v299 = vadd.f32 0.0, %v298
  %v300 = vpop.f32.mrf.mxu0
  %v301 = vpop.f32.mrf.mxu0
  %v302 = vpop.f32.mrf.mxu0
  %303 = vdwg.mxu0
  %v304 = vadd.f32 %v260, %v299
  %v305 = vxor.u32 %v304, 2147483648
  %v306 = vmul.f32 %v305, 1.442695
  %v307 = vpow.pop %v306
  %v308 = vadd.f32 %v307, 1.0
  %v309 = vrcp.pop %v308
  %v310 = vmul.f32 1.0, %v309
  %v311 = vtanh.pop %v304
  %v312 = vmul.f32 %v310, 0.0
  %314 = vrot.lane.b32.xlu0 %v311, 32
  %v315 = vpop.permute.xlu0 %314
  %v317 = vmul.f32 %v310, %v315
  %319 = vrot.lane.b32.xlu0 %v317, 32
  %v320 = vpop.permute.xlu0 %319
  %v322 = vadd.f32 %v312, %v320
  %v323 = vtanh.pop %v322
  %325 = vrot.lane.b32.xlu0 %v323, 32
  %v326 = vpop.permute.xlu0 %325
  %v328 = vmul.f32 %v310, %v326
  %v329 = vld [vmem:[%s1] sm:$0xff]
  %331 = vset.pattern.permute.xlu0 0
  %332 = vperm.xlu0 %331, %v329
  %v333 = vpop.permute.xlu0 %332
  %v335 = vmul.f32 %v328, %v333
  %337 = vrot.lane.b32.xlu0 %v335, 64
  %v338 = vpop.permute.xlu0 %337
  %340 = vst.msk [vmem:[#allocation4] sm:$0xff] %vm76, %v338
  %v341 = vmul.f32 %v322, %v333
  %s342 = scalar_lea.vmem [#allocation2], 8
  %v343 = vld [vmem:[%s342] sm:$0xff]
  %v344 = vpack.c.bf16 %v335, %v335
  %346 = vrot.lane.b32.xlu0 %v344, 64
  %v347 = vpop.permute.xlu0 %346
  %v349 = vsel %vm76, %v347, 0
  %351 = vmatprep.subr.bf16.mxu0 0
  %352 = vmatpush1.bf16.msra.mxu0 0
  %353 = vmatprep.subr.bf16.mxu0 0
  %354 = vmatpush1.bf16.msra.mxu0 0
  %355 = vmatprep.subr.bf16.mxu0 0
  %356 = vmatpush1.bf16.msra.mxu0 0
  %357 = vmatprep.subr.bf16.mxu0 0
  %358 = vmatpush1.bf16.msra.mxu0 0
  %359 = vmatprep.subr.bf16.mxu0 0
  %360 = vmatpush1.bf16.msra.mxu0 0
  %361 = vmatprep.subr.bf16.mxu0 0
  %362 = vmatpush1.bf16.msra.mxu0 0
  %363 = vmatprep.subr.bf16.mxu0 0
  %364 = vmatpush1.bf16.msra.mxu0 %v253
  %365 = vmatprep.subr.bf16.mxu0 0
  %366 = vmatpush1.bf16.msra.mxu0 %v252
  %367 = vmatprep.subr.bf16.mxu0 0
  %368 = vmatpush2.bf16.msra.mxu0 0
  %369 = vmatprep.subr.bf16.mxu0 0
  %370 = vmatpush2.bf16.msra.mxu0 0
  %371 = vmatprep.subr.bf16.mxu0 0
  %372 = vmatpush2.bf16.msra.mxu0 0
  %373 = vmatprep.subr.bf16.mxu0 0
  %374 = vmatpush2.bf16.msra.mxu0 0
  %375 = vmatprep.subr.bf16.mxu0 0
  %376 = vmatpush2.bf16.msra.mxu0 0
  %377 = vmatprep.subr.bf16.mxu0 0
  %378 = vmatpush2.bf16.msra.mxu0 0
  %379 = vmatprep.subr.bf16.mxu0 0
  %380 = vmatpush2.bf16.msra.mxu0 0
  %381 = vmatprep.subr.bf16.mxu0 0
  %382 = vmatpush2.bf16.msra.mxu0 0
  %383 = vmatprep.mubr.bf16.mxu0 0
  %384 = vmatmul.mubr.bf16.gmra.mxu0 %v349
  %v385 = vpop.f32.mrf.mxu0
  %v386 = vadd.f32 0.0, %v385
  %v387 = vpop.f32.mrf.mxu0
  %v388 = vpop.f32.mrf.mxu0
  %v389 = vpop.f32.mrf.mxu0
  %390 = vdwg.mxu0
  %v391 = vadd.f32 %v343, %v386
  %v392 = vxor.u32 %v391, 2147483648
  %v393 = vmul.f32 %v392, 1.442695
  %v394 = vpow.pop %v393
  %v395 = vadd.f32 %v394, 1.0
  %v396 = vrcp.pop %v395
  %v397 = vmul.f32 1.0, %v396
  %v398 = vtanh.pop %v391
  %v399 = vmul.f32 %v397, %v341
  %401 = vrot.lane.b32.xlu0 %v398, 32
  %v402 = vpop.permute.xlu0 %401
  %v404 = vmul.f32 %v397, %v402
  %406 = vrot.lane.b32.xlu0 %v404, 32
  %v407 = vpop.permute.xlu0 %406
  %v409 = vadd.f32 %v399, %v407
  %v410 = vtanh.pop %v409
  %412 = vrot.lane.b32.xlu0 %v410, 32
  %v413 = vpop.permute.xlu0 %412
  %v415 = vmul.f32 %v397, %v413
  %s416 = scalar_lea.vmem %s1, 8
  %v417 = vld [vmem:[%s416] sm:$0xff]
  %419 = vset.pattern.permute.xlu0 0
  %420 = vperm.xlu0 %419, %v417
  %v421 = vpop.permute.xlu0 %420
  %v423 = vmul.f32 %v415, %v421
  %425 = vrot.lane.b32.xlu0 %v423, 64
  %v426 = vpop.permute.xlu0 %425
  %s428 = scalar_lea.vmem [#allocation4], 8
  %429 = vst.msk [vmem:[%s428] sm:$0xff] %vm76, %v426
  %v430 = vmul.f32 %v409, %v421
  %s431 = scalar_lea.vmem [#allocation2], 16
  %v432 = vld [vmem:[%s431] sm:$0xff]
  %v433 = vpack.c.bf16 %v423, %v423
  %435 = vrot.lane.b32.xlu0 %v433, 64
  %v436 = vpop.permute.xlu0 %435
  %v438 = vsel %vm76, %v436, 0
  %440 = vmatprep.subr.bf16.mxu0 0
  %441 = vmatpush1.bf16.msra.mxu0 0
  %442 = vmatprep.subr.bf16.mxu0 0
  %443 = vmatpush1.bf16.msra.mxu0 0
  %444 = vmatprep.subr.bf16.mxu0 0
  %445 = vmatpush1.bf16.msra.mxu0 0
  %446 = vmatprep.subr.bf16.mxu0 0
  %447 = vmatpush1.bf16.msra.mxu0 0
  %448 = vmatprep.subr.bf16.mxu0 0
  %449 = vmatpush1.bf16.msra.mxu0 0
  %450 = vmatprep.subr.bf16.mxu0 0
  %451 = vmatpush1.bf16.msra.mxu0 0
  %452 = vmatprep.subr.bf16.mxu0 0
  %453 = vmatpush1.bf16.msra.mxu0 %v253
  %454 = vmatprep.subr.bf16.mxu0 0
  %455 = vmatpush1.bf16.msra.mxu0 %v252
  %456 = vmatprep.subr.bf16.mxu0 0
  %457 = vmatpush2.bf16.msra.mxu0 0
  %458 = vmatprep.subr.bf16.mxu0 0
  %459 = vmatpush2.bf16.msra.mxu0 0
  %460 = vmatprep.subr.bf16.mxu0 0
  %461 = vmatpush2.bf16.msra.mxu0 0
  %462 = vmatprep.subr.bf16.mxu0 0
  %463 = vmatpush2.bf16.msra.mxu0 0
  %464 = vmatprep.subr.bf16.mxu0 0
  %465 = vmatpush2.bf16.msra.mxu0 0
  %466 = vmatprep.subr.bf16.mxu0 0
  %467 = vmatpush2.bf16.msra.mxu0 0
  %468 = vmatprep.subr.bf16.mxu0 0
  %469 = vmatpush2.bf16.msra.mxu0 0
  %470 = vmatprep.subr.bf16.mxu0 0
  %471 = vmatpush2.bf16.msra.mxu0 0
  %472 = vmatprep.mubr.bf16.mxu0 0
  %473 = vmatmul.mubr.bf16.gmra.mxu0 %v438
  %v474 = vpop.f32.mrf.mxu0
  %v475 = vadd.f32 0.0, %v474
  %v476 = vpop.f32.mrf.mxu0
  %v477 = vpop.f32.mrf.mxu0
  %v478 = vpop.f32.mrf.mxu0
  %479 = vdwg.mxu0
  %v480 = vadd.f32 %v432, %v475
  %v481 = vxor.u32 %v480, 2147483648
  %v482 = vmul.f32 %v481, 1.442695
  %v483 = vpow.pop %v482
  %v484 = vadd.f32 %v483, 1.0
  %v485 = vrcp.pop %v484
  %v486 = vmul.f32 1.0, %v485
  %v487 = vtanh.pop %v480
  %v488 = vmul.f32 %v486, %v430
  %490 = vrot.lane.b32.xlu0 %v487, 32
  %v491 = vpop.permute.xlu0 %490
  %v493 = vmul.f32 %v486, %v491
  %495 = vrot.lane.b32.xlu0 %v493, 32
  %v496 = vpop.permute.xlu0 %495
  %v498 = vadd.f32 %v488, %v496
  %v499 = vtanh.pop %v498
  %501 = vrot.lane.b32.xlu0 %v499, 32
  %v502 = vpop.permute.xlu0 %501
  %v504 = vmul.f32 %v486, %v502
  %s505 = scalar_lea.vmem %s1, 16
  %v506 = vld [vmem:[%s505] sm:$0xff]
  %508 = vset.pattern.permute.xlu0 0
  %509 = vperm.xlu0 %508, %v506
  %v510 = vpop.permute.xlu0 %509
  %v512 = vmul.f32 %v504, %v510
  %514 = vrot.lane.b32.xlu0 %v512, 64
  %v515 = vpop.permute.xlu0 %514
  %s517 = scalar_lea.vmem [#allocation4], 16
  %518 = vst.msk [vmem:[%s517] sm:$0xff] %vm76, %v515
  %v519 = vmul.f32 %v498, %v510
  %s520 = scalar_lea.vmem [#allocation2], 24
  %v521 = vld [vmem:[%s520] sm:$0xff]
  %v522 = vpack.c.bf16 %v512, %v512
  %524 = vrot.lane.b32.xlu0 %v522, 64
  %v525 = vpop.permute.xlu0 %524
  %v527 = vsel %vm76, %v525, 0
  %529 = vmatprep.subr.bf16.mxu0 0
  %530 = vmatpush1.bf16.msra.mxu0 0
  %531 = vmatprep.subr.bf16.mxu0 0
  %532 = vmatpush1.bf16.msra.mxu0 0
  %533 = vmatprep.subr.bf16.mxu0 0
  %534 = vmatpush1.bf16.msra.mxu0 0
  %535 = vmatprep.subr.bf16.mxu0 0
  %536 = vmatpush1.bf16.msra.mxu0 0
  %537 = vmatprep.subr.bf16.mxu0 0
  %538 = vmatpush1.bf16.msra.mxu0 0
  %539 = vmatprep.subr.bf16.mxu0 0
  %540 = vmatpush1.bf16.msra.mxu0 0
  %541 = vmatprep.subr.bf16.mxu0 0
  %542 = vmatpush1.bf16.msra.mxu0 %v253
  %543 = vmatprep.subr.bf16.mxu0 0
  %544 = vmatpush1.bf16.msra.mxu0 %v252
  %545 = vmatprep.subr.bf16.mxu0 0
  %546 = vmatpush2.bf16.msra.mxu0 0
  %547 = vmatprep.subr.bf16.mxu0 0
  %548 = vmatpush2.bf16.msra.mxu0 0
  %549 = vmatprep.subr.bf16.mxu0 0
  %550 = vmatpush2.bf16.msra.mxu0 0
  %551 = vmatprep.subr.bf16.mxu0 0
  %552 = vmatpush2.bf16.msra.mxu0 0
  %553 = vmatprep.subr.bf16.mxu0 0
  %554 = vmatpush2.bf16.msra.mxu0 0
  %555 = vmatprep.subr.bf16.mxu0 0
  %556 = vmatpush2.bf16.msra.mxu0 0
  %557 = vmatprep.subr.bf16.mxu0 0
  %558 = vmatpush2.bf16.msra.mxu0 0
  %559 = vmatprep.subr.bf16.mxu0 0
  %560 = vmatpush2.bf16.msra.mxu0 0
  %561 = vmatprep.mubr.bf16.mxu0 0
  %562 = vmatmul.mubr.bf16.gmra.mxu0 %v527
  %v563 = vpop.f32.mrf.mxu0
  %v564 = vadd.f32 0.0, %v563
  %v565 = vpop.f32.mrf.mxu0
  %v566 = vpop.f32.mrf.mxu0
  %v567 = vpop.f32.mrf.mxu0
  %568 = vdwg.mxu0
  %v569 = vadd.f32 %v521, %v564
  %v570 = vxor.u32 %v569, 2147483648
  %v571 = vmul.f32 %v570, 1.442695
  %v572 = vpow.pop %v571
  %v573 = vadd.f32 %v572, 1.0
  %v574 = vrcp.pop %v573
  %v575 = vmul.f32 1.0, %v574
  %v576 = vtanh.pop %v569
  %v577 = vmul.f32 %v575, %v519
  %579 = vrot.lane.b32.xlu0 %v576, 32
  %v580 = vpop.permute.xlu0 %579
  %v582 = vmul.f32 %v575, %v580
  %584 = vrot.lane.b32.xlu0 %v582, 32
  %v585 = vpop.permute.xlu0 %584
  %v587 = vadd.f32 %v577, %v585
  %v588 = vtanh.pop %v587
  %590 = vrot.lane.b32.xlu0 %v588, 32
  %v591 = vpop.permute.xlu0 %590
  %v593 = vmul.f32 %v575, %v591
  %s594 = scalar_lea.vmem %s1, 24
  %v595 = vld [vmem:[%s594] sm:$0xff]
  %597 = vset.pattern.permute.xlu0 0
  %598 = vperm.xlu0 %597, %v595
  %v599 = vpop.permute.xlu0 %598
  %v601 = vmul.f32 %v593, %v599
  %603 = vrot.lane.b32.xlu0 %v601, 64
  %v604 = vpop.permute.xlu0 %603
  %s606 = scalar_lea.vmem [#allocation4], 24
  %607 = vst.msk [vmem:[%s606] sm:$0xff] %vm76, %v604
  %v608 = vmul.f32 %v587, %v599
  %s609 = scalar_lea.vmem [#allocation2], 32
  %v610 = vld [vmem:[%s609] sm:$0xff]
  %v611 = vpack.c.bf16 %v601, %v601
  %613 = vrot.lane.b32.xlu0 %v611, 64
  %v614 = vpop.permute.xlu0 %613
  %v616 = vsel %vm76, %v614, 0
  %618 = vmatprep.subr.bf16.mxu0 0
  %619 = vmatpush1.bf16.msra.mxu0 0
  %620 = vmatprep.subr.bf16.mxu0 0
  %621 = vmatpush1.bf16.msra.mxu0 0
  %622 = vmatprep.subr.bf16.mxu0 0
  %623 = vmatpush1.bf16.msra.mxu0 0
  %624 = vmatprep.subr.bf16.mxu0 0
  %625 = vmatpush1.bf16.msra.mxu0 0
  %626 = vmatprep.subr.bf16.mxu0 0
  %627 = vmatpush1.bf16.msra.mxu0 0
  %628 = vmatprep.subr.bf16.mxu0 0
  %629 = vmatpush1.bf16.msra.mxu0 0
  %630 = vmatprep.subr.bf16.mxu0 0
  %631 = vmatpush1.bf16.msra.mxu0 %v253
  %632 = vmatprep.subr.bf16.mxu0 0
  %633 = vmatpush1.bf16.msra.mxu0 %v252
  %634 = vmatprep.subr.bf16.mxu0 0
  %635 = vmatpush2.bf16.msra.mxu0 0
  %636 = vmatprep.subr.bf16.mxu0 0
  %637 = vmatpush2.bf16.msra.mxu0 0
  %638 = vmatprep.subr.bf16.mxu0 0
  %639 = vmatpush2.bf16.msra.mxu0 0
  %640 = vmatprep.subr.bf16.mxu0 0
  %641 = vmatpush2.bf16.msra.mxu0 0
  %642 = vmatprep.subr.bf16.mxu0 0
  %643 = vmatpush2.bf16.msra.mxu0 0
  %644 = vmatprep.subr.bf16.mxu0 0
  %645 = vmatpush2.bf16.msra.mxu0 0
  %646 = vmatprep.subr.bf16.mxu0 0
  %647 = vmatpush2.bf16.msra.mxu0 0
  %648 = vmatprep.subr.bf16.mxu0 0
  %649 = vmatpush2.bf16.msra.mxu0 0
  %650 = vmatprep.mubr.bf16.mxu0 0
  %651 = vmatmul.mubr.bf16.gmra.mxu0 %v616
  %v652 = vpop.f32.mrf.mxu0
  %v653 = vadd.f32 0.0, %v652
  %v654 = vpop.f32.mrf.mxu0
  %v655 = vpop.f32.mrf.mxu0
  %v656 = vpop.f32.mrf.mxu0
  %657 = vdwg.mxu0
  %v658 = vadd.f32 %v610, %v653
  %v659 = vxor.u32 %v658, 2147483648
  %v660 = vmul.f32 %v659, 1.442695
  %v661 = vpow.pop %v660
  %v662 = vadd.f32 %v661, 1.0
  %v663 = vrcp.pop %v662
  %v664 = vmul.f32 1.0, %v663
  %v665 = vtanh.pop %v658
  %v666 = vmul.f32 %v664, %v608
  %668 = vrot.lane.b32.xlu0 %v665, 32
  %v669 = vpop.permute.xlu0 %668
  %v671 = vmul.f32 %v664, %v669
  %673 = vrot.lane.b32.xlu0 %v671, 32
  %v674 = vpop.permute.xlu0 %673
  %v676 = vadd.f32 %v666, %v674
  %v677 = vtanh.pop %v676
  %679 = vrot.lane.b32.xlu0 %v677, 32
  %v680 = vpop.permute.xlu0 %679
  %v682 = vmul.f32 %v664, %v680
  %s683 = scalar_lea.vmem %s1, 32
  %v684 = vld [vmem:[%s683] sm:$0xff]
  %686 = vset.pattern.permute.xlu0 0
  %687 = vperm.xlu0 %686, %v684
  %v688 = vpop.permute.xlu0 %687
  %v690 = vmul.f32 %v682, %v688
  %692 = vrot.lane.b32.xlu0 %v690, 64
  %v693 = vpop.permute.xlu0 %692
  %s695 = scalar_lea.vmem [#allocation4], 32
  %696 = vst.msk [vmem:[%s695] sm:$0xff] %vm76, %v693
  %v697 = vmul.f32 %v676, %v688
  %s698 = scalar_lea.vmem [#allocation2], 40
  %v699 = vld [vmem:[%s698] sm:$0xff]
  %v700 = vpack.c.bf16 %v690, %v690
  %702 = vrot.lane.b32.xlu0 %v700, 64
  %v703 = vpop.permute.xlu0 %702
  %v705 = vsel %vm76, %v703, 0
  %707 = vmatprep.subr.bf16.mxu0 0
  %708 = vmatpush1.bf16.msra.mxu0 0
  %709 = vmatprep.subr.bf16.mxu0 0
  %710 = vmatpush1.bf16.msra.mxu0 0
  %711 = vmatprep.subr.bf16.mxu0 0
  %712 = vmatpush1.bf16.msra.mxu0 0
  %713 = vmatprep.subr.bf16.mxu0 0
  %714 = vmatpush1.bf16.msra.mxu0 0
  %715 = vmatprep.subr.bf16.mxu0 0
  %716 = vmatpush1.bf16.msra.mxu0 0
  %717 = vmatprep.subr.bf16.mxu0 0
  %718 = vmatpush1.bf16.msra.mxu0 0
  %719 = vmatprep.subr.bf16.mxu0 0
  %720 = vmatpush1.bf16.msra.mxu0 %v253
  %721 = vmatprep.subr.bf16.mxu0 0
  %722 = vmatpush1.bf16.msra.mxu0 %v252
  %723 = vmatprep.subr.bf16.mxu0 0
  %724 = vmatpush2.bf16.msra.mxu0 0
  %725 = vmatprep.subr.bf16.mxu0 0
  %726 = vmatpush2.bf16.msra.mxu0 0
  %727 = vmatprep.subr.bf16.mxu0 0
  %728 = vmatpush2.bf16.msra.mxu0 0
  %729 = vmatprep.subr.bf16.mxu0 0
  %730 = vmatpush2.bf16.msra.mxu0 0
  %731 = vmatprep.subr.bf16.mxu0 0
  %732 = vmatpush2.bf16.msra.mxu0 0
  %733 = vmatprep.subr.bf16.mxu0 0
  %734 = vmatpush2.bf16.msra.mxu0 0
  %735 = vmatprep.subr.bf16.mxu0 0
  %736 = vmatpush2.bf16.msra.mxu0 0
  %737 = vmatprep.subr.bf16.mxu0 0
  %738 = vmatpush2.bf16.msra.mxu0 0
  %739 = vmatprep.mubr.bf16.mxu0 0
  %740 = vmatmul.mubr.bf16.gmra.mxu0 %v705
  %v741 = vpop.f32.mrf.mxu0
  %v742 = vadd.f32 0.0, %v741
  %v743 = vpop.f32.mrf.mxu0
  %v744 = vpop.f32.mrf.mxu0
  %v745 = vpop.f32.mrf.mxu0
  %746 = vdwg.mxu0
  %v747 = vadd.f32 %v699, %v742
  %v748 = vxor.u32 %v747, 2147483648
  %v749 = vmul.f32 %v748, 1.442695
  %v750 = vpow.pop %v749
  %v751 = vadd.f32 %v750, 1.0
  %v752 = vrcp.pop %v751
  %v753 = vmul.f32 1.0, %v752
  %v754 = vtanh.pop %v747
  %v755 = vmul.f32 %v753, %v697
  %757 = vrot.lane.b32.xlu0 %v754, 32
  %v758 = vpop.permute.xlu0 %757
  %v760 = vmul.f32 %v753, %v758
  %762 = vrot.lane.b32.xlu0 %v760, 32
  %v763 = vpop.permute.xlu0 %762
  %v765 = vadd.f32 %v755, %v763
  %v766 = vtanh.pop %v765
  %768 = vrot.lane.b32.xlu0 %v766, 32
  %v769 = vpop.permute.xlu0 %768
  %v771 = vmul.f32 %v753, %v769
  %s772 = scalar_lea.vmem %s1, 40
  %v773 = vld [vmem:[%s772] sm:$0xff]
  %775 = vset.pattern.permute.xlu0 0
  %776 = vperm.xlu0 %775, %v773
  %v777 = vpop.permute.xlu0 %776
  %v779 = vmul.f32 %v771, %v777
  %781 = vrot.lane.b32.xlu0 %v779, 64
  %v782 = vpop.permute.xlu0 %781
  %s784 = scalar_lea.vmem [#allocation4], 40
  %785 = vst.msk [vmem:[%s784] sm:$0xff] %vm76, %v782
  %v786 = vmul.f32 %v765, %v777
  %s787 = scalar_lea.vmem [#allocation2], 48
  %v788 = vld [vmem:[%s787] sm:$0xff]
  %v789 = vpack.c.bf16 %v779, %v779
  %791 = vrot.lane.b32.xlu0 %v789, 64
  %v792 = vpop.permute.xlu0 %791
  %v794 = vsel %vm76, %v792, 0
  %796 = vmatprep.subr.bf16.mxu0 0
  %797 = vmatpush1.bf16.msra.mxu0 0
  %798 = vmatprep.subr.bf16.mxu0 0
  %799 = vmatpush1.bf16.msra.mxu0 0
  %800 = vmatprep.subr.bf16.mxu0 0
  %801 = vmatpush1.bf16.msra.mxu0 0
  %802 = vmatprep.subr.bf16.mxu0 0
  %803 = vmatpush1.bf16.msra.mxu0 0
  %804 = vmatprep.subr.bf16.mxu0 0
  %805 = vmatpush1.bf16.msra.mxu0 0
  %806 = vmatprep.subr.bf16.mxu0 0
  %807 = vmatpush1.bf16.msra.mxu0 0
  %808 = vmatprep.subr.bf16.mxu0 0
  %809 = vmatpush1.bf16.msra.mxu0 %v253
  %810 = vmatprep.subr.bf16.mxu0 0
  %811 = vmatpush1.bf16.msra.mxu0 %v252
  %812 = vmatprep.subr.bf16.mxu0 0
  %813 = vmatpush2.bf16.msra.mxu0 0
  %814 = vmatprep.subr.bf16.mxu0 0
  %815 = vmatpush2.bf16.msra.mxu0 0
  %816 = vmatprep.subr.bf16.mxu0 0
  %817 = vmatpush2.bf16.msra.mxu0 0
  %818 = vmatprep.subr.bf16.mxu0 0
  %819 = vmatpush2.bf16.msra.mxu0 0
  %820 = vmatprep.subr.bf16.mxu0 0
  %821 = vmatpush2.bf16.msra.mxu0 0
  %822 = vmatprep.subr.bf16.mxu0 0
  %823 = vmatpush2.bf16.msra.mxu0 0
  %824 = vmatprep.subr.bf16.mxu0 0
  %825 = vmatpush2.bf16.msra.mxu0 0
  %826 = vmatprep.subr.bf16.mxu0 0
  %827 = vmatpush2.bf16.msra.mxu0 0
  %828 = vmatprep.mubr.bf16.mxu0 0
  %829 = vmatmul.mubr.bf16.gmra.mxu0 %v794
  %v830 = vpop.f32.mrf.mxu0
  %v831 = vadd.f32 0.0, %v830
  %v832 = vpop.f32.mrf.mxu0
  %v833 = vpop.f32.mrf.mxu0
  %v834 = vpop.f32.mrf.mxu0
  %835 = vdwg.mxu0
  %v836 = vadd.f32 %v788, %v831
  %v837 = vxor.u32 %v836, 2147483648
  %v838 = vmul.f32 %v837, 1.442695
  %v839 = vpow.pop %v838
  %v840 = vadd.f32 %v839, 1.0
  %v841 = vrcp.pop %v840
  %v842 = vmul.f32 1.0, %v841
  %v843 = vtanh.pop %v836
  %v844 = vmul.f32 %v842, %v786
  %846 = vrot.lane.b32.xlu0 %v843, 32
  %v847 = vpop.permute.xlu0 %846
  %v849 = vmul.f32 %v842, %v847
  %851 = vrot.lane.b32.xlu0 %v849, 32
  %v852 = vpop.permute.xlu0 %851
  %v854 = vadd.f32 %v844, %v852
  %v855 = vtanh.pop %v854
  %857 = vrot.lane.b32.xlu0 %v855, 32
  %v858 = vpop.permute.xlu0 %857
  %v860 = vmul.f32 %v842, %v858
  %s861 = scalar_lea.vmem %s1, 48
  %v862 = vld [vmem:[%s861] sm:$0xff]
  %864 = vset.pattern.permute.xlu0 0
  %865 = vperm.xlu0 %864, %v862
  %v866 = vpop.permute.xlu0 %865
  %v868 = vmul.f32 %v860, %v866
  %870 = vrot.lane.b32.xlu0 %v868, 64
  %v871 = vpop.permute.xlu0 %870
  %s873 = scalar_lea.vmem [#allocation4], 48
  %874 = vst.msk [vmem:[%s873] sm:$0xff] %vm76, %v871
  %v875 = vmul.f32 %v854, %v866
  %s876 = scalar_lea.vmem [#allocation2], 56
  %v877 = vld [vmem:[%s876] sm:$0xff]
  %v878 = vpack.c.bf16 %v868, %v868
  %880 = vrot.lane.b32.xlu0 %v878, 64
  %v881 = vpop.permute.xlu0 %880
  %v883 = vsel %vm76, %v881, 0
  %885 = vmatprep.subr.bf16.mxu0 0
  %886 = vmatpush1.bf16.msra.mxu0 0
  %887 = vmatprep.subr.bf16.mxu0 0
  %888 = vmatpush1.bf16.msra.mxu0 0
  %889 = vmatprep.subr.bf16.mxu0 0
  %890 = vmatpush1.bf16.msra.mxu0 0
  %891 = vmatprep.subr.bf16.mxu0 0
  %892 = vmatpush1.bf16.msra.mxu0 0
  %893 = vmatprep.subr.bf16.mxu0 0
  %894 = vmatpush1.bf16.msra.mxu0 0
  %895 = vmatprep.subr.bf16.mxu0 0
  %896 = vmatpush1.bf16.msra.mxu0 0
  %897 = vmatprep.subr.bf16.mxu0 0
  %898 = vmatpush1.bf16.msra.mxu0 %v253
  %899 = vmatprep.subr.bf16.mxu0 0
  %900 = vmatpush1.bf16.msra.mxu0 %v252
  %901 = vmatprep.subr.bf16.mxu0 0
  %902 = vmatpush2.bf16.msra.mxu0 0
  %903 = vmatprep.subr.bf16.mxu0 0
  %904 = vmatpush2.bf16.msra.mxu0 0
  %905 = vmatprep.subr.bf16.mxu0 0
  %906 = vmatpush2.bf16.msra.mxu0 0
  %907 = vmatprep.subr.bf16.mxu0 0
  %908 = vmatpush2.bf16.msra.mxu0 0
  %909 = vmatprep.subr.bf16.mxu0 0
  %910 = vmatpush2.bf16.msra.mxu0 0
  %911 = vmatprep.subr.bf16.mxu0 0
  %912 = vmatpush2.bf16.msra.mxu0 0
  %913 = vmatprep.subr.bf16.mxu0 0
  %914 = vmatpush2.bf16.msra.mxu0 0
  %915 = vmatprep.subr.bf16.mxu0 0
  %916 = vmatpush2.bf16.msra.mxu0 0
  %917 = vmatprep.mubr.bf16.mxu0 0
  %918 = vmatmul.mubr.bf16.gmra.mxu0 %v883
  %v919 = vpop.f32.mrf.mxu0
  %v920 = vadd.f32 0.0, %v919
  %v921 = vpop.f32.mrf.mxu0
  %v922 = vpop.f32.mrf.mxu0
  %v923 = vpop.f32.mrf.mxu0
  %924 = vdwg.mxu0
  %v925 = vadd.f32 %v877, %v920
  %v926 = vxor.u32 %v925, 2147483648
  %v927 = vmul.f32 %v926, 1.442695
  %v928 = vpow.pop %v927
  %v929 = vadd.f32 %v928, 1.0
  %v930 = vrcp.pop %v929
  %v931 = vmul.f32 1.0, %v930
  %v932 = vtanh.pop %v925
  %v933 = vmul.f32 %v931, %v875
  %935 = vrot.lane.b32.xlu0 %v932, 32
  %v936 = vpop.permute.xlu0 %935
  %v938 = vmul.f32 %v931, %v936
  %940 = vrot.lane.b32.xlu0 %v938, 32
  %v941 = vpop.permute.xlu0 %940
  %v943 = vadd.f32 %v933, %v941
  %v944 = vtanh.pop %v943
  %946 = vrot.lane.b32.xlu0 %v944, 32
  %v947 = vpop.permute.xlu0 %946
  %v949 = vmul.f32 %v931, %v947
  %s950 = scalar_lea.vmem %s1, 56
  %v951 = vld [vmem:[%s950] sm:$0xff]
  %953 = vset.pattern.permute.xlu0 0
  %954 = vperm.xlu0 %953, %v951
  %v955 = vpop.permute.xlu0 %954
  %v957 = vmul.f32 %v949, %v955
  %959 = vrot.lane.b32.xlu0 %v957, 64
  %v960 = vpop.permute.xlu0 %959
  %s962 = scalar_lea.vmem [#allocation4], 56
  %963 = vst.msk [vmem:[%s962] sm:$0xff] %vm76, %v960
  %s964 = scalar_lea.vmem [#allocation3], 56
  %v965 = vld [vmem:[%s964] sm:$0xff]
  %966 = vmatprep.subr.bf16.mxu0 0
  %967 = vmatpush1.bf16.msra.mxu0 0
  %968 = vmatprep.subr.bf16.mxu0 0
  %969 = vmatpush1.bf16.msra.mxu0 0
  %970 = vmatprep.subr.bf16.mxu0 0
  %971 = vmatpush1.bf16.msra.mxu0 0
  %972 = vmatprep.subr.bf16.mxu0 0
  %973 = vmatpush1.bf16.msra.mxu0 0
  %974 = vmatprep.subr.bf16.mxu0 0
  %975 = vmatpush1.bf16.msra.mxu0 0
  %976 = vmatprep.subr.bf16.mxu0 0
  %977 = vmatpush1.bf16.msra.mxu0 0
  %978 = vmatprep.subr.bf16.mxu0 0
  %979 = vmatpush1.bf16.msra.mxu0 %v259
  %980 = vmatprep.subr.bf16.mxu0 0
  %981 = vmatpush1.bf16.msra.mxu0 %v258
  %982 = vmatprep.subr.bf16.mxu0 0
  %983 = vmatpush2.bf16.msra.mxu0 0
  %984 = vmatprep.subr.bf16.mxu0 0
  %985 = vmatpush2.bf16.msra.mxu0 0
  %986 = vmatprep.subr.bf16.mxu0 0
  %987 = vmatpush2.bf16.msra.mxu0 0
  %988 = vmatprep.subr.bf16.mxu0 0
  %989 = vmatpush2.bf16.msra.mxu0 0
  %990 = vmatprep.subr.bf16.mxu0 0
  %991 = vmatpush2.bf16.msra.mxu0 0
  %992 = vmatprep.subr.bf16.mxu0 0
  %993 = vmatpush2.bf16.msra.mxu0 0
  %994 = vmatprep.subr.bf16.mxu0 0
  %995 = vmatpush2.bf16.msra.mxu0 0
  %996 = vmatprep.subr.bf16.mxu0 0
  %997 = vmatpush2.bf16.msra.mxu0 0
  %998 = vmatprep.mubr.bf16.mxu0 0
  %999 = vmatmul.mubr.bf16.gmra.mxu0 %v262
  %v1000 = vpop.f32.mrf.mxu0
  %v1001 = vadd.f32 0.0, %v1000
  %v1002 = vpop.f32.mrf.mxu0
  %v1003 = vpop.f32.mrf.mxu0
  %v1004 = vpop.f32.mrf.mxu0
  %1005 = vdwg.mxu0
  %v1006 = vadd.f32 %v965, %v1001
  %v1007 = vxor.u32 %v1006, 2147483648
  %v1008 = vmul.f32 %v1007, 1.442695
  %v1009 = vpow.pop %v1008
  %v1010 = vadd.f32 %v1009, 1.0
  %v1011 = vrcp.pop %v1010
  %v1012 = vmul.f32 1.0, %v1011
  %v1013 = vtanh.pop %v1006
  %v1014 = vmul.f32 %v1012, 0.0
  %1016 = vrot.lane.b32.xlu0 %v1013, 32
  %v1017 = vpop.permute.xlu0 %1016
  %v1019 = vmul.f32 %v1012, %v1017
  %1021 = vrot.lane.b32.xlu0 %v1019, 32
  %v1022 = vpop.permute.xlu0 %1021
  %v1024 = vadd.f32 %v1014, %v1022
  %v1025 = vtanh.pop %v1024
  %1027 = vrot.lane.b32.xlu0 %v1025, 32
  %v1028 = vpop.permute.xlu0 %1027
  %v1030 = vmul.f32 %v1012, %v1028
  %v1031 = vld [vmem:[%s950] sm:$0xff]
  %1033 = vset.pattern.permute.xlu0 0
  %1034 = vperm.xlu0 %1033, %v1031
  %v1035 = vpop.permute.xlu0 %1034
  %v1037 = vmul.f32 %v1030, %v1035
  %1039 = vrot.lane.b32.xlu0 %v1037, 64
  %v1040 = vpop.permute.xlu0 %1039
  %s1042 = scalar_lea.vmem [#allocation5], 56
  %1043 = vst.msk [vmem:[%s1042] sm:$0xff] %vm76, %v1040
  %v1044 = vmul.f32 %v1024, %v1035
  %s1045 = scalar_lea.vmem [#allocation3], 48
  %v1046 = vld [vmem:[%s1045] sm:$0xff]
  %v1047 = vpack.c.bf16 %v1037, %v1037
  %1049 = vrot.lane.b32.xlu0 %v1047, 64
  %v1050 = vpop.permute.xlu0 %1049
  %v1052 = vsel %vm76, %v1050, 0
  %1054 = vmatprep.subr.bf16.mxu0 0
  %1055 = vmatpush1.bf16.msra.mxu0 0
  %1056 = vmatprep.subr.bf16.mxu0 0
  %1057 = vmatpush1.bf16.msra.mxu0 0
  %1058 = vmatprep.subr.bf16.mxu0 0
  %1059 = vmatpush1.bf16.msra.mxu0 0
  %1060 = vmatprep.subr.bf16.mxu0 0
  %1061 = vmatpush1.bf16.msra.mxu0 0
  %1062 = vmatprep.subr.bf16.mxu0 0
  %1063 = vmatpush1.bf16.msra.mxu0 0
  %1064 = vmatprep.subr.bf16.mxu0 0
  %1065 = vmatpush1.bf16.msra.mxu0 0
  %1066 = vmatprep.subr.bf16.mxu0 0
  %1067 = vmatpush1.bf16.msra.mxu0 %v259
  %1068 = vmatprep.subr.bf16.mxu0 0
  %1069 = vmatpush1.bf16.msra.mxu0 %v258
  %1070 = vmatprep.subr.bf16.mxu0 0
  %1071 = vmatpush2.bf16.msra.mxu0 0
  %1072 = vmatprep.subr.bf16.mxu0 0
  %1073 = vmatpush2.bf16.msra.mxu0 0
  %1074 = vmatprep.subr.bf16.mxu0 0
  %1075 = vmatpush2.bf16.msra.mxu0 0
  %1076 = vmatprep.subr.bf16.mxu0 0
  %1077 = vmatpush2.bf16.msra.mxu0 0
  %1078 = vmatprep.subr.bf16.mxu0 0
  %1079 = vmatpush2.bf16.msra.mxu0 0
  %1080 = vmatprep.subr.bf16.mxu0 0
  %1081 = vmatpush2.bf16.msra.mxu0 0
  %1082 = vmatprep.subr.bf16.mxu0 0
  %1083 = vmatpush2.bf16.msra.mxu0 0
  %1084 = vmatprep.subr.bf16.mxu0 0
  %1085 = vmatpush2.bf16.msra.mxu0 0
  %1086 = vmatprep.mubr.bf16.mxu0 0
  %1087 = vmatmul.mubr.bf16.gmra.mxu0 %v1052
  %v1088 = vpop.f32.mrf.mxu0
  %v1089 = vadd.f32 0.0, %v1088
  %v1090 = vpop.f32.mrf.mxu0
  %v1091 = vpop.f32.mrf.mxu0
  %v1092 = vpop.f32.mrf.mxu0
  %1093 = vdwg.mxu0
  %v1094 = vadd.f32 %v1046, %v1089
  %v1095 = vxor.u32 %v1094, 2147483648
  %v1096 = vmul.f32 %v1095, 1.442695
  %v1097 = vpow.pop %v1096
  %v1098 = vadd.f32 %v1097, 1.0
  %v1099 = vrcp.pop %v1098
  %v1100 = vmul.f32 1.0, %v1099
  %v1101 = vtanh.pop %v1094
  %v1102 = vmul.f32 %v1100, %v1044
  %1104 = vrot.lane.b32.xlu0 %v1101, 32
  %v1105 = vpop.permute.xlu0 %1104
  %v1107 = vmul.f32 %v1100, %v1105
  %1109 = vrot.lane.b32.xlu0 %v1107, 32
  %v1110 = vpop.permute.xlu0 %1109
  %v1112 = vadd.f32 %v1102, %v1110
  %v1113 = vtanh.pop %v1112
  %1115 = vrot.lane.b32.xlu0 %v1113, 32
  %v1116 = vpop.permute.xlu0 %1115
  %v1118 = vmul.f32 %v1100, %v1116
  %v1119 = vld [vmem:[%s861] sm:$0xff]
  %1121 = vset.pattern.permute.xlu0 0
  %1122 = vperm.xlu0 %1121, %v1119
  %v1123 = vpop.permute.xlu0 %1122
  %v1125 = vmul.f32 %v1118, %v1123
  %1127 = vrot.lane.b32.xlu0 %v1125, 64
  %v1128 = vpop.permute.xlu0 %1127
  %s1130 = scalar_lea.vmem [#allocation5], 48
  %1131 = vst.msk [vmem:[%s1130] sm:$0xff] %vm76, %v1128
  %v1132 = vmul.f32 %v1112, %v1123
  %s1133 = scalar_lea.vmem [#allocation3], 40
  %v1134 = vld [vmem:[%s1133] sm:$0xff]
  %v1135 = vpack.c.bf16 %v1125, %v1125
  %1137 = vrot.lane.b32.xlu0 %v1135, 64
  %v1138 = vpop.permute.xlu0 %1137
  %v1140 = vsel %vm76, %v1138, 0
  %1142 = vmatprep.subr.bf16.mxu0 0
  %1143 = vmatpush1.bf16.msra.mxu0 0
  %1144 = vmatprep.subr.bf16.mxu0 0
  %1145 = vmatpush1.bf16.msra.mxu0 0
  %1146 = vmatprep.subr.bf16.mxu0 0
  %1147 = vmatpush1.bf16.msra.mxu0 0
  %1148 = vmatprep.subr.bf16.mxu0 0
  %1149 = vmatpush1.bf16.msra.mxu0 0
  %1150 = vmatprep.subr.bf16.mxu0 0
  %1151 = vmatpush1.bf16.msra.mxu0 0
  %1152 = vmatprep.subr.bf16.mxu0 0
  %1153 = vmatpush1.bf16.msra.mxu0 0
  %1154 = vmatprep.subr.bf16.mxu0 0
  %1155 = vmatpush1.bf16.msra.mxu0 %v259
  %1156 = vmatprep.subr.bf16.mxu0 0
  %1157 = vmatpush1.bf16.msra.mxu0 %v258
  %1158 = vmatprep.subr.bf16.mxu0 0
  %1159 = vmatpush2.bf16.msra.mxu0 0
  %1160 = vmatprep.subr.bf16.mxu0 0
  %1161 = vmatpush2.bf16.msra.mxu0 0
  %1162 = vmatprep.subr.bf16.mxu0 0
  %1163 = vmatpush2.bf16.msra.mxu0 0
  %1164 = vmatprep.subr.bf16.mxu0 0
  %1165 = vmatpush2.bf16.msra.mxu0 0
  %1166 = vmatprep.subr.bf16.mxu0 0
  %1167 = vmatpush2.bf16.msra.mxu0 0
  %1168 = vmatprep.subr.bf16.mxu0 0
  %1169 = vmatpush2.bf16.msra.mxu0 0
  %1170 = vmatprep.subr.bf16.mxu0 0
  %1171 = vmatpush2.bf16.msra.mxu0 0
  %1172 = vmatprep.subr.bf16.mxu0 0
  %1173 = vmatpush2.bf16.msra.mxu0 0
  %1174 = vmatprep.mubr.bf16.mxu0 0
  %1175 = vmatmul.mubr.bf16.gmra.mxu0 %v1140
  %v1176 = vpop.f32.mrf.mxu0
  %v1177 = vadd.f32 0.0, %v1176
  %v1178 = vpop.f32.mrf.mxu0
  %v1179 = vpop.f32.mrf.mxu0
  %v1180 = vpop.f32.mrf.mxu0
  %1181 = vdwg.mxu0
  %v1182 = vadd.f32 %v1134, %v1177
  %v1183 = vxor.u32 %v1182, 2147483648
  %v1184 = vmul.f32 %v1183, 1.442695
  %v1185 = vpow.pop %v1184
  %v1186 = vadd.f32 %v1185, 1.0
  %v1187 = vrcp.pop %v1186
  %v1188 = vmul.f32 1.0, %v1187
  %v1189 = vtanh.pop %v1182
  %v1190 = vmul.f32 %v1188, %v1132
  %1192 = vrot.lane.b32.xlu0 %v1189, 32
  %v1193 = vpop.permute.xlu0 %1192
  %v1195 = vmul.f32 %v1188, %v1193
  %1197 = vrot.lane.b32.xlu0 %v1195, 32
  %v1198 = vpop.permute.xlu0 %1197
  %v1200 = vadd.f32 %v1190, %v1198
  %v1201 = vtanh.pop %v1200
  %1203 = vrot.lane.b32.xlu0 %v1201, 32
  %v1204 = vpop.permute.xlu0 %1203
  %v1206 = vmul.f32 %v1188, %v1204
  %v1207 = vld [vmem:[%s772] sm:$0xff]
  %1209 = vset.pattern.permute.xlu0 0
  %1210 = vperm.xlu0 %1209, %v1207
  %v1211 = vpop.permute.xlu0 %1210
  %v1213 = vmul.f32 %v1206, %v1211
  %1215 = vrot.lane.b32.xlu0 %v1213, 64
  %v1216 = vpop.permute.xlu0 %1215
  %s1218 = scalar_lea.vmem [#allocation5], 40
  %1219 = vst.msk [vmem:[%s1218] sm:$0xff] %vm76, %v1216
  %v1220 = vmul.f32 %v1200, %v1211
  %s1221 = scalar_lea.vmem [#allocation3], 32
  %v1222 = vld [vmem:[%s1221] sm:$0xff]
  %v1223 = vpack.c.bf16 %v1213, %v1213
  %1225 = vrot.lane.b32.xlu0 %v1223, 64
  %v1226 = vpop.permute.xlu0 %1225
  %v1228 = vsel %vm76, %v1226, 0
  %1230 = vmatprep.subr.bf16.mxu0 0
  %1231 = vmatpush1.bf16.msra.mxu0 0
  %1232 = vmatprep.subr.bf16.mxu0 0
  %1233 = vmatpush1.bf16.msra.mxu0 0
  %1234 = vmatprep.subr.bf16.mxu0 0
  %1235 = vmatpush1.bf16.msra.mxu0 0
  %1236 = vmatprep.subr.bf16.mxu0 0
  %1237 = vmatpush1.bf16.msra.mxu0 0
  %1238 = vmatprep.subr.bf16.mxu0 0
  %1239 = vmatpush1.bf16.msra.mxu0 0
  %1240 = vmatprep.subr.bf16.mxu0 0
  %1241 = vmatpush1.bf16.msra.mxu0 0
  %1242 = vmatprep.subr.bf16.mxu0 0
  %1243 = vmatpush1.bf16.msra.mxu0 %v259
  %1244 = vmatprep.subr.bf16.mxu0 0
  %1245 = vmatpush1.bf16.msra.mxu0 %v258
  %1246 = vmatprep.subr.bf16.mxu0 0
  %1247 = vmatpush2.bf16.msra.mxu0 0
  %1248 = vmatprep.subr.bf16.mxu0 0
  %1249 = vmatpush2.bf16.msra.mxu0 0
  %1250 = vmatprep.subr.bf16.mxu0 0
  %1251 = vmatpush2.bf16.msra.mxu0 0
  %1252 = vmatprep.subr.bf16.mxu0 0
  %1253 = vmatpush2.bf16.msra.mxu0 0
  %1254 = vmatprep.subr.bf16.mxu0 0
  %1255 = vmatpush2.bf16.msra.mxu0 0
  %1256 = vmatprep.subr.bf16.mxu0 0
  %1257 = vmatpush2.bf16.msra.mxu0 0
  %1258 = vmatprep.subr.bf16.mxu0 0
  %1259 = vmatpush2.bf16.msra.mxu0 0
  %1260 = vmatprep.subr.bf16.mxu0 0
  %1261 = vmatpush2.bf16.msra.mxu0 0
  %1262 = vmatprep.mubr.bf16.mxu0 0
  %1263 = vmatmul.mubr.bf16.gmra.mxu0 %v1228
  %v1264 = vpop.f32.mrf.mxu0
  %v1265 = vadd.f32 0.0, %v1264
  %v1266 = vpop.f32.mrf.mxu0
  %v1267 = vpop.f32.mrf.mxu0
  %v1268 = vpop.f32.mrf.mxu0
  %1269 = vdwg.mxu0
  %v1270 = vadd.f32 %v1222, %v1265
  %v1271 = vxor.u32 %v1270, 2147483648
  %v1272 = vmul.f32 %v1271, 1.442695
  %v1273 = vpow.pop %v1272
  %v1274 = vadd.f32 %v1273, 1.0
  %v1275 = vrcp.pop %v1274
  %v1276 = vmul.f32 1.0, %v1275
  %v1277 = vtanh.pop %v1270
  %v1278 = vmul.f32 %v1276, %v1220
  %1280 = vrot.lane.b32.xlu0 %v1277, 32
  %v1281 = vpop.permute.xlu0 %1280
  %v1283 = vmul.f32 %v1276, %v1281
  %1285 = vrot.lane.b32.xlu0 %v1283, 32
  %v1286 = vpop.permute.xlu0 %1285
  %v1288 = vadd.f32 %v1278, %v1286
  %v1289 = vtanh.pop %v1288
  %1291 = vrot.lane.b32.xlu0 %v1289, 32
  %v1292 = vpop.permute.xlu0 %1291
  %v1294 = vmul.f32 %v1276, %v1292
  %v1295 = vld [vmem:[%s683] sm:$0xff]
  %1297 = vset.pattern.permute.xlu0 0
  %1298 = vperm.xlu0 %1297, %v1295
  %v1299 = vpop.permute.xlu0 %1298
  %v1301 = vmul.f32 %v1294, %v1299
  %1303 = vrot.lane.b32.xlu0 %v1301, 64
  %v1304 = vpop.permute.xlu0 %1303
  %s1306 = scalar_lea.vmem [#allocation5], 32
  %1307 = vst.msk [vmem:[%s1306] sm:$0xff] %vm76, %v1304
  %v1308 = vmul.f32 %v1288, %v1299
  %s1309 = scalar_lea.vmem [#allocation3], 24
  %v1310 = vld [vmem:[%s1309] sm:$0xff]
  %v1311 = vpack.c.bf16 %v1301, %v1301
  %1313 = vrot.lane.b32.xlu0 %v1311, 64
  %v1314 = vpop.permute.xlu0 %1313
  %v1316 = vsel %vm76, %v1314, 0
  %1318 = vmatprep.subr.bf16.mxu0 0
  %1319 = vmatpush1.bf16.msra.mxu0 0
  %1320 = vmatprep.subr.bf16.mxu0 0
  %1321 = vmatpush1.bf16.msra.mxu0 0
  %1322 = vmatprep.subr.bf16.mxu0 0
  %1323 = vmatpush1.bf16.msra.mxu0 0
  %1324 = vmatprep.subr.bf16.mxu0 0
  %1325 = vmatpush1.bf16.msra.mxu0 0
  %1326 = vmatprep.subr.bf16.mxu0 0
  %1327 = vmatpush1.bf16.msra.mxu0 0
  %1328 = vmatprep.subr.bf16.mxu0 0
  %1329 = vmatpush1.bf16.msra.mxu0 0
  %1330 = vmatprep.subr.bf16.mxu0 0
  %1331 = vmatpush1.bf16.msra.mxu0 %v259
  %1332 = vmatprep.subr.bf16.mxu0 0
  %1333 = vmatpush1.bf16.msra.mxu0 %v258
  %1334 = vmatprep.subr.bf16.mxu0 0
  %1335 = vmatpush2.bf16.msra.mxu0 0
  %1336 = vmatprep.subr.bf16.mxu0 0
  %1337 = vmatpush2.bf16.msra.mxu0 0
  %1338 = vmatprep.subr.bf16.mxu0 0
  %1339 = vmatpush2.bf16.msra.mxu0 0
  %1340 = vmatprep.subr.bf16.mxu0 0
  %1341 = vmatpush2.bf16.msra.mxu0 0
  %1342 = vmatprep.subr.bf16.mxu0 0
  %1343 = vmatpush2.bf16.msra.mxu0 0
  %1344 = vmatprep.subr.bf16.mxu0 0
  %1345 = vmatpush2.bf16.msra.mxu0 0
  %1346 = vmatprep.subr.bf16.mxu0 0
  %1347 = vmatpush2.bf16.msra.mxu0 0
  %1348 = vmatprep.subr.bf16.mxu0 0
  %1349 = vmatpush2.bf16.msra.mxu0 0
  %1350 = vmatprep.mubr.bf16.mxu0 0
  %1351 = vmatmul.mubr.bf16.gmra.mxu0 %v1316
  %v1352 = vpop.f32.mrf.mxu0
  %v1353 = vadd.f32 0.0, %v1352
  %v1354 = vpop.f32.mrf.mxu0
  %v1355 = vpop.f32.mrf.mxu0
  %v1356 = vpop.f32.mrf.mxu0
  %1357 = vdwg.mxu0
  %v1358 = vadd.f32 %v1310, %v1353
  %v1359 = vxor.u32 %v1358, 2147483648
  %v1360 = vmul.f32 %v1359, 1.442695
  %v1361 = vpow.pop %v1360
  %v1362 = vadd.f32 %v1361, 1.0
  %v1363 = vrcp.pop %v1362
  %v1364 = vmul.f32 1.0, %v1363
  %v1365 = vtanh.pop %v1358
  %v1366 = vmul.f32 %v1364, %v1308
  %1368 = vrot.lane.b32.xlu0 %v1365, 32
  %v1369 = vpop.permute.xlu0 %1368
  %v1371 = vmul.f32 %v1364, %v1369
  %1373 = vrot.lane.b32.xlu0 %v1371, 32
  %v1374 = vpop.permute.xlu0 %1373
  %v1376 = vadd.f32 %v1366, %v1374
  %v1377 = vtanh.pop %v1376
  %1379 = vrot.lane.b32.xlu0 %v1377, 32
  %v1380 = vpop.permute.xlu0 %1379
  %v1382 = vmul.f32 %v1364, %v1380
  %v1383 = vld [vmem:[%s594] sm:$0xff]
  %1385 = vset.pattern.permute.xlu0 0
  %1386 = vperm.xlu0 %1385, %v1383
  %v1387 = vpop.permute.xlu0 %1386
  %v1389 = vmul.f32 %v1382, %v1387
  %1391 = vrot.lane.b32.xlu0 %v1389, 64
  %v1392 = vpop.permute.xlu0 %1391
  %s1394 = scalar_lea.vmem [#allocation5], 24
  %1395 = vst.msk [vmem:[%s1394] sm:$0xff] %vm76, %v1392
  %v1396 = vmul.f32 %v1376, %v1387
  %s1397 = scalar_lea.vmem [#allocation3], 16
  %v1398 = vld [vmem:[%s1397] sm:$0xff]
  %v1399 = vpack.c.bf16 %v1389, %v1389
  %1401 = vrot.lane.b32.xlu0 %v1399, 64
  %v1402 = vpop.permute.xlu0 %1401
  %v1404 = vsel %vm76, %v1402, 0
  %1406 = vmatprep.subr.bf16.mxu0 0
  %1407 = vmatpush1.bf16.msra.mxu0 0
  %1408 = vmatprep.subr.bf16.mxu0 0
  %1409 = vmatpush1.bf16.msra.mxu0 0
  %1410 = vmatprep.subr.bf16.mxu0 0
  %1411 = vmatpush1.bf16.msra.mxu0 0
  %1412 = vmatprep.subr.bf16.mxu0 0
  %1413 = vmatpush1.bf16.msra.mxu0 0
  %1414 = vmatprep.subr.bf16.mxu0 0
  %1415 = vmatpush1.bf16.msra.mxu0 0
  %1416 = vmatprep.subr.bf16.mxu0 0
  %1417 = vmatpush1.bf16.msra.mxu0 0
  %1418 = vmatprep.subr.bf16.mxu0 0
  %1419 = vmatpush1.bf16.msra.mxu0 %v259
  %1420 = vmatprep.subr.bf16.mxu0 0
  %1421 = vmatpush1.bf16.msra.mxu0 %v258
  %1422 = vmatprep.subr.bf16.mxu0 0
  %1423 = vmatpush2.bf16.msra.mxu0 0
  %1424 = vmatprep.subr.bf16.mxu0 0
  %1425 = vmatpush2.bf16.msra.mxu0 0
  %1426 = vmatprep.subr.bf16.mxu0 0
  %1427 = vmatpush2.bf16.msra.mxu0 0
  %1428 = vmatprep.subr.bf16.mxu0 0
  %1429 = vmatpush2.bf16.msra.mxu0 0
  %1430 = vmatprep.subr.bf16.mxu0 0
  %1431 = vmatpush2.bf16.msra.mxu0 0
  %1432 = vmatprep.subr.bf16.mxu0 0
  %1433 = vmatpush2.bf16.msra.mxu0 0
  %1434 = vmatprep.subr.bf16.mxu0 0
  %1435 = vmatpush2.bf16.msra.mxu0 0
  %1436 = vmatprep.subr.bf16.mxu0 0
  %1437 = vmatpush2.bf16.msra.mxu0 0
  %1438 = vmatprep.mubr.bf16.mxu0 0
  %1439 = vmatmul.mubr.bf16.gmra.mxu0 %v1404
  %v1440 = vpop.f32.mrf.mxu0
  %v1441 = vadd.f32 0.0, %v1440
  %v1442 = vpop.f32.mrf.mxu0
  %v1443 = vpop.f32.mrf.mxu0
  %v1444 = vpop.f32.mrf.mxu0
  %1445 = vdwg.mxu0
  %v1446 = vadd.f32 %v1398, %v1441
  %v1447 = vxor.u32 %v1446, 2147483648
  %v1448 = vmul.f32 %v1447, 1.442695
  %v1449 = vpow.pop %v1448
  %v1450 = vadd.f32 %v1449, 1.0
  %v1451 = vrcp.pop %v1450
  %v1452 = vmul.f32 1.0, %v1451
  %v1453 = vtanh.pop %v1446
  %v1454 = vmul.f32 %v1452, %v1396
  %1456 = vrot.lane.b32.xlu0 %v1453, 32
  %v1457 = vpop.permute.xlu0 %1456
  %v1459 = vmul.f32 %v1452, %v1457
  %1461 = vrot.lane.b32.xlu0 %v1459, 32
  %v1462 = vpop.permute.xlu0 %1461
  %v1464 = vadd.f32 %v1454, %v1462
  %v1465 = vtanh.pop %v1464
  %1467 = vrot.lane.b32.xlu0 %v1465, 32
  %v1468 = vpop.permute.xlu0 %1467
  %v1470 = vmul.f32 %v1452, %v1468
  %v1471 = vld [vmem:[%s505] sm:$0xff]
  %1473 = vset.pattern.permute.xlu0 0
  %1474 = vperm.xlu0 %1473, %v1471
  %v1475 = vpop.permute.xlu0 %1474
  %v1477 = vmul.f32 %v1470, %v1475
  %1479 = vrot.lane.b32.xlu0 %v1477, 64
  %v1480 = vpop.permute.xlu0 %1479
  %s1482 = scalar_lea.vmem [#allocation5], 16
  %1483 = vst.msk [vmem:[%s1482] sm:$0xff] %vm76, %v1480
  %v1484 = vmul.f32 %v1464, %v1475
  %s1485 = scalar_lea.vmem [#allocation3], 8
  %v1486 = vld [vmem:[%s1485] sm:$0xff]
  %v1487 = vpack.c.bf16 %v1477, %v1477
  %1489 = vrot.lane.b32.xlu0 %v1487, 64
  %v1490 = vpop.permute.xlu0 %1489
  %v1492 = vsel %vm76, %v1490, 0
  %1494 = vmatprep.subr.bf16.mxu0 0
  %1495 = vmatpush1.bf16.msra.mxu0 0
  %1496 = vmatprep.subr.bf16.mxu0 0
  %1497 = vmatpush1.bf16.msra.mxu0 0
  %1498 = vmatprep.subr.bf16.mxu0 0
  %1499 = vmatpush1.bf16.msra.mxu0 0
  %1500 = vmatprep.subr.bf16.mxu0 0
  %1501 = vmatpush1.bf16.msra.mxu0 0
  %1502 = vmatprep.subr.bf16.mxu0 0
  %1503 = vmatpush1.bf16.msra.mxu0 0
  %1504 = vmatprep.subr.bf16.mxu0 0
  %1505 = vmatpush1.bf16.msra.mxu0 0
  %1506 = vmatprep.subr.bf16.mxu0 0
  %1507 = vmatpush1.bf16.msra.mxu0 %v259
  %1508 = vmatprep.subr.bf16.mxu0 0
  %1509 = vmatpush1.bf16.msra.mxu0 %v258
  %1510 = vmatprep.subr.bf16.mxu0 0
  %1511 = vmatpush2.bf16.msra.mxu0 0
  %1512 = vmatprep.subr.bf16.mxu0 0
  %1513 = vmatpush2.bf16.msra.mxu0 0
  %1514 = vmatprep.subr.bf16.mxu0 0
  %1515 = vmatpush2.bf16.msra.mxu0 0
  %1516 = vmatprep.subr.bf16.mxu0 0
  %1517 = vmatpush2.bf16.msra.mxu0 0
  %1518 = vmatprep.subr.bf16.mxu0 0
  %1519 = vmatpush2.bf16.msra.mxu0 0
  %1520 = vmatprep.subr.bf16.mxu0 0
  %1521 = vmatpush2.bf16.msra.mxu0 0
  %1522 = vmatprep.subr.bf16.mxu0 0
  %1523 = vmatpush2.bf16.msra.mxu0 0
  %1524 = vmatprep.subr.bf16.mxu0 0
  %1525 = vmatpush2.bf16.msra.mxu0 0
  %1526 = vmatprep.mubr.bf16.mxu0 0
  %1527 = vmatmul.mubr.bf16.gmra.mxu0 %v1492
  %v1528 = vpop.f32.mrf.mxu0
  %v1529 = vadd.f32 0.0, %v1528
  %v1530 = vpop.f32.mrf.mxu0
  %v1531 = vpop.f32.mrf.mxu0
  %v1532 = vpop.f32.mrf.mxu0
  %1533 = vdwg.mxu0
  %v1534 = vadd.f32 %v1486, %v1529
  %v1535 = vxor.u32 %v1534, 2147483648
  %v1536 = vmul.f32 %v1535, 1.442695
  %v1537 = vpow.pop %v1536
  %v1538 = vadd.f32 %v1537, 1.0
  %v1539 = vrcp.pop %v1538
  %v1540 = vmul.f32 1.0, %v1539
  %v1541 = vtanh.pop %v1534
  %v1542 = vmul.f32 %v1540, %v1484
  %1544 = vrot.lane.b32.xlu0 %v1541, 32
  %v1545 = vpop.permute.xlu0 %1544
  %v1547 = vmul.f32 %v1540, %v1545
  %1549 = vrot.lane.b32.xlu0 %v1547, 32
  %v1550 = vpop.permute.xlu0 %1549
  %v1552 = vadd.f32 %v1542, %v1550
  %v1553 = vtanh.pop %v1552
  %1555 = vrot.lane.b32.xlu0 %v1553, 32
  %v1556 = vpop.permute.xlu0 %1555
  %v1558 = vmul.f32 %v1540, %v1556
  %v1559 = vld [vmem:[%s416] sm:$0xff]
  %1561 = vset.pattern.permute.xlu0 0
  %1562 = vperm.xlu0 %1561, %v1559
  %v1563 = vpop.permute.xlu0 %1562
  %v1565 = vmul.f32 %v1558, %v1563
  %1567 = vrot.lane.b32.xlu0 %v1565, 64
  %v1568 = vpop.permute.xlu0 %1567
  %s1570 = scalar_lea.vmem [#allocation5], 8
  %1571 = vst.msk [vmem:[%s1570] sm:$0xff] %vm76, %v1568
  %v1572 = vmul.f32 %v1552, %v1563
  %v1573 = vld [vmem:[#allocation3] sm:$0xff]
  %v1574 = vpack.c.bf16 %v1565, %v1565
  %1576 = vrot.lane.b32.xlu0 %v1574, 64
  %v1577 = vpop.permute.xlu0 %1576
  %v1579 = vsel %vm76, %v1577, 0
  %1581 = vmatprep.subr.bf16.mxu0 0
  %1582 = vmatpush1.bf16.msra.mxu0 0
  %1583 = vmatprep.subr.bf16.mxu0 0
  %1584 = vmatpush1.bf16.msra.mxu0 0
  %1585 = vmatprep.subr.bf16.mxu0 0
  %1586 = vmatpush1.bf16.msra.mxu0 0
  %1587 = vmatprep.subr.bf16.mxu0 0
  %1588 = vmatpush1.bf16.msra.mxu0 0
  %1589 = vmatprep.subr.bf16.mxu0 0
  %1590 = vmatpush1.bf16.msra.mxu0 0
  %1591 = vmatprep.subr.bf16.mxu0 0
  %1592 = vmatpush1.bf16.msra.mxu0 0
  %1593 = vmatprep.subr.bf16.mxu0 0
  %1594 = vmatpush1.bf16.msra.mxu0 %v259
  %1595 = vmatprep.subr.bf16.mxu0 0
  %1596 = vmatpush1.bf16.msra.mxu0 %v258
  %1597 = vmatprep.subr.bf16.mxu0 0
  %1598 = vmatpush2.bf16.msra.mxu0 0
  %1599 = vmatprep.subr.bf16.mxu0 0
  %1600 = vmatpush2.bf16.msra.mxu0 0
  %1601 = vmatprep.subr.bf16.mxu0 0
  %1602 = vmatpush2.bf16.msra.mxu0 0
  %1603 = vmatprep.subr.bf16.mxu0 0
  %1604 = vmatpush2.bf16.msra.mxu0 0
  %1605 = vmatprep.subr.bf16.mxu0 0
  %1606 = vmatpush2.bf16.msra.mxu0 0
  %1607 = vmatprep.subr.bf16.mxu0 0
  %1608 = vmatpush2.bf16.msra.mxu0 0
  %1609 = vmatprep.subr.bf16.mxu0 0
  %1610 = vmatpush2.bf16.msra.mxu0 0
  %1611 = vmatprep.subr.bf16.mxu0 0
  %1612 = vmatpush2.bf16.msra.mxu0 0
  %1613 = vmatprep.mubr.bf16.mxu0 0
  %1614 = vmatmul.mubr.bf16.gmra.mxu0 %v1579
  %v1615 = vpop.f32.mrf.mxu0
  %v1616 = vadd.f32 0.0, %v1615
  %v1617 = vpop.f32.mrf.mxu0
  %v1618 = vpop.f32.mrf.mxu0
  %v1619 = vpop.f32.mrf.mxu0
  %1620 = vdwg.mxu0
  %v1621 = vadd.f32 %v1573, %v1616
  %v1622 = vxor.u32 %v1621, 2147483648
  %v1623 = vmul.f32 %v1622, 1.442695
  %v1624 = vpow.pop %v1623
  %v1625 = vadd.f32 %v1624, 1.0
  %v1626 = vrcp.pop %v1625
  %v1627 = vmul.f32 1.0, %v1626
  %v1628 = vtanh.pop %v1621
  %v1629 = vmul.f32 %v1627, %v1572
  %1631 = vrot.lane.b32.xlu0 %v1628, 32
  %v1632 = vpop.permute.xlu0 %1631
  %v1634 = vmul.f32 %v1627, %v1632
  %1636 = vrot.lane.b32.xlu0 %v1634, 32
  %v1637 = vpop.permute.xlu0 %1636
  %v1639 = vadd.f32 %v1629, %v1637
  %v1640 = vtanh.pop %v1639
  %1642 = vrot.lane.b32.xlu0 %v1640, 32
  %v1643 = vpop.permute.xlu0 %1642
  %v1645 = vmul.f32 %v1627, %v1643
  %v1646 = vld [vmem:[%s1] sm:$0xff]
  %1648 = vset.pattern.permute.xlu0 0
  %1649 = vperm.xlu0 %1648, %v1646
  %v1650 = vpop.permute.xlu0 %1649
  %v1652 = vmul.f32 %v1645, %v1650
  %1654 = vrot.lane.b32.xlu0 %v1652, 64
  %v1655 = vpop.permute.xlu0 %1654
  %1657 = vst.msk [vmem:[#allocation5] sm:$0xff] %vm76, %v1655
  %v1658 = vld [vmem:[#allocation4] sm:$0xff]
  %v1659 = vld [vmem:[#allocation4 + $0x8] sm:$0xff]
  %v1660 = vld [vmem:[#allocation4 + $0x10] sm:$0xff]
  %v1661 = vld [vmem:[#allocation4 + $0x18] sm:$0xff]
  %v1662 = vld [vmem:[#allocation4 + $0x20] sm:$0xff]
  %v1663 = vld [vmem:[#allocation4 + $0x28] sm:$0xff]
  %v1664 = vld [vmem:[#allocation4 + $0x30] sm:$0xff]
  %v1665 = vld [vmem:[#allocation4 + $0x38] sm:$0xff]
  %v1666 = vpack.c.bf16 %v1659, %v1658
  %v1667 = vpack.c.bf16 %v1661, %v1660
  %v1668 = vpack.c.bf16 %v1663, %v1662
  %v1669 = vpack.c.bf16 %v1665, %v1664
  %v1670 = vld [vmem:[%s8] sm:$0xff]
  %v1671 = vld [vmem:[%s8 + $0x8] sm:$0xff]
  %v1672 = vld [vmem:[%s8 + $0x10] sm:$0xff]
  %v1673 = vld [vmem:[%s8 + $0x18] sm:$0xff]
  %v1674 = vpack.c.bf16 %v1671, %v1670
  %v1675 = vpack.c.bf16 %v1673, %v1672
  %v1676 = vld [vmem:[#allocation5] sm:$0xff]
  %v1677 = vld [vmem:[#allocation5 + $0x8] sm:$0xff]
  %v1678 = vld [vmem:[#allocation5 + $0x10] sm:$0xff]
  %v1679 = vld [vmem:[#allocation5 + $0x18] sm:$0xff]
  %v1680 = vld [vmem:[#allocation5 + $0x20] sm:$0xff]
  %v1681 = vld [vmem:[#allocation5 + $0x28] sm:$0xff]
  %v1682 = vld [vmem:[#allocation5 + $0x30] sm:$0xff]
  %v1683 = vld [vmem:[#allocation5 + $0x38] sm:$0xff]
  %v1684 = vpack.c.bf16 %v1677, %v1676
  %v1685 = vpack.c.bf16 %v1679, %v1678
  %v1686 = vpack.c.bf16 %v1681, %v1680
  %v1687 = vpack.c.bf16 %v1683, %v1682
  %v1688 = vld [vmem:[%s9] sm:$0xff]
  %v1689 = vld [vmem:[%s9 + $0x8] sm:$0xff]
  %v1690 = vld [vmem:[%s9 + $0x10] sm:$0xff]
  %v1691 = vld [vmem:[%s9 + $0x18] sm:$0xff]
  %v1692 = vpack.c.bf16 %v1689, %v1688
  %v1693 = vpack.c.bf16 %v1691, %v1690
  %v1695 = vsel %vm76, %v1684, 0
  %v1698 = vsel %vm76, %v1685, 0
  %v1701 = vsel %vm76, %v1686, 0
  %v1704 = vsel %vm76, %v1687, 0
  %1706 = vmatprep.subr.bf16.mxu0 0
  %1707 = vmatpush1.bf16.msra.mxu0 0
  %1708 = vmatprep.subr.bf16.mxu0 0
  %1709 = vmatpush1.bf16.msra.mxu0 0
  %1710 = vmatprep.subr.bf16.mxu0 0
  %1711 = vmatpush1.bf16.msra.mxu0 0
  %1712 = vmatprep.subr.bf16.mxu0 0
  %1713 = vmatpush1.bf16.msra.mxu0 0
  %1714 = vmatprep.subr.bf16.mxu0 0
  %1715 = vmatpush1.bf16.msra.mxu0 0
  %1716 = vmatprep.subr.bf16.mxu0 0
  %1717 = vmatpush1.bf16.msra.mxu0 0
  %1718 = vmatprep.subr.bf16.mxu0 0
  %1719 = vmatpush1.bf16.msra.mxu0 %v1693
  %1720 = vmatprep.subr.bf16.mxu0 0
  %1721 = vmatpush1.bf16.msra.mxu0 %v1692
  %1722 = vmatprep.subr.bf16.mxu0 0
  %1723 = vmatpush2.bf16.msra.mxu0 0
  %1724 = vmatprep.subr.bf16.mxu0 0
  %1725 = vmatpush2.bf16.msra.mxu0 0
  %1726 = vmatprep.subr.bf16.mxu0 0
  %1727 = vmatpush2.bf16.msra.mxu0 0
  %1728 = vmatprep.subr.bf16.mxu0 0
  %1729 = vmatpush2.bf16.msra.mxu0 0
  %1730 = vmatprep.subr.bf16.mxu0 0
  %1731 = vmatpush2.bf16.msra.mxu0 0
  %1732 = vmatprep.subr.bf16.mxu0 0
  %1733 = vmatpush2.bf16.msra.mxu0 0
  %1734 = vmatprep.subr.bf16.mxu0 0
  %1735 = vmatpush2.bf16.msra.mxu0 0
  %1736 = vmatprep.subr.bf16.mxu0 0
  %1737 = vmatpush2.bf16.msra.mxu0 0
  %1738 = vmatprep.mubr.bf16.mxu0 0
  %1739 = vmatmul.mubr.bf16.gmra.mxu0 %v1695
  %v1740 = vpop.f32.mrf.mxu0
  %v1741 = vadd.f32 0.0, %v1740
  %v1742 = vpop.f32.mrf.mxu0
  %v1743 = vpop.f32.mrf.mxu0
  %v1744 = vadd.f32 0.0, %v1743
  %v1745 = vpop.f32.mrf.mxu0
  %1746 = vmatprep.mubr.bf16.mxu0 0
  %1747 = vmatmul.mubr.bf16.gmra.mxu0 %v1698
  %v1748 = vpop.f32.mrf.mxu0
  %v1749 = vadd.f32 0.0, %v1748
  %v1750 = vpop.f32.mrf.mxu0
  %v1751 = vpop.f32.mrf.mxu0
  %v1752 = vadd.f32 0.0, %v1751
  %v1753 = vpop.f32.mrf.mxu0
  %1754 = vmatprep.mubr.bf16.mxu0 0
  %1755 = vmatmul.mubr.bf16.gmra.mxu0 %v1701
  %v1756 = vpop.f32.mrf.mxu0
  %v1757 = vadd.f32 0.0, %v1756
  %v1758 = vpop.f32.mrf.mxu0
  %v1759 = vpop.f32.mrf.mxu0
  %v1760 = vadd.f32 0.0, %v1759
  %v1761 = vpop.f32.mrf.mxu0
  %1762 = vmatprep.mubr.bf16.mxu0 0
  %1763 = vmatmul.mubr.bf16.gmra.mxu0 %v1704
  %v1764 = vpop.f32.mrf.mxu0
  %v1765 = vadd.f32 0.0, %v1764
  %v1766 = vpop.f32.mrf.mxu0
  %v1767 = vpop.f32.mrf.mxu0
  %v1768 = vadd.f32 0.0, %v1767
  %v1769 = vpop.f32.mrf.mxu0
  %1770 = vdwg.mxu0
  %v1772 = vsel %vm76, %v1666, 0
  %v1775 = vsel %vm76, %v1667, 0
  %v1778 = vsel %vm76, %v1668, 0
  %v1781 = vsel %vm76, %v1669, 0
  %1783 = vmatprep.subr.bf16.mxu0 0
  %1784 = vmatpush1.bf16.msra.mxu0 0
  %1785 = vmatprep.subr.bf16.mxu0 0
  %1786 = vmatpush1.bf16.msra.mxu0 0
  %1787 = vmatprep.subr.bf16.mxu0 0
  %1788 = vmatpush1.bf16.msra.mxu0 0
  %1789 = vmatprep.subr.bf16.mxu0 0
  %1790 = vmatpush1.bf16.msra.mxu0 0
  %1791 = vmatprep.subr.bf16.mxu0 0
  %1792 = vmatpush1.bf16.msra.mxu0 0
  %1793 = vmatprep.subr.bf16.mxu0 0
  %1794 = vmatpush1.bf16.msra.mxu0 0
  %1795 = vmatprep.subr.bf16.mxu0 0
  %1796 = vmatpush1.bf16.msra.mxu0 %v1675
  %1797 = vmatprep.subr.bf16.mxu0 0
  %1798 = vmatpush1.bf16.msra.mxu0 %v1674
  %1799 = vmatprep.subr.bf16.mxu0 0
  %1800 = vmatpush2.bf16.msra.mxu0 0
  %1801 = vmatprep.subr.bf16.mxu0 0
  %1802 = vmatpush2.bf16.msra.mxu0 0
  %1803 = vmatprep.subr.bf16.mxu0 0
  %1804 = vmatpush2.bf16.msra.mxu0 0
  %1805 = vmatprep.subr.bf16.mxu0 0
  %1806 = vmatpush2.bf16.msra.mxu0 0
  %1807 = vmatprep.subr.bf16.mxu0 0
  %1808 = vmatpush2.bf16.msra.mxu0 0
  %1809 = vmatprep.subr.bf16.mxu0 0
  %1810 = vmatpush2.bf16.msra.mxu0 0
  %1811 = vmatprep.subr.bf16.mxu0 0
  %1812 = vmatpush2.bf16.msra.mxu0 0
  %1813 = vmatprep.subr.bf16.mxu0 0
  %1814 = vmatpush2.bf16.msra.mxu0 0
  %1815 = vmatprep.mubr.bf16.mxu0 0
  %1816 = vmatmul.mubr.bf16.gmra.mxu0 %v1772
  %v1817 = vpop.f32.mrf.mxu0
  %v1818 = vadd.f32 %v1741, %v1817
  %v1819 = vpop.f32.mrf.mxu0
  %v1820 = vpop.f32.mrf.mxu0
  %v1821 = vadd.f32 %v1744, %v1820
  %v1822 = vpop.f32.mrf.mxu0
  %1823 = vmatprep.mubr.bf16.mxu0 0
  %1824 = vmatmul.mubr.bf16.gmra.mxu0 %v1775
  %v1825 = vpop.f32.mrf.mxu0
  %v1826 = vadd.f32 %v1749, %v1825
  %v1827 = vpop.f32.mrf.mxu0
  %v1828 = vpop.f32.mrf.mxu0
  %v1829 = vadd.f32 %v1752, %v1828
  %v1830 = vpop.f32.mrf.mxu0
  %1831 = vmatprep.mubr.bf16.mxu0 0
  %1832 = vmatmul.mubr.bf16.gmra.mxu0 %v1778
  %v1833 = vpop.f32.mrf.mxu0
  %v1834 = vadd.f32 %v1757, %v1833
  %v1835 = vpop.f32.mrf.mxu0
  %v1836 = vpop.f32.mrf.mxu0
  %v1837 = vadd.f32 %v1760, %v1836
  %v1838 = vpop.f32.mrf.mxu0
  %1839 = vmatprep.mubr.bf16.mxu0 0
  %1840 = vmatmul.mubr.bf16.gmra.mxu0 %v1781
  %v1841 = vpop.f32.mrf.mxu0
  %v1842 = vadd.f32 %v1765, %v1841
  %v1843 = vpop.f32.mrf.mxu0
  %v1844 = vpop.f32.mrf.mxu0
  %v1845 = vadd.f32 %v1768, %v1844
  %v1846 = vpop.f32.mrf.mxu0
  %1847 = vdwg.mxu0
  %v1848 = vld [vmem:[%s10] sm:$0x1]
  %v1850 = vlaneseq
  %v1851 = vshrl.u32 %v1850, 7
  %v1852 = vsub.s32 0, %v1851
  %v1853 = vrot.slane %v1848, %v1852
  %v1855 = vadd.f32 %v1818, %v1853
  %v1856 = vadd.f32 %v1821, %v1853
  %v1857 = vadd.f32 %v1826, %v1853
  %v1858 = vadd.f32 %v1829, %v1853
  %v1859 = vadd.f32 %v1834, %v1853
  %v1860 = vadd.f32 %v1837, %v1853
  %v1861 = vadd.f32 %v1842, %v1853
  %v1862 = vadd.f32 %v1845, %v1853
  %v1863 = vmax.f32 %v1855, 0.0
  %v1864 = vmax.f32 %v1856, 0.0
  %v1865 = vmax.f32 %v1857, 0.0
  %v1866 = vmax.f32 %v1858, 0.0
  %v1867 = vmax.f32 %v1859, 0.0
  %v1868 = vmax.f32 %v1860, 0.0
  %v1869 = vmax.f32 %v1861, 0.0
  %v1870 = vmax.f32 %v1862, 0.0
  %v1871 = vld [vmem:[%s11] sm:$0xff]
  %v1872 = vld [vmem:[%s11 + $0x8] sm:$0xff]
  %v1873 = vld [vmem:[%s11 + $0x10] sm:$0xff]
  %v1874 = vpack.c.bf16 %v1872, %v1871
  %v1875 = vpack.c.bf16 %v1873, %v1873
  %v1876 = vpack.c.bf16 %v1864, %v1863
  %v1877 = vpack.c.bf16 %v1866, %v1865
  %v1878 = vpack.c.bf16 %v1868, %v1867
  %v1879 = vpack.c.bf16 %v1870, %v1869
  %vm1880 = vcmask 523264
  %v1882 = vsel %vm1880, %v1874, 0
  %v1885 = vsel %vm1880, %v1875, 0
  %1887 = vmatprep.subr.bf16.mxu0 0
  %1888 = vmatpush1.bf16.msra.mxu0 0
  %1889 = vmatprep.subr.bf16.mxu0 0
  %1890 = vmatpush1.bf16.msra.mxu0 0
  %1891 = vmatprep.subr.bf16.mxu0 0
  %1892 = vmatpush1.bf16.msra.mxu0 0
  %1893 = vmatprep.subr.bf16.mxu0 0
  %1894 = vmatpush1.bf16.msra.mxu0 0
  %1895 = vmatprep.subr.bf16.mxu0 0
  %1896 = vmatpush1.bf16.msra.mxu0 %v1879
  %1897 = vmatprep.subr.bf16.mxu0 0
  %1898 = vmatpush1.bf16.msra.mxu0 %v1878
  %1899 = vmatprep.subr.bf16.mxu0 0
  %1900 = vmatpush1.bf16.msra.mxu0 %v1877
  %1901 = vmatprep.subr.bf16.mxu0 0
  %1902 = vmatpush1.bf16.msra.mxu0 %v1876
  %1903 = vmatprep.subr.bf16.mxu0 0
  %1904 = vmatpush2.bf16.msra.mxu0 0
  %1905 = vmatprep.subr.bf16.mxu0 0
  %1906 = vmatpush2.bf16.msra.mxu0 0
  %1907 = vmatprep.subr.bf16.mxu0 0
  %1908 = vmatpush2.bf16.msra.mxu0 0
  %1909 = vmatprep.subr.bf16.mxu0 0
  %1910 = vmatpush2.bf16.msra.mxu0 0
  %1911 = vmatprep.subr.bf16.mxu0 0
  %1912 = vmatpush2.bf16.msra.mxu0 0
  %1913 = vmatprep.subr.bf16.mxu0 0
  %1914 = vmatpush2.bf16.msra.mxu0 0
  %1915 = vmatprep.subr.bf16.mxu0 0
  %1916 = vmatpush2.bf16.msra.mxu0 0
  %1917 = vmatprep.subr.bf16.mxu0 0
  %1918 = vmatpush2.bf16.msra.mxu0 0
  %1919 = vmatprep.mubr.bf16.mxu0 0
  %1920 = vmatmul.mubr.bf16.gmra.mxu0 %v1882
  %v1921 = vpop.f32.mrf.mxu0
  %v1922 = vadd.f32 0.0, %v1921
  %v1923 = vpop.f32.mrf.mxu0
  %v1924 = vpop.f32.mrf.mxu0
  %v1925 = vadd.f32 0.0, %v1924
  %v1926 = vpop.f32.mrf.mxu0
  %1927 = vmatprep.mubr.bf16.mxu0 0
  %1928 = vmatmul.mubr.bf16.gmra.mxu0 %v1885
  %v1929 = vpop.f32.mrf.mxu0
  %v1930 = vadd.f32 0.0, %v1929
  %v1931 = vpop.f32.mrf.mxu0
  %v1932 = vpop.f32.mrf.mxu0
  %v1933 = vpop.f32.mrf.mxu0
  %1934 = vdwg.mxu0
  %v1935 = vld [vmem:[%s12] sm:$0xff]
  %v1936 = vld [vmem:[%s12 + $0x8] sm:$0xff]
  %v1937 = vld [vmem:[%s12 + $0x10] sm:$0xff]
  %1939 = vset.pattern.permute.xlu0 0
  %1940 = vperm.xlu0 %1939, %v1935
  %v1941 = vpop.permute.xlu0 %1940
  %1944 = vset.pattern.permute.xlu0 0
  %1945 = vperm.xlu0 %1944, %v1936
  %v1946 = vpop.permute.xlu0 %1945
  %1949 = vset.pattern.permute.xlu0 0
  %1950 = vperm.xlu0 %1949, %v1937
  %v1951 = vpop.permute.xlu0 %1950
  %v1953 = vrcp.pop %v1941
  %v1954 = vmul.f32 %v1922, %v1953
  %v1955 = vrcp.pop %v1946
  %v1956 = vmul.f32 %v1925, %v1955
  %v1957 = vrcp.pop %v1951
  %v1958 = vmul.f32 %v1930, %v1957
  %v1959 = vld [vmem:[%s13] sm:$0xff]
  %v1960 = vld [vmem:[%s13 + $0x8] sm:$0xff]
  %v1961 = vld [vmem:[%s13 + $0x10] sm:$0xff]
  %v1962 = vld [vmem:[%s13 + $0x18] sm:$0xff]
  %v1963 = vld [vmem:[%s14] sm:$0x1]
  %v1965 = vlaneseq
  %v1966 = vshrl.u32 %v1965, 7
  %v1967 = vsub.s32 0, %v1966
  %v1968 = vrot.slane %v1963, %v1967
  %v1971 = vsel %vm76, %v1954, 0
  %v1974 = vsel %vm76, %v1956, 0
  %v1977 = vsel %vm76, %v1958, 0
  %1979 = vmatprep.subr.mxu0 0.0
  %1980 = vmatpush1.msra.mxu0 0.0
  %1981 = vmatprep.subr.mxu0 0.0
  %1982 = vmatpush1.msra.mxu0 0.0
  %1983 = vmatprep.subr.mxu0 0.0
  %1984 = vmatpush1.msra.mxu0 0.0
  %1985 = vmatprep.subr.mxu0 0.0
  %1986 = vmatpush1.msra.mxu0 0.0
  %1987 = vmatprep.subr.mxu0 0.0
  %1988 = vmatpush1.msra.mxu0 0.0
  %1989 = vmatprep.subr.mxu0 0.0
  %1990 = vmatpush1.msra.mxu0 0.0
  %1991 = vmatprep.subr.mxu0 0.0
  %1992 = vmatpush1.msra.mxu0 0.0
  %1993 = vmatprep.subr.mxu0 0.0
  %1994 = vmatpush1.msra.mxu0 0.0
  %1995 = vmatprep.subr.mxu0 0.0
  %1996 = vmatpush1.msra.mxu0 0.0
  %1997 = vmatprep.subr.mxu0 0.0
  %1998 = vmatpush1.msra.mxu0 0.0
  %1999 = vmatprep.subr.mxu0 0.0
  %2000 = vmatpush1.msra.mxu0 0.0
  %2001 = vmatprep.subr.mxu0 0.0
  %2002 = vmatpush1.msra.mxu0 0.0
  %2003 = vmatprep.subr.mxu0 0.0
  %2004 = vmatpush1.msra.mxu0 %v1962
  %2005 = vmatprep.subr.mxu0 0.0
  %2006 = vmatpush1.msra.mxu0 %v1961
  %2007 = vmatprep.subr.mxu0 0.0
  %2008 = vmatpush1.msra.mxu0 %v1960
  %2009 = vmatprep.subr.mxu0 0.0
  %2010 = vmatpush1.msra.mxu0 %v1959
  %2011 = vmatprep.subr.mxu0 0.0
  %2012 = vmatpush2.msra.mxu0 0.0
  %2013 = vmatprep.subr.mxu0 0.0
  %2014 = vmatpush2.msra.mxu0 0.0
  %2015 = vmatprep.subr.mxu0 0.0
  %2016 = vmatpush2.msra.mxu0 0.0
  %2017 = vmatprep.subr.mxu0 0.0
  %2018 = vmatpush2.msra.mxu0 0.0
  %2019 = vmatprep.subr.mxu0 0.0
  %2020 = vmatpush2.msra.mxu0 0.0
  %2021 = vmatprep.subr.mxu0 0.0
  %2022 = vmatpush2.msra.mxu0 0.0
  %2023 = vmatprep.subr.mxu0 0.0
  %2024 = vmatpush2.msra.mxu0 0.0
  %2025 = vmatprep.subr.mxu0 0.0
  %2026 = vmatpush2.msra.mxu0 0.0
  %2027 = vmatprep.subr.mxu0 0.0
  %2028 = vmatpush2.msra.mxu0 0.0
  %2029 = vmatprep.subr.mxu0 0.0
  %2030 = vmatpush2.msra.mxu0 0.0
  %2031 = vmatprep.subr.mxu0 0.0
  %2032 = vmatpush2.msra.mxu0 0.0
  %2033 = vmatprep.subr.mxu0 0.0
  %2034 = vmatpush2.msra.mxu0 0.0
  %2035 = vmatprep.subr.mxu0 0.0
  %2036 = vmatpush2.msra.mxu0 0.0
  %2037 = vmatprep.subr.mxu0 0.0
  %2038 = vmatpush2.msra.mxu0 0.0
  %2039 = vmatprep.subr.mxu0 0.0
  %2040 = vmatpush2.msra.mxu0 0.0
  %2041 = vmatprep.subr.mxu0 0.0
  %2042 = vmatpush2.msra.mxu0 0.0
  %2043 = vmatprep.mubr.f32.mxu0 0.0
  %2044 = vmatmul.mubr.f32.gmra.mxu0 %v1971
  %v2045 = vpop.f32.mrf.mxu0
  %v2046 = vadd.f32 %v1968, %v2045
  %v2047 = vpop.f32.mrf.mxu0
  %2048 = vmatprep.mubr.f32.mxu0 0.0
  %2049 = vmatmul.mubr.f32.gmra.mxu0 %v1974
  %v2050 = vpop.f32.mrf.mxu0
  %v2051 = vadd.f32 %v1968, %v2050
  %v2052 = vpop.f32.mrf.mxu0
  %2053 = vmatprep.mubr.f32.mxu0 0.0
  %2054 = vmatmul.mubr.f32.gmra.mxu0 %v1977
  %v2055 = vpop.f32.mrf.mxu0
  %v2056 = vadd.f32 %v1968, %v2055
  %v2057 = vpop.f32.mrf.mxu0
  %2058 = vdwg.mxu0
  %2059 = vst.msk [vmem:[%s15] sm:$0xff] %vm76, %v2046
  %2060 = vst.msk [vmem:[%s15 + $0x8] sm:$0xff] %vm76, %v2051
  %2061 = vst.msk [vmem:[%s15 + $0x10] sm:$0xff] %vm76, %v2056
  // Predicated region
  $region62: #{dual_forward.2} parent=0 // pred_check
    _
  $region63: #{dual_forward.2} parent=0 // pred_check_branch
    %2063 = sbr.rel (0) target = $region65
  $region64: #{dual_forward.2} parent=0 // pred_region
    _
  $region65: #{dual_forward.2} parent=0 // pred_fallthru
    _
  // Predicated region
  $region66: #{dual_forward.2} parent=0 // pred_check
    _
  $region67: #{dual_forward.2} parent=0 // pred_check_branch
    %2065 = sbr.rel (0) target = $region69
  $region68: #{dual_forward.2} parent=0 // pred_region
    _
  $region69: #{dual_forward.2} parent=0 // pred_fallthru
    _

</llo_original>
